<compile_context>
chip_gen: v6e
topology: v6e:2x2x1
jax: 0.10.0
libtpu: 0.0.40
codegen_flags: <defaults>
</compile_context>

<pallas_src>
import functools

import jax
import jax.numpy as jnp
import numpy as np
from jax.experimental import pallas as pl
from jax.experimental.pallas import tpu as pltpu


def _round_up(x, m):
    return ((x + m - 1) // m) * m


def _default_num_splits(T):
    """2 grid steps on v7x (2 TensorCores/chip), 1 on single-TC v5e/v6e."""
    try:
        kind = jax.devices()[0].device_kind.lower()
        n = 2 if ("v7" in kind or "7x" in kind) else 1
    except Exception:  # pragma: no cover - defensive
        n = 1
    return n if T % n == 0 else 1


# ----------------------------------------------------------------------------
# Fused kernel: pre-masked linear1 (no bias) + out_embedding projection.
# grid = (G,)  -- one step per strip of Tc = T // G output time slices.
#
#   h      = x @ maskedW1^T[:, strip_g]            (Bp, Tc*d)   bf16 x bf16 -> f32
#   y[t]   = h[:, t*d:(t+1)*d] @ W_out^T + b_out   (Bp, Vp)     per time slice
# ----------------------------------------------------------------------------
def _fused_kernel(x_ref, w1t_ref, wot_ref, b_ref, o_ref, *, Tc, d, Vp):
    # Masked linear1 (mask already folded into the weights on the host).
    h = jnp.dot(x_ref[...], w1t_ref[0], preferred_element_type=jnp.float32)
    wot = wot_ref[...]
    b = b_ref[...]
    # out_embedding per time slice: static loop of small MXU dots, no
    # cross-tile reshape; each output block is a lane-dense 128-multiple.
    for tt in range(Tc):
        y_t = jnp.dot(h[:, tt * d:(tt + 1) * d], wot,
                      preferred_element_type=jnp.float32) + b
        o_ref[:, tt * Vp:(tt + 1) * Vp] = y_t.astype(o_ref.dtype)


def fused_causal_forward(x_flat, w1t_strips, wot_p, b_p, *, T, d):
    """x_flat: (Bp, T*d) bf16; w1t_strips: (G, T*d, Tc*d) bf16 (pre-masked,
    transposed); wot_p: (d, Vp) f32; b_p: (1, Vp) f32.
    Returns (Bp, T*Vp) f32 (time-major per Vp chunk)."""
    Bp, TD = x_flat.shape
    G, _, Tcd = w1t_strips.shape
    Tc = T // G
    Vp = wot_p.shape[1]

    itemsize = lambda a: a.dtype.itemsize
    flops = 2 * Bp * TD * TD + 2 * (Bp * T) * d * Vp
    bytes_accessed = (x_flat.size * itemsize(x_flat)
                      + w1t_strips.size * itemsize(w1t_strips)
                      + wot_p.size * 4 + b_p.size * 4
                      + Bp * T * Vp * 4)
    # Right-sized VMEM: double-buffered per-step blocks + headroom.
    vmem_need = 2 * (x_flat.size * itemsize(x_flat)
                     + TD * Tcd * itemsize(w1t_strips)
                     + wot_p.size * 4 + b_p.size * 4
                     + Bp * Tc * Vp * 4) + (4 << 20)
    vmem_limit = int(min(max(vmem_need, 8 << 20), 48 << 20))

    kernel = functools.partial(_fused_kernel, Tc=Tc, d=d, Vp=Vp)
    return pl.pallas_call(
        kernel,
        out_shape=jax.ShapeDtypeStruct((Bp, T * Vp), jnp.float32),
        grid_spec=pltpu.PrefetchScalarGridSpec(
            num_scalar_prefetch=0,
            grid=(G,),
            in_specs=[
                # x: constant block index -> DMA'd once, resident across steps.
                pl.BlockSpec((Bp, TD), lambda g: (0, 0)),
                # Contiguous pre-masked W1^T strip for this step's time slices.
                pl.BlockSpec((1, TD, Tcd), lambda g: (g, 0, 0)),
                # Output-projection weight / bias: resident.
                pl.BlockSpec((d, Vp), lambda g: (0, 0)),
                pl.BlockSpec((1, Vp), lambda g: (0, 0)),
            ],
            out_specs=pl.BlockSpec((Bp, Tc * Vp), lambda g: (0, g)),
        ),
        compiler_params=pltpu.CompilerParams(
            dimension_semantics=("parallel",),   # v7x: both TCs split the strips
            vmem_limit_bytes=vmem_limit,
        ),
        cost_estimate=pl.CostEstimate(
            flops=flops, transcendentals=0, bytes_accessed=bytes_accessed),
    )(x_flat, w1t_strips, wot_p, b_p)


# ----------------------------------------------------------------------------
# One-time parameter prep (OUTSIDE the jitted forward): fold the causal mask
# into W1, transpose, re-layout into contiguous per-step strips, cast to bf16,
# and pad the vocab dimension to a multiple of 128 lanes.
# ----------------------------------------------------------------------------
def prepare_params(w1, w_out, b_out, *, T, d, n_splits):
    TD = T * d
    Tc = T // n_splits
    V = w_out.shape[0]
    Vp = max(128, _round_up(V, 128))

    w1 = jnp.asarray(w1, jnp.float32)
    mask = jnp.tril(jnp.ones((T, T), dtype=jnp.float32))       # triu(ones).T == 1
    w1_masked = (w1.reshape(T, d, T, d) * mask.reshape(T, 1, T, 1)).reshape(TD, TD)
    # Transpose (so the kernel does x @ W^T as a plain dot) and re-layout into
    # contiguous output-column strips: strip g = columns [g*Tc*d, (g+1)*Tc*d).
    w1t_strips = (w1_masked.T.reshape(TD, n_splits, Tc * d)
                  .transpose(1, 0, 2).astype(jnp.bfloat16))     # (G, TD, Tc*d)

    wot_p = jnp.pad(jnp.asarray(w_out, jnp.float32).T,
                    ((0, 0), (0, Vp - V)))                      # (d, Vp) f32
    b_p = jnp.pad(jnp.asarray(b_out, jnp.float32),
                  (0, Vp - V)).reshape(1, Vp)                   # (1, Vp) f32
    return w1t_strips, wot_p, b_p


# ----------------------------------------------------------------------------
# Full model forward (glue + fused Pallas kernel)
# ----------------------------------------------------------------------------
@functools.partial(jax.jit, static_argnames=("T", "d", "V"))
def linear_model_forward(tokens, emb_table, w1t_strips, wot_p, b_p, *, T, d, V):
    B, L = tokens.shape
    # pad / truncate to T (pad token id = 0; keep the LAST T, as in the spec)
    if L < T:
        tokens = jnp.pad(tokens, ((0, 0), (0, T - L)))
    elif L > T:
        tokens = tokens[:, -T:]

    # embedding lookup (gather) -- plain JAX glue, not the hot path
    x = jnp.take(emb_table, tokens, axis=0)             # (B, T, d)
    x_flat = x.reshape(B, T * d)                         # (B, T*d)

    # sublane-align the batch (zero rows are computed then discarded)
    Bp = max(8, _round_up(B, 8))
    if Bp != B:
        x_flat = jnp.pad(x_flat, ((0, Bp - B), (0, 0)))
    x_flat = x_flat.astype(jnp.bfloat16)                 # halve activation DMA

    Vp = wot_p.shape[1]
    y_flat = fused_causal_forward(x_flat, w1t_strips, wot_p, b_p, T=T, d=d)
    return y_flat.reshape(Bp, T, Vp)[:B, :, :V]          # strip pad rows / lanes


# ----------------------------------------------------------------------------
# Pure-JAX reference (mirrors the PyTorch forward exactly, full f32)
# ----------------------------------------------------------------------------
def reference_forward(tokens, emb_table, w1, w_out, b_out, *, T, d):
    B, L = tokens.shape
    if L < T:
        tokens = jnp.pad(tokens, ((0, 0), (0, T - L)))
    elif L > T:
        tokens = tokens[:, -T:]
    x = jnp.take(emb_table, tokens, axis=0).reshape(B, T * d)

    mask = jnp.tril(jnp.ones((T, T), dtype=jnp.float32))
    w1_blocks = w1.reshape(T, d, T, d) * mask.reshape(T, 1, T, 1)
    masked_w = w1_blocks.reshape(T * d, T * d)
    h = x @ masked_w.T                                    # F.linear, no bias
    h = h.reshape(B * T, d)
    y = h @ w_out.T + b_out
    return y.reshape(B, T, w_out.shape[0])


if __name__ == "__main__":
    # Small shapes consistent with the module (T*d blocks must be TPU-friendly)
    B, L = 2, 6          # L < T  -> exercises the padding branch
    T, d = 8, 128
    num_tokens = 32

    key = jax.random.PRNGKey(0)
    k_tok, k_emb, k_w1, k_wo, k_bo = jax.random.split(key, 5)

    tokens = jax.random.randint(k_tok, (B, L), 0, num_tokens, dtype=jnp.int32)
    emb_table = jax.random.normal(k_emb, (num_tokens, d), jnp.float32) * 0.02
    w1 = jax.random.normal(k_w1, (T * d, T * d), jnp.float32) / np.sqrt(T * d)
    w_out = jax.random.normal(k_wo, (num_tokens, d), jnp.float32) / np.sqrt(d)
    b_out = jax.random.normal(k_bo, (num_tokens,), jnp.float32) * 0.01

    # Hoisted, one-time weight prep (mask fold + transpose + strip layout +
    # bf16 cast + lane padding) outside the jit.
    n_splits = _default_num_splits(T)            # 2 on v7x, 1 on v5e/v6e
    w1t_strips, wot_p, b_p = prepare_params(w1, w_out, b_out,
                                            T=T, d=d, n_splits=n_splits)
    w1t_strips, wot_p, b_p = jax.block_until_ready((w1t_strips, wot_p, b_p))

    out = linear_model_forward(tokens, emb_table, w1t_strips, wot_p, b_p,
                               T=T, d=d, V=num_tokens)
    out = jax.block_until_ready(out)

    ref = reference_forward(tokens, emb_table, w1, w_out, b_out, T=T, d=d)
    # bf16 weights/activations with f32 MXU accumulation -> looser tolerance.
    np.testing.assert_allclose(np.asarray(out), np.asarray(ref),
                               rtol=2e-2, atol=2e-3)
    assert out.shape == (B, T, num_tokens)
    print("KERNEL_OK")
</pallas_src>

<mosaic_0001>
module attributes {stable_mosaic.version = 11 : i64} {
  func.func @_fused_kernel(%arg0: i32, %arg1: memref<8x1024xbf16, #tpu.memory_space<vmem>>, %arg2: memref<1x1024x1024xbf16, #tpu.memory_space<vmem>>, %arg3: memref<128x128xf32, #tpu.memory_space<vmem>>, %arg4: memref<1x128xf32, #tpu.memory_space<vmem>>, %arg5: memref<8x1024xf32, #tpu.memory_space<vmem>>) attributes {dimension_semantics = [#tpu.dimension_semantics<parallel>], iteration_bounds = array<i64: 1>, scalar_prefetch = 0 : i64, scratch_operands = 0 : i64, tpu.core_type = #tpu.core_type<tc>, window_params = [{pipeline_mode = #tpu.pipeline_mode<synchronous>, transform_indices = @transform_0, window_bounds = array<i64: 8, 1024>}, {transform_indices = @transform_1, window_bounds = array<i64: 1, 1024, 1024>}, {pipeline_mode = #tpu.pipeline_mode<synchronous>, transform_indices = @transform_2, window_bounds = array<i64: 128, 128>}, {pipeline_mode = #tpu.pipeline_mode<synchronous>, transform_indices = @transform_3, window_bounds = array<i64: 1, 128>}, {transform_indices = @transform_4, window_bounds = array<i64: 8, 1024>}]} {
    %c0 = arith.constant 0 : index
    %c0_0 = arith.constant 0 : index
    %0 = vector.load %arg1[%c0, %c0_0] : memref<8x1024xbf16, #tpu.memory_space<vmem>>, vector<8x1024xbf16>
    %c0_1 = arith.constant 0 : index
    %c0_2 = arith.constant 0 : index
    %c0_3 = arith.constant 0 : index
    %1 = vector.load %arg2[%c0_1, %c0_2, %c0_3] : memref<1x1024x1024xbf16, #tpu.memory_space<vmem>>, vector<1x1024x1024xbf16>
    %2 = vector.shape_cast %1 : vector<1x1024x1024xbf16> to vector<1024x1024xbf16>
    %cst = arith.constant dense<0.000000e+00> : vector<8x1024xf32>
    %3 = tpu.matmul %0, %2, %cst {dimension_numbers = #tpu.dot_dimension_numbers<[1], [0], [0], [1], [0, 0, 1, 1], [], []>} : vector<8x1024xbf16>, vector<1024x1024xbf16>, vector<8x1024xf32> -> vector<8x1024xf32>
    %c0_4 = arith.constant 0 : index
    %c0_5 = arith.constant 0 : index
    %4 = vector.load %arg3[%c0_4, %c0_5] : memref<128x128xf32, #tpu.memory_space<vmem>>, vector<128x128xf32>
    %c0_6 = arith.constant 0 : index
    %c0_7 = arith.constant 0 : index
    %5 = vector.load %arg4[%c0_6, %c0_7] : memref<1x128xf32, #tpu.memory_space<vmem>>, vector<1x128xf32>
    %6 = vector.extract_strided_slice %3 {offsets = [0, 0], sizes = [8, 128], strides = [1, 1]} : vector<8x1024xf32> to vector<8x128xf32>
    %cst_8 = arith.constant dense<0.000000e+00> : vector<8x128xf32>
    %7 = tpu.matmul %6, %4, %cst_8 {dimension_numbers = #tpu.dot_dimension_numbers<[1], [0], [0], [1], [0, 0, 1, 1], [], []>} : vector<8x128xf32>, vector<128x128xf32>, vector<8x128xf32> -> vector<8x128xf32>
    %8 = vector.broadcast %5 : vector<1x128xf32> to vector<8x128xf32>
    %9 = arith.addf %7, %8 : vector<8x128xf32>
    %c0_9 = arith.constant 0 : index
    %c0_10 = arith.constant 0 : index
    %10 = vector.load %arg5[%c0_9, %c0_10] : memref<8x1024xf32, #tpu.memory_space<vmem>>, vector<8x128xf32>
    tpu.vector_store %arg5[%c0_9, %c0_10], %9 {strides = array<i32>} : memref<8x1024xf32, #tpu.memory_space<vmem>>, vector<8x128xf32>,
    %11 = vector.extract_strided_slice %3 {offsets = [0, 128], sizes = [8, 128], strides = [1, 1]} : vector<8x1024xf32> to vector<8x128xf32>
    %cst_11 = arith.constant dense<0.000000e+00> : vector<8x128xf32>
    %12 = tpu.matmul %11, %4, %cst_11 {dimension_numbers = #tpu.dot_dimension_numbers<[1], [0], [0], [1], [0, 0, 1, 1], [], []>} : vector<8x128xf32>, vector<128x128xf32>, vector<8x128xf32> -> vector<8x128xf32>
    %13 = vector.broadcast %5 : vector<1x128xf32> to vector<8x128xf32>
    %14 = arith.addf %12, %13 : vector<8x128xf32>
    %c0_12 = arith.constant 0 : index
    %c128 = arith.constant 128 : index
    %15 = vector.load %arg5[%c0_12, %c128] : memref<8x1024xf32, #tpu.memory_space<vmem>>, vector<8x128xf32>
    tpu.vector_store %arg5[%c0_12, %c128], %14 {strides = array<i32>} : memref<8x1024xf32, #tpu.memory_space<vmem>>, vector<8x128xf32>,
    %16 = vector.extract_strided_slice %3 {offsets = [0, 256], sizes = [8, 128], strides = [1, 1]} : vector<8x1024xf32> to vector<8x128xf32>
    %cst_13 = arith.constant dense<0.000000e+00> : vector<8x128xf32>
    %17 = tpu.matmul %16, %4, %cst_13 {dimension_numbers = #tpu.dot_dimension_numbers<[1], [0], [0], [1], [0, 0, 1, 1], [], []>} : vector<8x128xf32>, vector<128x128xf32>, vector<8x128xf32> -> vector<8x128xf32>
    %18 = vector.broadcast %5 : vector<1x128xf32> to vector<8x128xf32>
    %19 = arith.addf %17, %18 : vector<8x128xf32>
    %c0_14 = arith.constant 0 : index
    %c256 = arith.constant 256 : index
    %20 = vector.load %arg5[%c0_14, %c256] : memref<8x1024xf32, #tpu.memory_space<vmem>>, vector<8x128xf32>
    tpu.vector_store %arg5[%c0_14, %c256], %19 {strides = array<i32>} : memref<8x1024xf32, #tpu.memory_space<vmem>>, vector<8x128xf32>,
    %21 = vector.extract_strided_slice %3 {offsets = [0, 384], sizes = [8, 128], strides = [1, 1]} : vector<8x1024xf32> to vector<8x128xf32>
    %cst_15 = arith.constant dense<0.000000e+00> : vector<8x128xf32>
    %22 = tpu.matmul %21, %4, %cst_15 {dimension_numbers = #tpu.dot_dimension_numbers<[1], [0], [0], [1], [0, 0, 1, 1], [], []>} : vector<8x128xf32>, vector<128x128xf32>, vector<8x128xf32> -> vector<8x128xf32>
    %23 = vector.broadcast %5 : vector<1x128xf32> to vector<8x128xf32>
    %24 = arith.addf %22, %23 : vector<8x128xf32>
    %c0_16 = arith.constant 0 : index
    %c384 = arith.constant 384 : index
    %25 = vector.load %arg5[%c0_16, %c384] : memref<8x1024xf32, #tpu.memory_space<vmem>>, vector<8x128xf32>
    tpu.vector_store %arg5[%c0_16, %c384], %24 {strides = array<i32>} : memref<8x1024xf32, #tpu.memory_space<vmem>>, vector<8x128xf32>,
    %26 = vector.extract_strided_slice %3 {offsets = [0, 512], sizes = [8, 128], strides = [1, 1]} : vector<8x1024xf32> to vector<8x128xf32>
    %cst_17 = arith.constant dense<0.000000e+00> : vector<8x128xf32>
    %27 = tpu.matmul %26, %4, %cst_17 {dimension_numbers = #tpu.dot_dimension_numbers<[1], [0], [0], [1], [0, 0, 1, 1], [], []>} : vector<8x128xf32>, vector<128x128xf32>, vector<8x128xf32> -> vector<8x128xf32>
    %28 = vector.broadcast %5 : vector<1x128xf32> to vector<8x128xf32>
    %29 = arith.addf %27, %28 : vector<8x128xf32>
    %c0_18 = arith.constant 0 : index
    %c512 = arith.constant 512 : index
    %30 = vector.load %arg5[%c0_18, %c512] : memref<8x1024xf32, #tpu.memory_space<vmem>>, vector<8x128xf32>
    tpu.vector_store %arg5[%c0_18, %c512], %29 {strides = array<i32>} : memref<8x1024xf32, #tpu.memory_space<vmem>>, vector<8x128xf32>,
    %31 = vector.extract_strided_slice %3 {offsets = [0, 640], sizes = [8, 128], strides = [1, 1]} : vector<8x1024xf32> to vector<8x128xf32>
    %cst_19 = arith.constant dense<0.000000e+00> : vector<8x128xf32>
    %32 = tpu.matmul %31, %4, %cst_19 {dimension_numbers = #tpu.dot_dimension_numbers<[1], [0], [0], [1], [0, 0, 1, 1], [], []>} : vector<8x128xf32>, vector<128x128xf32>, vector<8x128xf32> -> vector<8x128xf32>
    %33 = vector.broadcast %5 : vector<1x128xf32> to vector<8x128xf32>
    %34 = arith.addf %32, %33 : vector<8x128xf32>
    %c0_20 = arith.constant 0 : index
    %c640 = arith.constant 640 : index
    %35 = vector.load %arg5[%c0_20, %c640] : memref<8x1024xf32, #tpu.memory_space<vmem>>, vector<8x128xf32>
    tpu.vector_store %arg5[%c0_20, %c640], %34 {strides = array<i32>} : memref<8x1024xf32, #tpu.memory_space<vmem>>, vector<8x128xf32>,
    %36 = vector.extract_strided_slice %3 {offsets = [0, 768], sizes = [8, 128], strides = [1, 1]} : vector<8x1024xf32> to vector<8x128xf32>
    %cst_21 = arith.constant dense<0.000000e+00> : vector<8x128xf32>
    %37 = tpu.matmul %36, %4, %cst_21 {dimension_numbers = #tpu.dot_dimension_numbers<[1], [0], [0], [1], [0, 0, 1, 1], [], []>} : vector<8x128xf32>, vector<128x128xf32>, vector<8x128xf32> -> vector<8x128xf32>
    %38 = vector.broadcast %5 : vector<1x128xf32> to vector<8x128xf32>
    %39 = arith.addf %37, %38 : vector<8x128xf32>
    %c0_22 = arith.constant 0 : index
    %c768 = arith.constant 768 : index
    %40 = vector.load %arg5[%c0_22, %c768] : memref<8x1024xf32, #tpu.memory_space<vmem>>, vector<8x128xf32>
    tpu.vector_store %arg5[%c0_22, %c768], %39 {strides = array<i32>} : memref<8x1024xf32, #tpu.memory_space<vmem>>, vector<8x128xf32>,
    %41 = vector.extract_strided_slice %3 {offsets = [0, 896], sizes = [8, 128], strides = [1, 1]} : vector<8x1024xf32> to vector<8x128xf32>
    %cst_23 = arith.constant dense<0.000000e+00> : vector<8x128xf32>
    %42 = tpu.matmul %41, %4, %cst_23 {dimension_numbers = #tpu.dot_dimension_numbers<[1], [0], [0], [1], [0, 0, 1, 1], [], []>} : vector<8x128xf32>, vector<128x128xf32>, vector<8x128xf32> -> vector<8x128xf32>
    %43 = vector.broadcast %5 : vector<1x128xf32> to vector<8x128xf32>
    %44 = arith.addf %42, %43 : vector<8x128xf32>
    %c0_24 = arith.constant 0 : index
    %c896 = arith.constant 896 : index
    %45 = vector.load %arg5[%c0_24, %c896] : memref<8x1024xf32, #tpu.memory_space<vmem>>, vector<8x128xf32>
    tpu.vector_store %arg5[%c0_24, %c896], %44 {strides = array<i32>} : memref<8x1024xf32, #tpu.memory_space<vmem>>, vector<8x128xf32>,
    return
  }
  func.func @transform_0(%arg0: i32) -> (i32, i32) {
    %c0_i32 = arith.constant 0 : i32
    %c0_i32_0 = arith.constant 0 : i32
    %c0_i32_1 = arith.constant 0 : i32
    return %c0_i32, %c0_i32_0 : i32, i32
  }
  func.func @transform_1(%arg0: i32) -> (i32, i32, i32) {
    %c0_i32 = arith.constant 0 : i32
    %c0_i32_0 = arith.constant 0 : i32
    %c0_i32_1 = arith.constant 0 : i32
    return %arg0, %c0_i32, %c0_i32_0 : i32, i32, i32
  }
  func.func @transform_2(%arg0: i32) -> (i32, i32) {
    %c0_i32 = arith.constant 0 : i32
    %c0_i32_0 = arith.constant 0 : i32
    %c0_i32_1 = arith.constant 0 : i32
    return %c0_i32, %c0_i32_0 : i32, i32
  }
  func.func @transform_3(%arg0: i32) -> (i32, i32) {
    %c0_i32 = arith.constant 0 : i32
    %c0_i32_0 = arith.constant 0 : i32
    %c0_i32_1 = arith.constant 0 : i32
    return %c0_i32, %c0_i32_0 : i32, i32
  }
  func.func @transform_4(%arg0: i32) -> (i32, i32) {
    %c0_i32 = arith.constant 0 : i32
    %c0_i32_0 = arith.constant 0 : i32
    return %c0_i32, %arg0 : i32, i32
  }
}

</mosaic_0001>

<llo_original>
// kernel: linear_model_forward.1
$region0: #{linear_model_forward.1}
  #allocation0 [shape = 'u32[]', space=smem, size = 0x4, offset = 0x4, fixed_abs, tag = 'smem constant byte address 0x4 - core index']
  #allocation1 [shape = 'u32[144,128]{1,0:T(1,128)}', space=vmem, size = 0x12000, scoped, tag = 'internal scratch']
  %s0 = inlined_call_operand.vmem [shape: bf16[8,1024], index: 0, kind: input, shape index: {}]
  %s1 = inlined_call_operand.hbm [shape: bf16[1,1024,1024], index: 1, kind: input, shape index: {}]
  %s2 = inlined_call_operand.hbm [shape: f32[128,128], index: 2, kind: input, shape index: {}]
  %s3 = inlined_call_operand.hbm [shape: f32[1,128], index: 3, kind: input, shape index: {}]
  %s4 = inlined_call_operand.vmem [shape: f32[8,1024], index: 4, kind: output, shape index: {}]
  %s5 = sld [smem:[#allocation0]]
  $region38: #{linear_model_forward.1} parent=0
    _
  %s7 = ssub.s32 1, %s5
  %s8 = scalar_select 0, %s7, %s5
  $region1: #{linear_model_forward.1} parent=0
    #allocation2 [shape = 'u8[2097152]{0}', space=vmem, size = 0x200000, scoped, tag = 'input window, operand 1, single buffered']
    #allocation3 [shape = 's32[1]{0}', space=sflag, size = 0x4, scoped, tag = 'scoped memory for linear_model_forward.1']
    #allocation4 [shape = 'u8[65536]{0}', space=vmem, size = 0x10000, scoped, tag = 'input window, operand 2, single buffered']
    #allocation5 [shape = 's32[1]{0}', space=sflag, size = 0x4, scoped, tag = 'scoped memory for linear_model_forward.1']
    #allocation6 [shape = 'u8[512]{0}', space=vmem, size = 0x400, scoped, tag = 'input window, operand 3, single buffered']
    %9 = vsyncpa [#allocation3], 0
    %10 = vsyncpa [#allocation5], 0
    // Predicated region
    $region2: #{linear_model_forward.1} parent=1 // pred_check
      _
    $region3: #{linear_model_forward.1} parent=1 // pred_check_branch
      %12 = sbr.rel (0) target = $region5
    $region4: #{linear_model_forward.1} parent=1 // pred_region
      _
    $region5: #{linear_model_forward.1} parent=1 // pred_fallthru
      _
    // Predicated region
    $region6: #{linear_model_forward.1} parent=1 // pred_check
      _
    $region7: #{linear_model_forward.1} parent=1 // pred_check_branch
      %14 = sbr.rel (0) target = $region9
    $region8: #{linear_model_forward.1} parent=1 // pred_region
      %s16 = ssub.s32 65536, 65536
      %17 = vsyncadd [#allocation3], %s16
      %s18 = sshll.u32 [#allocation2], 4
      %s19 = int_to_ptr.vmem [resolvable:$true] %s18
      %24 = dma.hbm_to_vmem [thread:$0]  %s1, 65536, %s19, [#allocation3], 512, 512, 32
    $region9: #{linear_model_forward.1} parent=1 // pred_fallthru
      _
    // Predicated region
    $region10: #{linear_model_forward.1} parent=1 // pred_check
      _
    $region11: #{linear_model_forward.1} parent=1 // pred_check_branch
      %26 = sbr.rel (0) target = $region13
    $region12: #{linear_model_forward.1} parent=1 // pred_region
      %s28 = ssub.s32 2048, 2048
      %29 = vsyncadd [#allocation5], %s28
      %s30 = sshll.u32 [#allocation4], 4
      %s31 = int_to_ptr.vmem [resolvable:$true] %s30
      %36 = dma.hbm_to_vmem [thread:$0]  %s2, 2048, %s31, [#allocation5], 128, 128, 8
    $region13: #{linear_model_forward.1} parent=1 // pred_fallthru
      _
    // Predicated region
    $region14: #{linear_model_forward.1} parent=1 // pred_check
      _
    $region15: #{linear_model_forward.1} parent=1 // pred_check_branch
      %38 = sbr.rel (0) target = $region17
    $region16: #{linear_model_forward.1} parent=1 // pred_region
      %s40 = ssub.s32 16, 16
      %41 = vsyncadd [#allocation5], %s40
      %s43 = sshll.u32 [#allocation6], 4
      %s44 = int_to_ptr.vmem [resolvable:$true] %s43
      %46 = dma.hbm_to_vmem [thread:$0]  %s3, 16, %s44, [#allocation5]
    $region17: #{linear_model_forward.1} parent=1 // pred_fallthru
      _
    // Predicated region
    $region18: #{linear_model_forward.1} parent=1 // pred_check
      _
    $region19: #{linear_model_forward.1} parent=1 // pred_check_branch
      %48 = sbr.rel (0) target = $region21
    $region20: #{linear_model_forward.1} parent=1 // pred_region
      %49 = dma.done [#allocation3], 65536
    $region21: #{linear_model_forward.1} parent=1 // pred_fallthru
      _
    // Predicated region
    $region22: #{linear_model_forward.1} parent=1 // pred_check
      _
    $region23: #{linear_model_forward.1} parent=1 // pred_check_branch
      %51 = sbr.rel (0) target = $region25
    $region24: #{linear_model_forward.1} parent=1 // pred_region
      %52 = dma.done [#allocation5], 2048
    $region25: #{linear_model_forward.1} parent=1 // pred_fallthru
      _
    // Predicated region
    $region26: #{linear_model_forward.1} parent=1 // pred_check
      _
    $region27: #{linear_model_forward.1} parent=1 // pred_check_branch
      %54 = sbr.rel (0) target = $region29
    $region28: #{linear_model_forward.1} parent=1 // pred_region
      %55 = dma.done [#allocation5], 16
    $region29: #{linear_model_forward.1} parent=1 // pred_fallthru
      _
    %v56 = vld [vmem:[%s0] sm:$0xff]
    %v57 = vld [vmem:[%s0 + $0x8] sm:$0xff]
    %v58 = vld [vmem:[%s0 + $0x10] sm:$0xff]
    %v59 = vld [vmem:[%s0 + $0x18] sm:$0xff]
    %v60 = vld [vmem:[#allocation2] sm:$0xff]
    %v61 = vld [vmem:[#allocation2 + $0x8] sm:$0xff]
    %v62 = vld [vmem:[#allocation2 + $0x10] sm:$0xff]
    %v63 = vld [vmem:[#allocation2 + $0x18] sm:$0xff]
    %v64 = vld [vmem:[#allocation2 + $0x20] sm:$0xff]
    %v65 = vld [vmem:[#allocation2 + $0x28] sm:$0xff]
    %v66 = vld [vmem:[#allocation2 + $0x30] sm:$0xff]
    %v67 = vld [vmem:[#allocation2 + $0x38] sm:$0xff]
    %v68 = vld [vmem:[#allocation2 + $0x40] sm:$0xff]
    %v69 = vld [vmem:[#allocation2 + $0x48] sm:$0xff]
    %v70 = vld [vmem:[#allocation2 + $0x50] sm:$0xff]
    %v71 = vld [vmem:[#allocation2 + $0x58] sm:$0xff]
    %v72 = vld [vmem:[#allocation2 + $0x60] sm:$0xff]
    %v73 = vld [vmem:[#allocation2 + $0x68] sm:$0xff]
    %v74 = vld [vmem:[#allocation2 + $0x70] sm:$0xff]
    %v75 = vld [vmem:[#allocation2 + $0x78] sm:$0xff]
    %v76 = vld [vmem:[#allocation2 + $0x80] sm:$0xff]
    %v77 = vld [vmem:[#allocation2 + $0x88] sm:$0xff]
    %v78 = vld [vmem:[#allocation2 + $0x90] sm:$0xff]
    %v79 = vld [vmem:[#allocation2 + $0x98] sm:$0xff]
    %v80 = vld [vmem:[#allocation2 + $0xa0] sm:$0xff]
    %v81 = vld [vmem:[#allocation2 + $0xa8] sm:$0xff]
    %v82 = vld [vmem:[#allocation2 + $0xb0] sm:$0xff]
    %v83 = vld [vmem:[#allocation2 + $0xb8] sm:$0xff]
    %v84 = vld [vmem:[#allocation2 + $0xc0] sm:$0xff]
    %v85 = vld [vmem:[#allocation2 + $0xc8] sm:$0xff]
    %v86 = vld [vmem:[#allocation2 + $0xd0] sm:$0xff]
    %v87 = vld [vmem:[#allocation2 + $0xd8] sm:$0xff]
    %v88 = vld [vmem:[#allocation2 + $0xe0] sm:$0xff]
    %v89 = vld [vmem:[#allocation2 + $0xe8] sm:$0xff]
    %v90 = vld [vmem:[#allocation2 + $0xf0] sm:$0xff]
    %v91 = vld [vmem:[#allocation2 + $0xf8] sm:$0xff]
    %v92 = vld [vmem:[#allocation2 + $0x100] sm:$0xff]
    %v93 = vld [vmem:[#allocation2 + $0x108] sm:$0xff]
    %v94 = vld [vmem:[#allocation2 + $0x110] sm:$0xff]
    %v95 = vld [vmem:[#allocation2 + $0x118] sm:$0xff]
    %v96 = vld [vmem:[#allocation2 + $0x120] sm:$0xff]
    %v97 = vld [vmem:[#allocation2 + $0x128] sm:$0xff]
    %v98 = vld [vmem:[#allocation2 + $0x130] sm:$0xff]
    %v99 = vld [vmem:[#allocation2 + $0x138] sm:$0xff]
    %v100 = vld [vmem:[#allocation2 + $0x140] sm:$0xff]
    %v101 = vld [vmem:[#allocation2 + $0x148] sm:$0xff]
    %v102 = vld [vmem:[#allocation2 + $0x150] sm:$0xff]
    %v103 = vld [vmem:[#allocation2 + $0x158] sm:$0xff]
    %v104 = vld [vmem:[#allocation2 + $0x160] sm:$0xff]
    %v105 = vld [vmem:[#allocation2 + $0x168] sm:$0xff]
    %v106 = vld [vmem:[#allocation2 + $0x170] sm:$0xff]
    %v107 = vld [vmem:[#allocation2 + $0x178] sm:$0xff]
    %v108 = vld [vmem:[#allocation2 + $0x180] sm:$0xff]
    %v109 = vld [vmem:[#allocation2 + $0x188] sm:$0xff]
    %v110 = vld [vmem:[#allocation2 + $0x190] sm:$0xff]
    %v111 = vld [vmem:[#allocation2 + $0x198] sm:$0xff]
    %v112 = vld [vmem:[#allocation2 + $0x1a0] sm:$0xff]
    %v113 = vld [vmem:[#allocation2 + $0x1a8] sm:$0xff]
    %v114 = vld [vmem:[#allocation2 + $0x1b0] sm:$0xff]
    %v115 = vld [vmem:[#allocation2 + $0x1b8] sm:$0xff]
    %v116 = vld [vmem:[#allocation2 + $0x1c0] sm:$0xff]
    %v117 = vld [vmem:[#allocation2 + $0x1c8] sm:$0xff]
    %v118 = vld [vmem:[#allocation2 + $0x1d0] sm:$0xff]
    %v119 = vld [vmem:[#allocation2 + $0x1d8] sm:$0xff]
    %v120 = vld [vmem:[#allocation2 + $0x1e0] sm:$0xff]
    %v121 = vld [vmem:[#allocation2 + $0x1e8] sm:$0xff]
    %v122 = vld [vmem:[#allocation2 + $0x1f0] sm:$0xff]
    %v123 = vld [vmem:[#allocation2 + $0x1f8] sm:$0xff]
    %v124 = vld [vmem:[#allocation2 + $0x200] sm:$0xff]
    %v125 = vld [vmem:[#allocation2 + $0x208] sm:$0xff]
    %v126 = vld [vmem:[#allocation2 + $0x210] sm:$0xff]
    %v127 = vld [vmem:[#allocation2 + $0x218] sm:$0xff]
    %v128 = vld [vmem:[#allocation2 + $0x220] sm:$0xff]
    %v129 = vld [vmem:[#allocation2 + $0x228] sm:$0xff]
    %v130 = vld [vmem:[#allocation2 + $0x230] sm:$0xff]
    %v131 = vld [vmem:[#allocation2 + $0x238] sm:$0xff]
    %v132 = vld [vmem:[#allocation2 + $0x240] sm:$0xff]
    %v133 = vld [vmem:[#allocation2 + $0x248] sm:$0xff]
    %v134 = vld [vmem:[#allocation2 + $0x250] sm:$0xff]
    %v135 = vld [vmem:[#allocation2 + $0x258] sm:$0xff]
    %v136 = vld [vmem:[#allocation2 + $0x260] sm:$0xff]
    %v137 = vld [vmem:[#allocation2 + $0x268] sm:$0xff]
    %v138 = vld [vmem:[#allocation2 + $0x270] sm:$0xff]
    %v139 = vld [vmem:[#allocation2 + $0x278] sm:$0xff]
    %v140 = vld [vmem:[#allocation2 + $0x280] sm:$0xff]
    %v141 = vld [vmem:[#allocation2 + $0x288] sm:$0xff]
    %v142 = vld [vmem:[#allocation2 + $0x290] sm:$0xff]
    %v143 = vld [vmem:[#allocation2 + $0x298] sm:$0xff]
    %v144 = vld [vmem:[#allocation2 + $0x2a0] sm:$0xff]
    %v145 = vld [vmem:[#allocation2 + $0x2a8] sm:$0xff]
    %v146 = vld [vmem:[#allocation2 + $0x2b0] sm:$0xff]
    %v147 = vld [vmem:[#allocation2 + $0x2b8] sm:$0xff]
    %v148 = vld [vmem:[#allocation2 + $0x2c0] sm:$0xff]
    %v149 = vld [vmem:[#allocation2 + $0x2c8] sm:$0xff]
    %v150 = vld [vmem:[#allocation2 + $0x2d0] sm:$0xff]
    %v151 = vld [vmem:[#allocation2 + $0x2d8] sm:$0xff]
    %v152 = vld [vmem:[#allocation2 + $0x2e0] sm:$0xff]
    %v153 = vld [vmem:[#allocation2 + $0x2e8] sm:$0xff]
    %v154 = vld [vmem:[#allocation2 + $0x2f0] sm:$0xff]
    %v155 = vld [vmem:[#allocation2 + $0x2f8] sm:$0xff]
    %v156 = vld [vmem:[#allocation2 + $0x300] sm:$0xff]
    %v157 = vld [vmem:[#allocation2 + $0x308] sm:$0xff]
    %v158 = vld [vmem:[#allocation2 + $0x310] sm:$0xff]
    %v159 = vld [vmem:[#allocation2 + $0x318] sm:$0xff]
    %v160 = vld [vmem:[#allocation2 + $0x320] sm:$0xff]
    %v161 = vld [vmem:[#allocation2 + $0x328] sm:$0xff]
    %v162 = vld [vmem:[#allocation2 + $0x330] sm:$0xff]
    %v163 = vld [vmem:[#allocation2 + $0x338] sm:$0xff]
    %v164 = vld [vmem:[#allocation2 + $0x340] sm:$0xff]
    %v165 = vld [vmem:[#allocation2 + $0x348] sm:$0xff]
    %v166 = vld [vmem:[#allocation2 + $0x350] sm:$0xff]
    %v167 = vld [vmem:[#allocation2 + $0x358] sm:$0xff]
    %v168 = vld [vmem:[#allocation2 + $0x360] sm:$0xff]
    %v169 = vld [vmem:[#allocation2 + $0x368] sm:$0xff]
    %v170 = vld [vmem:[#allocation2 + $0x370] sm:$0xff]
    %v171 = vld [vmem:[#allocation2 + $0x378] sm:$0xff]
    %v172 = vld [vmem:[#allocation2 + $0x380] sm:$0xff]
    %v173 = vld [vmem:[#allocation2 + $0x388] sm:$0xff]
    %v174 = vld [vmem:[#allocation2 + $0x390] sm:$0xff]
    %v175 = vld [vmem:[#allocation2 + $0x398] sm:$0xff]
    %v176 = vld [vmem:[#allocation2 + $0x3a0] sm:$0xff]
    %v177 = vld [vmem:[#allocation2 + $0x3a8] sm:$0xff]
    %v178 = vld [vmem:[#allocation2 + $0x3b0] sm:$0xff]
    %v179 = vld [vmem:[#allocation2 + $0x3b8] sm:$0xff]
    %v180 = vld [vmem:[#allocation2 + $0x3c0] sm:$0xff]
    %v181 = vld [vmem:[#allocation2 + $0x3c8] sm:$0xff]
    %v182 = vld [vmem:[#allocation2 + $0x3d0] sm:$0xff]
    %v183 = vld [vmem:[#allocation2 + $0x3d8] sm:$0xff]
    %v184 = vld [vmem:[#allocation2 + $0x3e0] sm:$0xff]
    %v185 = vld [vmem:[#allocation2 + $0x3e8] sm:$0xff]
    %v186 = vld [vmem:[#allocation2 + $0x3f0] sm:$0xff]
    %v187 = vld [vmem:[#allocation2 + $0x3f8] sm:$0xff]
    %v188 = vld [vmem:[#allocation2 + $0x400] sm:$0xff]
    %v189 = vld [vmem:[#allocation2 + $0x408] sm:$0xff]
    %v190 = vld [vmem:[#allocation2 + $0x410] sm:$0xff]
    %v191 = vld [vmem:[#allocation2 + $0x418] sm:$0xff]
    %v192 = vld [vmem:[#allocation2 + $0x420] sm:$0xff]
    %v193 = vld [vmem:[#allocation2 + $0x428] sm:$0xff]
    %v194 = vld [vmem:[#allocation2 + $0x430] sm:$0xff]
    %v195 = vld [vmem:[#allocation2 + $0x438] sm:$0xff]
    %v196 = vld [vmem:[#allocation2 + $0x440] sm:$0xff]
    %v197 = vld [vmem:[#allocation2 + $0x448] sm:$0xff]
    %v198 = vld [vmem:[#allocation2 + $0x450] sm:$0xff]
    %v199 = vld [vmem:[#allocation2 + $0x458] sm:$0xff]
    %v200 = vld [vmem:[#allocation2 + $0x460] sm:$0xff]
    %v201 = vld [vmem:[#allocation2 + $0x468] sm:$0xff]
    %v202 = vld [vmem:[#allocation2 + $0x470] sm:$0xff]
    %v203 = vld [vmem:[#allocation2 + $0x478] sm:$0xff]
    %v204 = vld [vmem:[#allocation2 + $0x480] sm:$0xff]
    %v205 = vld [vmem:[#allocation2 + $0x488] sm:$0xff]
    %v206 = vld [vmem:[#allocation2 + $0x490] sm:$0xff]
    %v207 = vld [vmem:[#allocation2 + $0x498] sm:$0xff]
    %v208 = vld [vmem:[#allocation2 + $0x4a0] sm:$0xff]
    %v209 = vld [vmem:[#allocation2 + $0x4a8] sm:$0xff]
    %v210 = vld [vmem:[#allocation2 + $0x4b0] sm:$0xff]
    %v211 = vld [vmem:[#allocation2 + $0x4b8] sm:$0xff]
    %v212 = vld [vmem:[#allocation2 + $0x4c0] sm:$0xff]
    %v213 = vld [vmem:[#allocation2 + $0x4c8] sm:$0xff]
    %v214 = vld [vmem:[#allocation2 + $0x4d0] sm:$0xff]
    %v215 = vld [vmem:[#allocation2 + $0x4d8] sm:$0xff]
    %v216 = vld [vmem:[#allocation2 + $0x4e0] sm:$0xff]
    %v217 = vld [vmem:[#allocation2 + $0x4e8] sm:$0xff]
    %v218 = vld [vmem:[#allocation2 + $0x4f0] sm:$0xff]
    %v219 = vld [vmem:[#allocation2 + $0x4f8] sm:$0xff]
    %v220 = vld [vmem:[#allocation2 + $0x500] sm:$0xff]
    %v221 = vld [vmem:[#allocation2 + $0x508] sm:$0xff]
    %v222 = vld [vmem:[#allocation2 + $0x510] sm:$0xff]
    %v223 = vld [vmem:[#allocation2 + $0x518] sm:$0xff]
    %v224 = vld [vmem:[#allocation2 + $0x520] sm:$0xff]
    %v225 = vld [vmem:[#allocation2 + $0x528] sm:$0xff]
    %v226 = vld [vmem:[#allocation2 + $0x530] sm:$0xff]
    %v227 = vld [vmem:[#allocation2 + $0x538] sm:$0xff]
    %v228 = vld [vmem:[#allocation2 + $0x540] sm:$0xff]
    %v229 = vld [vmem:[#allocation2 + $0x548] sm:$0xff]
    %v230 = vld [vmem:[#allocation2 + $0x550] sm:$0xff]
    %v231 = vld [vmem:[#allocation2 + $0x558] sm:$0xff]
    %v232 = vld [vmem:[#allocation2 + $0x560] sm:$0xff]
    %v233 = vld [vmem:[#allocation2 + $0x568] sm:$0xff]
    %v234 = vld [vmem:[#allocation2 + $0x570] sm:$0xff]
    %v235 = vld [vmem:[#allocation2 + $0x578] sm:$0xff]
    %v236 = vld [vmem:[#allocation2 + $0x580] sm:$0xff]
    %v237 = vld [vmem:[#allocation2 + $0x588] sm:$0xff]
    %v238 = vld [vmem:[#allocation2 + $0x590] sm:$0xff]
    %v239 = vld [vmem:[#allocation2 + $0x598] sm:$0xff]
    %v240 = vld [vmem:[#allocation2 + $0x5a0] sm:$0xff]
    %v241 = vld [vmem:[#allocation2 + $0x5a8] sm:$0xff]
    %v242 = vld [vmem:[#allocation2 + $0x5b0] sm:$0xff]
    %v243 = vld [vmem:[#allocation2 + $0x5b8] sm:$0xff]
    %v244 = vld [vmem:[#allocation2 + $0x5c0] sm:$0xff]
    %v245 = vld [vmem:[#allocation2 + $0x5c8] sm:$0xff]
    %v246 = vld [vmem:[#allocation2 + $0x5d0] sm:$0xff]
    %v247 = vld [vmem:[#allocation2 + $0x5d8] sm:$0xff]
    %v248 = vld [vmem:[#allocation2 + $0x5e0] sm:$0xff]
    %v249 = vld [vmem:[#allocation2 + $0x5e8] sm:$0xff]
    %v250 = vld [vmem:[#allocation2 + $0x5f0] sm:$0xff]
    %v251 = vld [vmem:[#allocation2 + $0x5f8] sm:$0xff]
    %v252 = vld [vmem:[#allocation2 + $0x600] sm:$0xff]
    %v253 = vld [vmem:[#allocation2 + $0x608] sm:$0xff]
    %v254 = vld [vmem:[#allocation2 + $0x610] sm:$0xff]
    %v255 = vld [vmem:[#allocation2 + $0x618] sm:$0xff]
    %v256 = vld [vmem:[#allocation2 + $0x620] sm:$0xff]
    %v257 = vld [vmem:[#allocation2 + $0x628] sm:$0xff]
    %v258 = vld [vmem:[#allocation2 + $0x630] sm:$0xff]
    %v259 = vld [vmem:[#allocation2 + $0x638] sm:$0xff]
    %v260 = vld [vmem:[#allocation2 + $0x640] sm:$0xff]
    %v261 = vld [vmem:[#allocation2 + $0x648] sm:$0xff]
    %v262 = vld [vmem:[#allocation2 + $0x650] sm:$0xff]
    %v263 = vld [vmem:[#allocation2 + $0x658] sm:$0xff]
    %v264 = vld [vmem:[#allocation2 + $0x660] sm:$0xff]
    %v265 = vld [vmem:[#allocation2 + $0x668] sm:$0xff]
    %v266 = vld [vmem:[#allocation2 + $0x670] sm:$0xff]
    %v267 = vld [vmem:[#allocation2 + $0x678] sm:$0xff]
    %v268 = vld [vmem:[#allocation2 + $0x680] sm:$0xff]
    %v269 = vld [vmem:[#allocation2 + $0x688] sm:$0xff]
    %v270 = vld [vmem:[#allocation2 + $0x690] sm:$0xff]
    %v271 = vld [vmem:[#allocation2 + $0x698] sm:$0xff]
    %v272 = vld [vmem:[#allocation2 + $0x6a0] sm:$0xff]
    %v273 = vld [vmem:[#allocation2 + $0x6a8] sm:$0xff]
    %v274 = vld [vmem:[#allocation2 + $0x6b0] sm:$0xff]
    %v275 = vld [vmem:[#allocation2 + $0x6b8] sm:$0xff]
    %v276 = vld [vmem:[#allocation2 + $0x6c0] sm:$0xff]
    %v277 = vld [vmem:[#allocation2 + $0x6c8] sm:$0xff]
    %v278 = vld [vmem:[#allocation2 + $0x6d0] sm:$0xff]
    %v279 = vld [vmem:[#allocation2 + $0x6d8] sm:$0xff]
    %v280 = vld [vmem:[#allocation2 + $0x6e0] sm:$0xff]
    %v281 = vld [vmem:[#allocation2 + $0x6e8] sm:$0xff]
    %v282 = vld [vmem:[#allocation2 + $0x6f0] sm:$0xff]
    %v283 = vld [vmem:[#allocation2 + $0x6f8] sm:$0xff]
    %v284 = vld [vmem:[#allocation2 + $0x700] sm:$0xff]
    %v285 = vld [vmem:[#allocation2 + $0x708] sm:$0xff]
    %v286 = vld [vmem:[#allocation2 + $0x710] sm:$0xff]
    %v287 = vld [vmem:[#allocation2 + $0x718] sm:$0xff]
    %v288 = vld [vmem:[#allocation2 + $0x720] sm:$0xff]
    %v289 = vld [vmem:[#allocation2 + $0x728] sm:$0xff]
    %v290 = vld [vmem:[#allocation2 + $0x730] sm:$0xff]
    %v291 = vld [vmem:[#allocation2 + $0x738] sm:$0xff]
    %v292 = vld [vmem:[#allocation2 + $0x740] sm:$0xff]
    %v293 = vld [vmem:[#allocation2 + $0x748] sm:$0xff]
    %v294 = vld [vmem:[#allocation2 + $0x750] sm:$0xff]
    %v295 = vld [vmem:[#allocation2 + $0x758] sm:$0xff]
    %v296 = vld [vmem:[#allocation2 + $0x760] sm:$0xff]
    %v297 = vld [vmem:[#allocation2 + $0x768] sm:$0xff]
    %v298 = vld [vmem:[#allocation2 + $0x770] sm:$0xff]
    %v299 = vld [vmem:[#allocation2 + $0x778] sm:$0xff]
    %v300 = vld [vmem:[#allocation2 + $0x780] sm:$0xff]
    %v301 = vld [vmem:[#allocation2 + $0x788] sm:$0xff]
    %v302 = vld [vmem:[#allocation2 + $0x790] sm:$0xff]
    %v303 = vld [vmem:[#allocation2 + $0x798] sm:$0xff]
    %v304 = vld [vmem:[#allocation2 + $0x7a0] sm:$0xff]
    %v305 = vld [vmem:[#allocation2 + $0x7a8] sm:$0xff]
    %v306 = vld [vmem:[#allocation2 + $0x7b0] sm:$0xff]
    %v307 = vld [vmem:[#allocation2 + $0x7b8] sm:$0xff]
    %v308 = vld [vmem:[#allocation2 + $0x7c0] sm:$0xff]
    %v309 = vld [vmem:[#allocation2 + $0x7c8] sm:$0xff]
    %v310 = vld [vmem:[#allocation2 + $0x7d0] sm:$0xff]
    %v311 = vld [vmem:[#allocation2 + $0x7d8] sm:$0xff]
    %v312 = vld [vmem:[#allocation2 + $0x7e0] sm:$0xff]
    %v313 = vld [vmem:[#allocation2 + $0x7e8] sm:$0xff]
    %v314 = vld [vmem:[#allocation2 + $0x7f0] sm:$0xff]
    %v315 = vld [vmem:[#allocation2 + $0x7f8] sm:$0xff]
    %v316 = vld [vmem:[#allocation2 + $0x800] sm:$0xff]
    %v317 = vld [vmem:[#allocation2 + $0x808] sm:$0xff]
    %v318 = vld [vmem:[#allocation2 + $0x810] sm:$0xff]
    %v319 = vld [vmem:[#allocation2 + $0x818] sm:$0xff]
    %v320 = vld [vmem:[#allocation2 + $0x820] sm:$0xff]
    %v321 = vld [vmem:[#allocation2 + $0x828] sm:$0xff]
    %v322 = vld [vmem:[#allocation2 + $0x830] sm:$0xff]
    %v323 = vld [vmem:[#allocation2 + $0x838] sm:$0xff]
    %v324 = vld [vmem:[#allocation2 + $0x840] sm:$0xff]
    %v325 = vld [vmem:[#allocation2 + $0x848] sm:$0xff]
    %v326 = vld [vmem:[#allocation2 + $0x850] sm:$0xff]
    %v327 = vld [vmem:[#allocation2 + $0x858] sm:$0xff]
    %v328 = vld [vmem:[#allocation2 + $0x860] sm:$0xff]
    %v329 = vld [vmem:[#allocation2 + $0x868] sm:$0xff]
    %v330 = vld [vmem:[#allocation2 + $0x870] sm:$0xff]
    %v331 = vld [vmem:[#allocation2 + $0x878] sm:$0xff]
    %v332 = vld [vmem:[#allocation2 + $0x880] sm:$0xff]
    %v333 = vld [vmem:[#allocation2 + $0x888] sm:$0xff]
    %v334 = vld [vmem:[#allocation2 + $0x890] sm:$0xff]
    %v335 = vld [vmem:[#allocation2 + $0x898] sm:$0xff]
    %v336 = vld [vmem:[#allocation2 + $0x8a0] sm:$0xff]
    %v337 = vld [vmem:[#allocation2 + $0x8a8] sm:$0xff]
    %v338 = vld [vmem:[#allocation2 + $0x8b0] sm:$0xff]
    %v339 = vld [vmem:[#allocation2 + $0x8b8] sm:$0xff]
    %v340 = vld [vmem:[#allocation2 + $0x8c0] sm:$0xff]
    %v341 = vld [vmem:[#allocation2 + $0x8c8] sm:$0xff]
    %v342 = vld [vmem:[#allocation2 + $0x8d0] sm:$0xff]
    %v343 = vld [vmem:[#allocation2 + $0x8d8] sm:$0xff]
    %v344 = vld [vmem:[#allocation2 + $0x8e0] sm:$0xff]
    %v345 = vld [vmem:[#allocation2 + $0x8e8] sm:$0xff]
    %v346 = vld [vmem:[#allocation2 + $0x8f0] sm:$0xff]
    %v347 = vld [vmem:[#allocation2 + $0x8f8] sm:$0xff]
    %v348 = vld [vmem:[#allocation2 + $0x900] sm:$0xff]
    %v349 = vld [vmem:[#allocation2 + $0x908] sm:$0xff]
    %v350 = vld [vmem:[#allocation2 + $0x910] sm:$0xff]
    %v351 = vld [vmem:[#allocation2 + $0x918] sm:$0xff]
    %v352 = vld [vmem:[#allocation2 + $0x920] sm:$0xff]
    %v353 = vld [vmem:[#allocation2 + $0x928] sm:$0xff]
    %v354 = vld [vmem:[#allocation2 + $0x930] sm:$0xff]
    %v355 = vld [vmem:[#allocation2 + $0x938] sm:$0xff]
    %v356 = vld [vmem:[#allocation2 + $0x940] sm:$0xff]
    %v357 = vld [vmem:[#allocation2 + $0x948] sm:$0xff]
    %v358 = vld [vmem:[#allocation2 + $0x950] sm:$0xff]
    %v359 = vld [vmem:[#allocation2 + $0x958] sm:$0xff]
    %v360 = vld [vmem:[#allocation2 + $0x960] sm:$0xff]
    %v361 = vld [vmem:[#allocation2 + $0x968] sm:$0xff]
    %v362 = vld [vmem:[#allocation2 + $0x970] sm:$0xff]
    %v363 = vld [vmem:[#allocation2 + $0x978] sm:$0xff]
    %v364 = vld [vmem:[#allocation2 + $0x980] sm:$0xff]
    %v365 = vld [vmem:[#allocation2 + $0x988] sm:$0xff]
    %v366 = vld [vmem:[#allocation2 + $0x990] sm:$0xff]
    %v367 = vld [vmem:[#allocation2 + $0x998] sm:$0xff]
    %v368 = vld [vmem:[#allocation2 + $0x9a0] sm:$0xff]
    %v369 = vld [vmem:[#allocation2 + $0x9a8] sm:$0xff]
    %v370 = vld [vmem:[#allocation2 + $0x9b0] sm:$0xff]
    %v371 = vld [vmem:[#allocation2 + $0x9b8] sm:$0xff]
    %v372 = vld [vmem:[#allocation2 + $0x9c0] sm:$0xff]
    %v373 = vld [vmem:[#allocation2 + $0x9c8] sm:$0xff]
    %v374 = vld [vmem:[#allocation2 + $0x9d0] sm:$0xff]
    %v375 = vld [vmem:[#allocation2 + $0x9d8] sm:$0xff]
    %v376 = vld [vmem:[#allocation2 + $0x9e0] sm:$0xff]
    %v377 = vld [vmem:[#allocation2 + $0x9e8] sm:$0xff]
    %v378 = vld [vmem:[#allocation2 + $0x9f0] sm:$0xff]
    %v379 = vld [vmem:[#allocation2 + $0x9f8] sm:$0xff]
    %v380 = vld [vmem:[#allocation2 + $0xa00] sm:$0xff]
    %v381 = vld [vmem:[#allocation2 + $0xa08] sm:$0xff]
    %v382 = vld [vmem:[#allocation2 + $0xa10] sm:$0xff]
    %v383 = vld [vmem:[#allocation2 + $0xa18] sm:$0xff]
    %v384 = vld [vmem:[#allocation2 + $0xa20] sm:$0xff]
    %v385 = vld [vmem:[#allocation2 + $0xa28] sm:$0xff]
    %v386 = vld [vmem:[#allocation2 + $0xa30] sm:$0xff]
    %v387 = vld [vmem:[#allocation2 + $0xa38] sm:$0xff]
    %v388 = vld [vmem:[#allocation2 + $0xa40] sm:$0xff]
    %v389 = vld [vmem:[#allocation2 + $0xa48] sm:$0xff]
    %v390 = vld [vmem:[#allocation2 + $0xa50] sm:$0xff]
    %v391 = vld [vmem:[#allocation2 + $0xa58] sm:$0xff]
    %v392 = vld [vmem:[#allocation2 + $0xa60] sm:$0xff]
    %v393 = vld [vmem:[#allocation2 + $0xa68] sm:$0xff]
    %v394 = vld [vmem:[#allocation2 + $0xa70] sm:$0xff]
    %v395 = vld [vmem:[#allocation2 + $0xa78] sm:$0xff]
    %v396 = vld [vmem:[#allocation2 + $0xa80] sm:$0xff]
    %v397 = vld [vmem:[#allocation2 + $0xa88] sm:$0xff]
    %v398 = vld [vmem:[#allocation2 + $0xa90] sm:$0xff]
    %v399 = vld [vmem:[#allocation2 + $0xa98] sm:$0xff]
    %v400 = vld [vmem:[#allocation2 + $0xaa0] sm:$0xff]
    %v401 = vld [vmem:[#allocation2 + $0xaa8] sm:$0xff]
    %v402 = vld [vmem:[#allocation2 + $0xab0] sm:$0xff]
    %v403 = vld [vmem:[#allocation2 + $0xab8] sm:$0xff]
    %v404 = vld [vmem:[#allocation2 + $0xac0] sm:$0xff]
    %v405 = vld [vmem:[#allocation2 + $0xac8] sm:$0xff]
    %v406 = vld [vmem:[#allocation2 + $0xad0] sm:$0xff]
    %v407 = vld [vmem:[#allocation2 + $0xad8] sm:$0xff]
    %v408 = vld [vmem:[#allocation2 + $0xae0] sm:$0xff]
    %v409 = vld [vmem:[#allocation2 + $0xae8] sm:$0xff]
    %v410 = vld [vmem:[#allocation2 + $0xaf0] sm:$0xff]
    %v411 = vld [vmem:[#allocation2 + $0xaf8] sm:$0xff]
    %v412 = vld [vmem:[#allocation2 + $0xb00] sm:$0xff]
    %v413 = vld [vmem:[#allocation2 + $0xb08] sm:$0xff]
    %v414 = vld [vmem:[#allocation2 + $0xb10] sm:$0xff]
    %v415 = vld [vmem:[#allocation2 + $0xb18] sm:$0xff]
    %v416 = vld [vmem:[#allocation2 + $0xb20] sm:$0xff]
    %v417 = vld [vmem:[#allocation2 + $0xb28] sm:$0xff]
    %v418 = vld [vmem:[#allocation2 + $0xb30] sm:$0xff]
    %v419 = vld [vmem:[#allocation2 + $0xb38] sm:$0xff]
    %v420 = vld [vmem:[#allocation2 + $0xb40] sm:$0xff]
    %v421 = vld [vmem:[#allocation2 + $0xb48] sm:$0xff]
    %v422 = vld [vmem:[#allocation2 + $0xb50] sm:$0xff]
    %v423 = vld [vmem:[#allocation2 + $0xb58] sm:$0xff]
    %v424 = vld [vmem:[#allocation2 + $0xb60] sm:$0xff]
    %v425 = vld [vmem:[#allocation2 + $0xb68] sm:$0xff]
    %v426 = vld [vmem:[#allocation2 + $0xb70] sm:$0xff]
    %v427 = vld [vmem:[#allocation2 + $0xb78] sm:$0xff]
    %v428 = vld [vmem:[#allocation2 + $0xb80] sm:$0xff]
    %v429 = vld [vmem:[#allocation2 + $0xb88] sm:$0xff]
    %v430 = vld [vmem:[#allocation2 + $0xb90] sm:$0xff]
    %v431 = vld [vmem:[#allocation2 + $0xb98] sm:$0xff]
    %v432 = vld [vmem:[#allocation2 + $0xba0] sm:$0xff]
    %v433 = vld [vmem:[#allocation2 + $0xba8] sm:$0xff]
    %v434 = vld [vmem:[#allocation2 + $0xbb0] sm:$0xff]
    %v435 = vld [vmem:[#allocation2 + $0xbb8] sm:$0xff]
    %v436 = vld [vmem:[#allocation2 + $0xbc0] sm:$0xff]
    %v437 = vld [vmem:[#allocation2 + $0xbc8] sm:$0xff]
    %v438 = vld [vmem:[#allocation2 + $0xbd0] sm:$0xff]
    %v439 = vld [vmem:[#allocation2 + $0xbd8] sm:$0xff]
    %v440 = vld [vmem:[#allocation2 + $0xbe0] sm:$0xff]
    %v441 = vld [vmem:[#allocation2 + $0xbe8] sm:$0xff]
    %v442 = vld [vmem:[#allocation2 + $0xbf0] sm:$0xff]
    %v443 = vld [vmem:[#allocation2 + $0xbf8] sm:$0xff]
    %v444 = vld [vmem:[#allocation2 + $0xc00] sm:$0xff]
    %v445 = vld [vmem:[#allocation2 + $0xc08] sm:$0xff]
    %v446 = vld [vmem:[#allocation2 + $0xc10] sm:$0xff]
    %v447 = vld [vmem:[#allocation2 + $0xc18] sm:$0xff]
    %v448 = vld [vmem:[#allocation2 + $0xc20] sm:$0xff]
    %v449 = vld [vmem:[#allocation2 + $0xc28] sm:$0xff]
    %v450 = vld [vmem:[#allocation2 + $0xc30] sm:$0xff]
    %v451 = vld [vmem:[#allocation2 + $0xc38] sm:$0xff]
    %v452 = vld [vmem:[#allocation2 + $0xc40] sm:$0xff]
    %v453 = vld [vmem:[#allocation2 + $0xc48] sm:$0xff]
    %v454 = vld [vmem:[#allocation2 + $0xc50] sm:$0xff]
    %v455 = vld [vmem:[#allocation2 + $0xc58] sm:$0xff]
    %v456 = vld [vmem:[#allocation2 + $0xc60] sm:$0xff]
    %v457 = vld [vmem:[#allocation2 + $0xc68] sm:$0xff]
    %v458 = vld [vmem:[#allocation2 + $0xc70] sm:$0xff]
    %v459 = vld [vmem:[#allocation2 + $0xc78] sm:$0xff]
    %v460 = vld [vmem:[#allocation2 + $0xc80] sm:$0xff]
    %v461 = vld [vmem:[#allocation2 + $0xc88] sm:$0xff]
    %v462 = vld [vmem:[#allocation2 + $0xc90] sm:$0xff]
    %v463 = vld [vmem:[#allocation2 + $0xc98] sm:$0xff]
    %v464 = vld [vmem:[#allocation2 + $0xca0] sm:$0xff]
    %v465 = vld [vmem:[#allocation2 + $0xca8] sm:$0xff]
    %v466 = vld [vmem:[#allocation2 + $0xcb0] sm:$0xff]
    %v467 = vld [vmem:[#allocation2 + $0xcb8] sm:$0xff]
    %v468 = vld [vmem:[#allocation2 + $0xcc0] sm:$0xff]
    %v469 = vld [vmem:[#allocation2 + $0xcc8] sm:$0xff]
    %v470 = vld [vmem:[#allocation2 + $0xcd0] sm:$0xff]
    %v471 = vld [vmem:[#allocation2 + $0xcd8] sm:$0xff]
    %v472 = vld [vmem:[#allocation2 + $0xce0] sm:$0xff]
    %v473 = vld [vmem:[#allocation2 + $0xce8] sm:$0xff]
    %v474 = vld [vmem:[#allocation2 + $0xcf0] sm:$0xff]
    %v475 = vld [vmem:[#allocation2 + $0xcf8] sm:$0xff]
    %v476 = vld [vmem:[#allocation2 + $0xd00] sm:$0xff]
    %v477 = vld [vmem:[#allocation2 + $0xd08] sm:$0xff]
    %v478 = vld [vmem:[#allocation2 + $0xd10] sm:$0xff]
    %v479 = vld [vmem:[#allocation2 + $0xd18] sm:$0xff]
    %v480 = vld [vmem:[#allocation2 + $0xd20] sm:$0xff]
    %v481 = vld [vmem:[#allocation2 + $0xd28] sm:$0xff]
    %v482 = vld [vmem:[#allocation2 + $0xd30] sm:$0xff]
    %v483 = vld [vmem:[#allocation2 + $0xd38] sm:$0xff]
    %v484 = vld [vmem:[#allocation2 + $0xd40] sm:$0xff]
    %v485 = vld [vmem:[#allocation2 + $0xd48] sm:$0xff]
    %v486 = vld [vmem:[#allocation2 + $0xd50] sm:$0xff]
    %v487 = vld [vmem:[#allocation2 + $0xd58] sm:$0xff]
    %v488 = vld [vmem:[#allocation2 + $0xd60] sm:$0xff]
    %v489 = vld [vmem:[#allocation2 + $0xd68] sm:$0xff]
    %v490 = vld [vmem:[#allocation2 + $0xd70] sm:$0xff]
    %v491 = vld [vmem:[#allocation2 + $0xd78] sm:$0xff]
    %v492 = vld [vmem:[#allocation2 + $0xd80] sm:$0xff]
    %v493 = vld [vmem:[#allocation2 + $0xd88] sm:$0xff]
    %v494 = vld [vmem:[#allocation2 + $0xd90] sm:$0xff]
    %v495 = vld [vmem:[#allocation2 + $0xd98] sm:$0xff]
    %v496 = vld [vmem:[#allocation2 + $0xda0] sm:$0xff]
    %v497 = vld [vmem:[#allocation2 + $0xda8] sm:$0xff]
    %v498 = vld [vmem:[#allocation2 + $0xdb0] sm:$0xff]
    %v499 = vld [vmem:[#allocation2 + $0xdb8] sm:$0xff]
    %v500 = vld [vmem:[#allocation2 + $0xdc0] sm:$0xff]
    %v501 = vld [vmem:[#allocation2 + $0xdc8] sm:$0xff]
    %v502 = vld [vmem:[#allocation2 + $0xdd0] sm:$0xff]
    %v503 = vld [vmem:[#allocation2 + $0xdd8] sm:$0xff]
    %v504 = vld [vmem:[#allocation2 + $0xde0] sm:$0xff]
    %v505 = vld [vmem:[#allocation2 + $0xde8] sm:$0xff]
    %v506 = vld [vmem:[#allocation2 + $0xdf0] sm:$0xff]
    %v507 = vld [vmem:[#allocation2 + $0xdf8] sm:$0xff]
    %v508 = vld [vmem:[#allocation2 + $0xe00] sm:$0xff]
    %v509 = vld [vmem:[#allocation2 + $0xe08] sm:$0xff]
    %v510 = vld [vmem:[#allocation2 + $0xe10] sm:$0xff]
    %v511 = vld [vmem:[#allocation2 + $0xe18] sm:$0xff]
    %v512 = vld [vmem:[#allocation2 + $0xe20] sm:$0xff]
    %v513 = vld [vmem:[#allocation2 + $0xe28] sm:$0xff]
    %v514 = vld [vmem:[#allocation2 + $0xe30] sm:$0xff]
    %v515 = vld [vmem:[#allocation2 + $0xe38] sm:$0xff]
    %v516 = vld [vmem:[#allocation2 + $0xe40] sm:$0xff]
    %v517 = vld [vmem:[#allocation2 + $0xe48] sm:$0xff]
    %v518 = vld [vmem:[#allocation2 + $0xe50] sm:$0xff]
    %v519 = vld [vmem:[#allocation2 + $0xe58] sm:$0xff]
    %v520 = vld [vmem:[#allocation2 + $0xe60] sm:$0xff]
    %v521 = vld [vmem:[#allocation2 + $0xe68] sm:$0xff]
    %v522 = vld [vmem:[#allocation2 + $0xe70] sm:$0xff]
    %v523 = vld [vmem:[#allocation2 + $0xe78] sm:$0xff]
    %v524 = vld [vmem:[#allocation2 + $0xe80] sm:$0xff]
    %v525 = vld [vmem:[#allocation2 + $0xe88] sm:$0xff]
    %v526 = vld [vmem:[#allocation2 + $0xe90] sm:$0xff]
    %v527 = vld [vmem:[#allocation2 + $0xe98] sm:$0xff]
    %v528 = vld [vmem:[#allocation2 + $0xea0] sm:$0xff]
    %v529 = vld [vmem:[#allocation2 + $0xea8] sm:$0xff]
    %v530 = vld [vmem:[#allocation2 + $0xeb0] sm:$0xff]
    %v531 = vld [vmem:[#allocation2 + $0xeb8] sm:$0xff]
    %v532 = vld [vmem:[#allocation2 + $0xec0] sm:$0xff]
    %v533 = vld [vmem:[#allocation2 + $0xec8] sm:$0xff]
    %v534 = vld [vmem:[#allocation2 + $0xed0] sm:$0xff]
    %v535 = vld [vmem:[#allocation2 + $0xed8] sm:$0xff]
    %v536 = vld [vmem:[#allocation2 + $0xee0] sm:$0xff]
    %v537 = vld [vmem:[#allocation2 + $0xee8] sm:$0xff]
    %v538 = vld [vmem:[#allocation2 + $0xef0] sm:$0xff]
    %v539 = vld [vmem:[#allocation2 + $0xef8] sm:$0xff]
    %v540 = vld [vmem:[#allocation2 + $0xf00] sm:$0xff]
    %v541 = vld [vmem:[#allocation2 + $0xf08] sm:$0xff]
    %v542 = vld [vmem:[#allocation2 + $0xf10] sm:$0xff]
    %v543 = vld [vmem:[#allocation2 + $0xf18] sm:$0xff]
    %v544 = vld [vmem:[#allocation2 + $0xf20] sm:$0xff]
    %v545 = vld [vmem:[#allocation2 + $0xf28] sm:$0xff]
    %v546 = vld [vmem:[#allocation2 + $0xf30] sm:$0xff]
    %v547 = vld [vmem:[#allocation2 + $0xf38] sm:$0xff]
    %v548 = vld [vmem:[#allocation2 + $0xf40] sm:$0xff]
    %v549 = vld [vmem:[#allocation2 + $0xf48] sm:$0xff]
    %v550 = vld [vmem:[#allocation2 + $0xf50] sm:$0xff]
    %v551 = vld [vmem:[#allocation2 + $0xf58] sm:$0xff]
    %v552 = vld [vmem:[#allocation2 + $0xf60] sm:$0xff]
    %v553 = vld [vmem:[#allocation2 + $0xf68] sm:$0xff]
    %v554 = vld [vmem:[#allocation2 + $0xf70] sm:$0xff]
    %v555 = vld [vmem:[#allocation2 + $0xf78] sm:$0xff]
    %v556 = vld [vmem:[#allocation2 + $0xf80] sm:$0xff]
    %v557 = vld [vmem:[#allocation2 + $0xf88] sm:$0xff]
    %v558 = vld [vmem:[#allocation2 + $0xf90] sm:$0xff]
    %v559 = vld [vmem:[#allocation2 + $0xf98] sm:$0xff]
    %v560 = vld [vmem:[#allocation2 + $0xfa0] sm:$0xff]
    %v561 = vld [vmem:[#allocation2 + $0xfa8] sm:$0xff]
    %v562 = vld [vmem:[#allocation2 + $0xfb0] sm:$0xff]
    %v563 = vld [vmem:[#allocation2 + $0xfb8] sm:$0xff]
    %v564 = vld [vmem:[#allocation2 + $0xfc0] sm:$0xff]
    %v565 = vld [vmem:[#allocation2 + $0xfc8] sm:$0xff]
    %v566 = vld [vmem:[#allocation2 + $0xfd0] sm:$0xff]
    %v567 = vld [vmem:[#allocation2 + $0xfd8] sm:$0xff]
    %v568 = vld [vmem:[#allocation2 + $0xfe0] sm:$0xff]
    %v569 = vld [vmem:[#allocation2 + $0xfe8] sm:$0xff]
    %v570 = vld [vmem:[#allocation2 + $0xff0] sm:$0xff]
    %v571 = vld [vmem:[#allocation2 + $0xff8] sm:$0xff]
    %v576 = vunpack.c.l.b16 %v56
    %v577 = vunpack.c.h.b16 %v56
    %v578 = vunpack.c.l.b16 %v57
    %v579 = vunpack.c.h.b16 %v57
    %v580 = vunpack.c.l.b16 %v58
    %v581 = vunpack.c.h.b16 %v58
    %v582 = vunpack.c.l.b16 %v59
    %v583 = vunpack.c.h.b16 %v59
    %v584 = vpack.c.b16 %v576, %v576
    %v585 = vpack.c.b16 %v577, %v577
    %v586 = vpack.c.b16 %v578, %v578
    %v587 = vpack.c.b16 %v579, %v579
    %v588 = vpack.c.b16 %v580, %v580
    %v589 = vpack.c.b16 %v581, %v581
    %v590 = vpack.c.b16 %v582, %v582
    %v591 = vpack.c.b16 %v583, %v583
    %v1112 = vunpack.c.l.b16 %v60
    %v1113 = vunpack.c.h.b16 %v60
    %v1114 = vunpack.c.l.b16 %v61
    %v1115 = vunpack.c.h.b16 %v61
    %v1116 = vunpack.c.l.b16 %v62
    %v1117 = vunpack.c.h.b16 %v62
    %v1118 = vunpack.c.l.b16 %v63
    %v1119 = vunpack.c.h.b16 %v63
    %v1120 = vunpack.c.l.b16 %v64
    %v1121 = vunpack.c.h.b16 %v64
    %v1122 = vunpack.c.l.b16 %v65
    %v1123 = vunpack.c.h.b16 %v65
    %v1124 = vunpack.c.l.b16 %v66
    %v1125 = vunpack.c.h.b16 %v66
    %v1126 = vunpack.c.l.b16 %v67
    %v1127 = vunpack.c.h.b16 %v67
    %v1128 = vunpack.c.l.b16 %v68
    %v1129 = vunpack.c.h.b16 %v68
    %v1130 = vunpack.c.l.b16 %v69
    %v1131 = vunpack.c.h.b16 %v69
    %v1132 = vunpack.c.l.b16 %v70
    %v1133 = vunpack.c.h.b16 %v70
    %v1134 = vunpack.c.l.b16 %v71
    %v1135 = vunpack.c.h.b16 %v71
    %v1136 = vunpack.c.l.b16 %v72
    %v1137 = vunpack.c.h.b16 %v72
    %v1138 = vunpack.c.l.b16 %v73
    %v1139 = vunpack.c.h.b16 %v73
    %v1140 = vunpack.c.l.b16 %v74
    %v1141 = vunpack.c.h.b16 %v74
    %v1142 = vunpack.c.l.b16 %v75
    %v1143 = vunpack.c.h.b16 %v75
    %v1144 = vunpack.c.l.b16 %v76
    %v1145 = vunpack.c.h.b16 %v76
    %v1146 = vunpack.c.l.b16 %v77
    %v1147 = vunpack.c.h.b16 %v77
    %v1148 = vunpack.c.l.b16 %v78
    %v1149 = vunpack.c.h.b16 %v78
    %v1150 = vunpack.c.l.b16 %v79
    %v1151 = vunpack.c.h.b16 %v79
    %v1152 = vunpack.c.l.b16 %v80
    %v1153 = vunpack.c.h.b16 %v80
    %v1154 = vunpack.c.l.b16 %v81
    %v1155 = vunpack.c.h.b16 %v81
    %v1156 = vunpack.c.l.b16 %v82
    %v1157 = vunpack.c.h.b16 %v82
    %v1158 = vunpack.c.l.b16 %v83
    %v1159 = vunpack.c.h.b16 %v83
    %v1160 = vunpack.c.l.b16 %v84
    %v1161 = vunpack.c.h.b16 %v84
    %v1162 = vunpack.c.l.b16 %v85
    %v1163 = vunpack.c.h.b16 %v85
    %v1164 = vunpack.c.l.b16 %v86
    %v1165 = vunpack.c.h.b16 %v86
    %v1166 = vunpack.c.l.b16 %v87
    %v1167 = vunpack.c.h.b16 %v87
    %v1168 = vunpack.c.l.b16 %v88
    %v1169 = vunpack.c.h.b16 %v88
    %v1170 = vunpack.c.l.b16 %v89
    %v1171 = vunpack.c.h.b16 %v89
    %v1172 = vunpack.c.l.b16 %v90
    %v1173 = vunpack.c.h.b16 %v90
    %v1174 = vunpack.c.l.b16 %v91
    %v1175 = vunpack.c.h.b16 %v91
    %v1176 = vunpack.c.l.b16 %v92
    %v1177 = vunpack.c.h.b16 %v92
    %v1178 = vunpack.c.l.b16 %v93
    %v1179 = vunpack.c.h.b16 %v93
    %v1180 = vunpack.c.l.b16 %v94
    %v1181 = vunpack.c.h.b16 %v94
    %v1182 = vunpack.c.l.b16 %v95
    %v1183 = vunpack.c.h.b16 %v95
    %v1184 = vunpack.c.l.b16 %v96
    %v1185 = vunpack.c.h.b16 %v96
    %v1186 = vunpack.c.l.b16 %v97
    %v1187 = vunpack.c.h.b16 %v97
    %v1188 = vunpack.c.l.b16 %v98
    %v1189 = vunpack.c.h.b16 %v98
    %v1190 = vunpack.c.l.b16 %v99
    %v1191 = vunpack.c.h.b16 %v99
    %v1192 = vunpack.c.l.b16 %v100
    %v1193 = vunpack.c.h.b16 %v100
    %v1194 = vunpack.c.l.b16 %v101
    %v1195 = vunpack.c.h.b16 %v101
    %v1196 = vunpack.c.l.b16 %v102
    %v1197 = vunpack.c.h.b16 %v102
    %v1198 = vunpack.c.l.b16 %v103
    %v1199 = vunpack.c.h.b16 %v103
    %v1200 = vunpack.c.l.b16 %v104
    %v1201 = vunpack.c.h.b16 %v104
    %v1202 = vunpack.c.l.b16 %v105
    %v1203 = vunpack.c.h.b16 %v105
    %v1204 = vunpack.c.l.b16 %v106
    %v1205 = vunpack.c.h.b16 %v106
    %v1206 = vunpack.c.l.b16 %v107
    %v1207 = vunpack.c.h.b16 %v107
    %v1208 = vunpack.c.l.b16 %v108
    %v1209 = vunpack.c.h.b16 %v108
    %v1210 = vunpack.c.l.b16 %v109
    %v1211 = vunpack.c.h.b16 %v109
    %v1212 = vunpack.c.l.b16 %v110
    %v1213 = vunpack.c.h.b16 %v110
    %v1214 = vunpack.c.l.b16 %v111
    %v1215 = vunpack.c.h.b16 %v111
    %v1216 = vunpack.c.l.b16 %v112
    %v1217 = vunpack.c.h.b16 %v112
    %v1218 = vunpack.c.l.b16 %v113
    %v1219 = vunpack.c.h.b16 %v113
    %v1220 = vunpack.c.l.b16 %v114
    %v1221 = vunpack.c.h.b16 %v114
    %v1222 = vunpack.c.l.b16 %v115
    %v1223 = vunpack.c.h.b16 %v115
    %v1224 = vunpack.c.l.b16 %v116
    %v1225 = vunpack.c.h.b16 %v116
    %v1226 = vunpack.c.l.b16 %v117
    %v1227 = vunpack.c.h.b16 %v117
    %v1228 = vunpack.c.l.b16 %v118
    %v1229 = vunpack.c.h.b16 %v118
    %v1230 = vunpack.c.l.b16 %v119
    %v1231 = vunpack.c.h.b16 %v119
    %v1232 = vunpack.c.l.b16 %v120
    %v1233 = vunpack.c.h.b16 %v120
    %v1234 = vunpack.c.l.b16 %v121
    %v1235 = vunpack.c.h.b16 %v121
    %v1236 = vunpack.c.l.b16 %v122
    %v1237 = vunpack.c.h.b16 %v122
    %v1238 = vunpack.c.l.b16 %v123
    %v1239 = vunpack.c.h.b16 %v123
    %v1240 = vunpack.c.l.b16 %v124
    %v1241 = vunpack.c.h.b16 %v124
    %v1242 = vunpack.c.l.b16 %v125
    %v1243 = vunpack.c.h.b16 %v125
    %v1244 = vunpack.c.l.b16 %v126
    %v1245 = vunpack.c.h.b16 %v126
    %v1246 = vunpack.c.l.b16 %v127
    %v1247 = vunpack.c.h.b16 %v127
    %v1248 = vunpack.c.l.b16 %v128
    %v1249 = vunpack.c.h.b16 %v128
    %v1250 = vunpack.c.l.b16 %v129
    %v1251 = vunpack.c.h.b16 %v129
    %v1252 = vunpack.c.l.b16 %v130
    %v1253 = vunpack.c.h.b16 %v130
    %v1254 = vunpack.c.l.b16 %v131
    %v1255 = vunpack.c.h.b16 %v131
    %v1256 = vunpack.c.l.b16 %v132
    %v1257 = vunpack.c.h.b16 %v132
    %v1258 = vunpack.c.l.b16 %v133
    %v1259 = vunpack.c.h.b16 %v133
    %v1260 = vunpack.c.l.b16 %v134
    %v1261 = vunpack.c.h.b16 %v134
    %v1262 = vunpack.c.l.b16 %v135
    %v1263 = vunpack.c.h.b16 %v135
    %v1264 = vunpack.c.l.b16 %v136
    %v1265 = vunpack.c.h.b16 %v136
    %v1266 = vunpack.c.l.b16 %v137
    %v1267 = vunpack.c.h.b16 %v137
    %v1268 = vunpack.c.l.b16 %v138
    %v1269 = vunpack.c.h.b16 %v138
    %v1270 = vunpack.c.l.b16 %v139
    %v1271 = vunpack.c.h.b16 %v139
    %v1272 = vunpack.c.l.b16 %v140
    %v1273 = vunpack.c.h.b16 %v140
    %v1274 = vunpack.c.l.b16 %v141
    %v1275 = vunpack.c.h.b16 %v141
    %v1276 = vunpack.c.l.b16 %v142
    %v1277 = vunpack.c.h.b16 %v142
    %v1278 = vunpack.c.l.b16 %v143
    %v1279 = vunpack.c.h.b16 %v143
    %v1280 = vunpack.c.l.b16 %v144
    %v1281 = vunpack.c.h.b16 %v144
    %v1282 = vunpack.c.l.b16 %v145
    %v1283 = vunpack.c.h.b16 %v145
    %v1284 = vunpack.c.l.b16 %v146
    %v1285 = vunpack.c.h.b16 %v146
    %v1286 = vunpack.c.l.b16 %v147
    %v1287 = vunpack.c.h.b16 %v147
    %v1288 = vunpack.c.l.b16 %v148
    %v1289 = vunpack.c.h.b16 %v148
    %v1290 = vunpack.c.l.b16 %v149
    %v1291 = vunpack.c.h.b16 %v149
    %v1292 = vunpack.c.l.b16 %v150
    %v1293 = vunpack.c.h.b16 %v150
    %v1294 = vunpack.c.l.b16 %v151
    %v1295 = vunpack.c.h.b16 %v151
    %v1296 = vunpack.c.l.b16 %v152
    %v1297 = vunpack.c.h.b16 %v152
    %v1298 = vunpack.c.l.b16 %v153
    %v1299 = vunpack.c.h.b16 %v153
    %v1300 = vunpack.c.l.b16 %v154
    %v1301 = vunpack.c.h.b16 %v154
    %v1302 = vunpack.c.l.b16 %v155
    %v1303 = vunpack.c.h.b16 %v155
    %v1304 = vunpack.c.l.b16 %v156
    %v1305 = vunpack.c.h.b16 %v156
    %v1306 = vunpack.c.l.b16 %v157
    %v1307 = vunpack.c.h.b16 %v157
    %v1308 = vunpack.c.l.b16 %v158
    %v1309 = vunpack.c.h.b16 %v158
    %v1310 = vunpack.c.l.b16 %v159
    %v1311 = vunpack.c.h.b16 %v159
    %v1312 = vunpack.c.l.b16 %v160
    %v1313 = vunpack.c.h.b16 %v160
    %v1314 = vunpack.c.l.b16 %v161
    %v1315 = vunpack.c.h.b16 %v161
    %v1316 = vunpack.c.l.b16 %v162
    %v1317 = vunpack.c.h.b16 %v162
    %v1318 = vunpack.c.l.b16 %v163
    %v1319 = vunpack.c.h.b16 %v163
    %v1320 = vunpack.c.l.b16 %v164
    %v1321 = vunpack.c.h.b16 %v164
    %v1322 = vunpack.c.l.b16 %v165
    %v1323 = vunpack.c.h.b16 %v165
    %v1324 = vunpack.c.l.b16 %v166
    %v1325 = vunpack.c.h.b16 %v166
    %v1326 = vunpack.c.l.b16 %v167
    %v1327 = vunpack.c.h.b16 %v167
    %v1328 = vunpack.c.l.b16 %v168
    %v1329 = vunpack.c.h.b16 %v168
    %v1330 = vunpack.c.l.b16 %v169
    %v1331 = vunpack.c.h.b16 %v169
    %v1332 = vunpack.c.l.b16 %v170
    %v1333 = vunpack.c.h.b16 %v170
    %v1334 = vunpack.c.l.b16 %v171
    %v1335 = vunpack.c.h.b16 %v171
    %v1336 = vunpack.c.l.b16 %v172
    %v1337 = vunpack.c.h.b16 %v172
    %v1338 = vunpack.c.l.b16 %v173
    %v1339 = vunpack.c.h.b16 %v173
    %v1340 = vunpack.c.l.b16 %v174
    %v1341 = vunpack.c.h.b16 %v174
    %v1342 = vunpack.c.l.b16 %v175
    %v1343 = vunpack.c.h.b16 %v175
    %v1344 = vunpack.c.l.b16 %v176
    %v1345 = vunpack.c.h.b16 %v176
    %v1346 = vunpack.c.l.b16 %v177
    %v1347 = vunpack.c.h.b16 %v177
    %v1348 = vunpack.c.l.b16 %v178
    %v1349 = vunpack.c.h.b16 %v178
    %v1350 = vunpack.c.l.b16 %v179
    %v1351 = vunpack.c.h.b16 %v179
    %v1352 = vunpack.c.l.b16 %v180
    %v1353 = vunpack.c.h.b16 %v180
    %v1354 = vunpack.c.l.b16 %v181
    %v1355 = vunpack.c.h.b16 %v181
    %v1356 = vunpack.c.l.b16 %v182
    %v1357 = vunpack.c.h.b16 %v182
    %v1358 = vunpack.c.l.b16 %v183
    %v1359 = vunpack.c.h.b16 %v183
    %v1360 = vunpack.c.l.b16 %v184
    %v1361 = vunpack.c.h.b16 %v184
    %v1362 = vunpack.c.l.b16 %v185
    %v1363 = vunpack.c.h.b16 %v185
    %v1364 = vunpack.c.l.b16 %v186
    %v1365 = vunpack.c.h.b16 %v186
    %v1366 = vunpack.c.l.b16 %v187
    %v1367 = vunpack.c.h.b16 %v187
    %v1368 = vunpack.c.l.b16 %v188
    %v1369 = vunpack.c.h.b16 %v188
    %v1370 = vunpack.c.l.b16 %v189
    %v1371 = vunpack.c.h.b16 %v189
    %v1372 = vunpack.c.l.b16 %v190
    %v1373 = vunpack.c.h.b16 %v190
    %v1374 = vunpack.c.l.b16 %v191
    %v1375 = vunpack.c.h.b16 %v191
    %v1376 = vunpack.c.l.b16 %v192
    %v1377 = vunpack.c.h.b16 %v192
    %v1378 = vunpack.c.l.b16 %v193
    %v1379 = vunpack.c.h.b16 %v193
    %v1380 = vunpack.c.l.b16 %v194
    %v1381 = vunpack.c.h.b16 %v194
    %v1382 = vunpack.c.l.b16 %v195
    %v1383 = vunpack.c.h.b16 %v195
    %v1384 = vunpack.c.l.b16 %v196
    %v1385 = vunpack.c.h.b16 %v196
    %v1386 = vunpack.c.l.b16 %v197
    %v1387 = vunpack.c.h.b16 %v197
    %v1388 = vunpack.c.l.b16 %v198
    %v1389 = vunpack.c.h.b16 %v198
    %v1390 = vunpack.c.l.b16 %v199
    %v1391 = vunpack.c.h.b16 %v199
    %v1392 = vunpack.c.l.b16 %v200
    %v1393 = vunpack.c.h.b16 %v200
    %v1394 = vunpack.c.l.b16 %v201
    %v1395 = vunpack.c.h.b16 %v201
    %v1396 = vunpack.c.l.b16 %v202
    %v1397 = vunpack.c.h.b16 %v202
    %v1398 = vunpack.c.l.b16 %v203
    %v1399 = vunpack.c.h.b16 %v203
    %v1400 = vunpack.c.l.b16 %v204
    %v1401 = vunpack.c.h.b16 %v204
    %v1402 = vunpack.c.l.b16 %v205
    %v1403 = vunpack.c.h.b16 %v205
    %v1404 = vunpack.c.l.b16 %v206
    %v1405 = vunpack.c.h.b16 %v206
    %v1406 = vunpack.c.l.b16 %v207
    %v1407 = vunpack.c.h.b16 %v207
    %v1408 = vunpack.c.l.b16 %v208
    %v1409 = vunpack.c.h.b16 %v208
    %v1410 = vunpack.c.l.b16 %v209
    %v1411 = vunpack.c.h.b16 %v209
    %v1412 = vunpack.c.l.b16 %v210
    %v1413 = vunpack.c.h.b16 %v210
    %v1414 = vunpack.c.l.b16 %v211
    %v1415 = vunpack.c.h.b16 %v211
    %v1416 = vunpack.c.l.b16 %v212
    %v1417 = vunpack.c.h.b16 %v212
    %v1418 = vunpack.c.l.b16 %v213
    %v1419 = vunpack.c.h.b16 %v213
    %v1420 = vunpack.c.l.b16 %v214
    %v1421 = vunpack.c.h.b16 %v214
    %v1422 = vunpack.c.l.b16 %v215
    %v1423 = vunpack.c.h.b16 %v215
    %v1424 = vunpack.c.l.b16 %v216
    %v1425 = vunpack.c.h.b16 %v216
    %v1426 = vunpack.c.l.b16 %v217
    %v1427 = vunpack.c.h.b16 %v217
    %v1428 = vunpack.c.l.b16 %v218
    %v1429 = vunpack.c.h.b16 %v218
    %v1430 = vunpack.c.l.b16 %v219
    %v1431 = vunpack.c.h.b16 %v219
    %v1432 = vunpack.c.l.b16 %v220
    %v1433 = vunpack.c.h.b16 %v220
    %v1434 = vunpack.c.l.b16 %v221
    %v1435 = vunpack.c.h.b16 %v221
    %v1436 = vunpack.c.l.b16 %v222
    %v1437 = vunpack.c.h.b16 %v222
    %v1438 = vunpack.c.l.b16 %v223
    %v1439 = vunpack.c.h.b16 %v223
    %v1440 = vunpack.c.l.b16 %v224
    %v1441 = vunpack.c.h.b16 %v224
    %v1442 = vunpack.c.l.b16 %v225
    %v1443 = vunpack.c.h.b16 %v225
    %v1444 = vunpack.c.l.b16 %v226
    %v1445 = vunpack.c.h.b16 %v226
    %v1446 = vunpack.c.l.b16 %v227
    %v1447 = vunpack.c.h.b16 %v227
    %v1448 = vunpack.c.l.b16 %v228
    %v1449 = vunpack.c.h.b16 %v228
    %v1450 = vunpack.c.l.b16 %v229
    %v1451 = vunpack.c.h.b16 %v229
    %v1452 = vunpack.c.l.b16 %v230
    %v1453 = vunpack.c.h.b16 %v230
    %v1454 = vunpack.c.l.b16 %v231
    %v1455 = vunpack.c.h.b16 %v231
    %v1456 = vunpack.c.l.b16 %v232
    %v1457 = vunpack.c.h.b16 %v232
    %v1458 = vunpack.c.l.b16 %v233
    %v1459 = vunpack.c.h.b16 %v233
    %v1460 = vunpack.c.l.b16 %v234
    %v1461 = vunpack.c.h.b16 %v234
    %v1462 = vunpack.c.l.b16 %v235
    %v1463 = vunpack.c.h.b16 %v235
    %v1464 = vunpack.c.l.b16 %v236
    %v1465 = vunpack.c.h.b16 %v236
    %v1466 = vunpack.c.l.b16 %v237
    %v1467 = vunpack.c.h.b16 %v237
    %v1468 = vunpack.c.l.b16 %v238
    %v1469 = vunpack.c.h.b16 %v238
    %v1470 = vunpack.c.l.b16 %v239
    %v1471 = vunpack.c.h.b16 %v239
    %v1472 = vunpack.c.l.b16 %v240
    %v1473 = vunpack.c.h.b16 %v240
    %v1474 = vunpack.c.l.b16 %v241
    %v1475 = vunpack.c.h.b16 %v241
    %v1476 = vunpack.c.l.b16 %v242
    %v1477 = vunpack.c.h.b16 %v242
    %v1478 = vunpack.c.l.b16 %v243
    %v1479 = vunpack.c.h.b16 %v243
    %v1480 = vunpack.c.l.b16 %v244
    %v1481 = vunpack.c.h.b16 %v244
    %v1482 = vunpack.c.l.b16 %v245
    %v1483 = vunpack.c.h.b16 %v245
    %v1484 = vunpack.c.l.b16 %v246
    %v1485 = vunpack.c.h.b16 %v246
    %v1486 = vunpack.c.l.b16 %v247
    %v1487 = vunpack.c.h.b16 %v247
    %v1488 = vunpack.c.l.b16 %v248
    %v1489 = vunpack.c.h.b16 %v248
    %v1490 = vunpack.c.l.b16 %v249
    %v1491 = vunpack.c.h.b16 %v249
    %v1492 = vunpack.c.l.b16 %v250
    %v1493 = vunpack.c.h.b16 %v250
    %v1494 = vunpack.c.l.b16 %v251
    %v1495 = vunpack.c.h.b16 %v251
    %v1496 = vunpack.c.l.b16 %v252
    %v1497 = vunpack.c.h.b16 %v252
    %v1498 = vunpack.c.l.b16 %v253
    %v1499 = vunpack.c.h.b16 %v253
    %v1500 = vunpack.c.l.b16 %v254
    %v1501 = vunpack.c.h.b16 %v254
    %v1502 = vunpack.c.l.b16 %v255
    %v1503 = vunpack.c.h.b16 %v255
    %v1504 = vunpack.c.l.b16 %v256
    %v1505 = vunpack.c.h.b16 %v256
    %v1506 = vunpack.c.l.b16 %v257
    %v1507 = vunpack.c.h.b16 %v257
    %v1508 = vunpack.c.l.b16 %v258
    %v1509 = vunpack.c.h.b16 %v258
    %v1510 = vunpack.c.l.b16 %v259
    %v1511 = vunpack.c.h.b16 %v259
    %v1512 = vunpack.c.l.b16 %v260
    %v1513 = vunpack.c.h.b16 %v260
    %v1514 = vunpack.c.l.b16 %v261
    %v1515 = vunpack.c.h.b16 %v261
    %v1516 = vunpack.c.l.b16 %v262
    %v1517 = vunpack.c.h.b16 %v262
    %v1518 = vunpack.c.l.b16 %v263
    %v1519 = vunpack.c.h.b16 %v263
    %v1520 = vunpack.c.l.b16 %v264
    %v1521 = vunpack.c.h.b16 %v264
    %v1522 = vunpack.c.l.b16 %v265
    %v1523 = vunpack.c.h.b16 %v265
    %v1524 = vunpack.c.l.b16 %v266
    %v1525 = vunpack.c.h.b16 %v266
    %v1526 = vunpack.c.l.b16 %v267
    %v1527 = vunpack.c.h.b16 %v267
    %v1528 = vunpack.c.l.b16 %v268
    %v1529 = vunpack.c.h.b16 %v268
    %v1530 = vunpack.c.l.b16 %v269
    %v1531 = vunpack.c.h.b16 %v269
    %v1532 = vunpack.c.l.b16 %v270
    %v1533 = vunpack.c.h.b16 %v270
    %v1534 = vunpack.c.l.b16 %v271
    %v1535 = vunpack.c.h.b16 %v271
    %v1536 = vunpack.c.l.b16 %v272
    %v1537 = vunpack.c.h.b16 %v272
    %v1538 = vunpack.c.l.b16 %v273
    %v1539 = vunpack.c.h.b16 %v273
    %v1540 = vunpack.c.l.b16 %v274
    %v1541 = vunpack.c.h.b16 %v274
    %v1542 = vunpack.c.l.b16 %v275
    %v1543 = vunpack.c.h.b16 %v275
    %v1544 = vunpack.c.l.b16 %v276
    %v1545 = vunpack.c.h.b16 %v276
    %v1546 = vunpack.c.l.b16 %v277
    %v1547 = vunpack.c.h.b16 %v277
    %v1548 = vunpack.c.l.b16 %v278
    %v1549 = vunpack.c.h.b16 %v278
    %v1550 = vunpack.c.l.b16 %v279
    %v1551 = vunpack.c.h.b16 %v279
    %v1552 = vunpack.c.l.b16 %v280
    %v1553 = vunpack.c.h.b16 %v280
    %v1554 = vunpack.c.l.b16 %v281
    %v1555 = vunpack.c.h.b16 %v281
    %v1556 = vunpack.c.l.b16 %v282
    %v1557 = vunpack.c.h.b16 %v282
    %v1558 = vunpack.c.l.b16 %v283
    %v1559 = vunpack.c.h.b16 %v283
    %v1560 = vunpack.c.l.b16 %v284
    %v1561 = vunpack.c.h.b16 %v284
    %v1562 = vunpack.c.l.b16 %v285
    %v1563 = vunpack.c.h.b16 %v285
    %v1564 = vunpack.c.l.b16 %v286
    %v1565 = vunpack.c.h.b16 %v286
    %v1566 = vunpack.c.l.b16 %v287
    %v1567 = vunpack.c.h.b16 %v287
    %v1568 = vunpack.c.l.b16 %v288
    %v1569 = vunpack.c.h.b16 %v288
    %v1570 = vunpack.c.l.b16 %v289
    %v1571 = vunpack.c.h.b16 %v289
    %v1572 = vunpack.c.l.b16 %v290
    %v1573 = vunpack.c.h.b16 %v290
    %v1574 = vunpack.c.l.b16 %v291
    %v1575 = vunpack.c.h.b16 %v291
    %v1576 = vunpack.c.l.b16 %v292
    %v1577 = vunpack.c.h.b16 %v292
    %v1578 = vunpack.c.l.b16 %v293
    %v1579 = vunpack.c.h.b16 %v293
    %v1580 = vunpack.c.l.b16 %v294
    %v1581 = vunpack.c.h.b16 %v294
    %v1582 = vunpack.c.l.b16 %v295
    %v1583 = vunpack.c.h.b16 %v295
    %v1584 = vunpack.c.l.b16 %v296
    %v1585 = vunpack.c.h.b16 %v296
    %v1586 = vunpack.c.l.b16 %v297
    %v1587 = vunpack.c.h.b16 %v297
    %v1588 = vunpack.c.l.b16 %v298
    %v1589 = vunpack.c.h.b16 %v298
    %v1590 = vunpack.c.l.b16 %v299
    %v1591 = vunpack.c.h.b16 %v299
    %v1592 = vunpack.c.l.b16 %v300
    %v1593 = vunpack.c.h.b16 %v300
    %v1594 = vunpack.c.l.b16 %v301
    %v1595 = vunpack.c.h.b16 %v301
    %v1596 = vunpack.c.l.b16 %v302
    %v1597 = vunpack.c.h.b16 %v302
    %v1598 = vunpack.c.l.b16 %v303
    %v1599 = vunpack.c.h.b16 %v303
    %v1600 = vunpack.c.l.b16 %v304
    %v1601 = vunpack.c.h.b16 %v304
    %v1602 = vunpack.c.l.b16 %v305
    %v1603 = vunpack.c.h.b16 %v305
    %v1604 = vunpack.c.l.b16 %v306
    %v1605 = vunpack.c.h.b16 %v306
    %v1606 = vunpack.c.l.b16 %v307
    %v1607 = vunpack.c.h.b16 %v307
    %v1608 = vunpack.c.l.b16 %v308
    %v1609 = vunpack.c.h.b16 %v308
    %v1610 = vunpack.c.l.b16 %v309
    %v1611 = vunpack.c.h.b16 %v309
    %v1612 = vunpack.c.l.b16 %v310
    %v1613 = vunpack.c.h.b16 %v310
    %v1614 = vunpack.c.l.b16 %v311
    %v1615 = vunpack.c.h.b16 %v311
    %v1616 = vunpack.c.l.b16 %v312
    %v1617 = vunpack.c.h.b16 %v312
    %v1618 = vunpack.c.l.b16 %v313
    %v1619 = vunpack.c.h.b16 %v313
    %v1620 = vunpack.c.l.b16 %v314
    %v1621 = vunpack.c.h.b16 %v314
    %v1622 = vunpack.c.l.b16 %v315
    %v1623 = vunpack.c.h.b16 %v315
    %v1624 = vunpack.c.l.b16 %v316
    %v1625 = vunpack.c.h.b16 %v316
    %v1626 = vunpack.c.l.b16 %v317
    %v1627 = vunpack.c.h.b16 %v317
    %v1628 = vunpack.c.l.b16 %v318
    %v1629 = vunpack.c.h.b16 %v318
    %v1630 = vunpack.c.l.b16 %v319
    %v1631 = vunpack.c.h.b16 %v319
    %v1632 = vunpack.c.l.b16 %v320
    %v1633 = vunpack.c.h.b16 %v320
    %v1634 = vunpack.c.l.b16 %v321
    %v1635 = vunpack.c.h.b16 %v321
    %v1636 = vunpack.c.l.b16 %v322
    %v1637 = vunpack.c.h.b16 %v322
    %v1638 = vunpack.c.l.b16 %v323
    %v1639 = vunpack.c.h.b16 %v323
    %v1640 = vunpack.c.l.b16 %v324
    %v1641 = vunpack.c.h.b16 %v324
    %v1642 = vunpack.c.l.b16 %v325
    %v1643 = vunpack.c.h.b16 %v325
    %v1644 = vunpack.c.l.b16 %v326
    %v1645 = vunpack.c.h.b16 %v326
    %v1646 = vunpack.c.l.b16 %v327
    %v1647 = vunpack.c.h.b16 %v327
    %v1648 = vunpack.c.l.b16 %v328
    %v1649 = vunpack.c.h.b16 %v328
    %v1650 = vunpack.c.l.b16 %v329
    %v1651 = vunpack.c.h.b16 %v329
    %v1652 = vunpack.c.l.b16 %v330
    %v1653 = vunpack.c.h.b16 %v330
    %v1654 = vunpack.c.l.b16 %v331
    %v1655 = vunpack.c.h.b16 %v331
    %v1656 = vunpack.c.l.b16 %v332
    %v1657 = vunpack.c.h.b16 %v332
    %v1658 = vunpack.c.l.b16 %v333
    %v1659 = vunpack.c.h.b16 %v333
    %v1660 = vunpack.c.l.b16 %v334
    %v1661 = vunpack.c.h.b16 %v334
    %v1662 = vunpack.c.l.b16 %v335
    %v1663 = vunpack.c.h.b16 %v335
    %v1664 = vunpack.c.l.b16 %v336
    %v1665 = vunpack.c.h.b16 %v336
    %v1666 = vunpack.c.l.b16 %v337
    %v1667 = vunpack.c.h.b16 %v337
    %v1668 = vunpack.c.l.b16 %v338
    %v1669 = vunpack.c.h.b16 %v338
    %v1670 = vunpack.c.l.b16 %v339
    %v1671 = vunpack.c.h.b16 %v339
    %v1672 = vunpack.c.l.b16 %v340
    %v1673 = vunpack.c.h.b16 %v340
    %v1674 = vunpack.c.l.b16 %v341
    %v1675 = vunpack.c.h.b16 %v341
    %v1676 = vunpack.c.l.b16 %v342
    %v1677 = vunpack.c.h.b16 %v342
    %v1678 = vunpack.c.l.b16 %v343
    %v1679 = vunpack.c.h.b16 %v343
    %v1680 = vunpack.c.l.b16 %v344
    %v1681 = vunpack.c.h.b16 %v344
    %v1682 = vunpack.c.l.b16 %v345
    %v1683 = vunpack.c.h.b16 %v345
    %v1684 = vunpack.c.l.b16 %v346
    %v1685 = vunpack.c.h.b16 %v346
    %v1686 = vunpack.c.l.b16 %v347
    %v1687 = vunpack.c.h.b16 %v347
    %v1688 = vunpack.c.l.b16 %v348
    %v1689 = vunpack.c.h.b16 %v348
    %v1690 = vunpack.c.l.b16 %v349
    %v1691 = vunpack.c.h.b16 %v349
    %v1692 = vunpack.c.l.b16 %v350
    %v1693 = vunpack.c.h.b16 %v350
    %v1694 = vunpack.c.l.b16 %v351
    %v1695 = vunpack.c.h.b16 %v351
    %v1696 = vunpack.c.l.b16 %v352
    %v1697 = vunpack.c.h.b16 %v352
    %v1698 = vunpack.c.l.b16 %v353
    %v1699 = vunpack.c.h.b16 %v353
    %v1700 = vunpack.c.l.b16 %v354
    %v1701 = vunpack.c.h.b16 %v354
    %v1702 = vunpack.c.l.b16 %v355
    %v1703 = vunpack.c.h.b16 %v355
    %v1704 = vunpack.c.l.b16 %v356
    %v1705 = vunpack.c.h.b16 %v356
    %v1706 = vunpack.c.l.b16 %v357
    %v1707 = vunpack.c.h.b16 %v357
    %v1708 = vunpack.c.l.b16 %v358
    %v1709 = vunpack.c.h.b16 %v358
    %v1710 = vunpack.c.l.b16 %v359
    %v1711 = vunpack.c.h.b16 %v359
    %v1712 = vunpack.c.l.b16 %v360
    %v1713 = vunpack.c.h.b16 %v360
    %v1714 = vunpack.c.l.b16 %v361
    %v1715 = vunpack.c.h.b16 %v361
    %v1716 = vunpack.c.l.b16 %v362
    %v1717 = vunpack.c.h.b16 %v362
    %v1718 = vunpack.c.l.b16 %v363
    %v1719 = vunpack.c.h.b16 %v363
    %v1720 = vunpack.c.l.b16 %v364
    %v1721 = vunpack.c.h.b16 %v364
    %v1722 = vunpack.c.l.b16 %v365
    %v1723 = vunpack.c.h.b16 %v365
    %v1724 = vunpack.c.l.b16 %v366
    %v1725 = vunpack.c.h.b16 %v366
    %v1726 = vunpack.c.l.b16 %v367
    %v1727 = vunpack.c.h.b16 %v367
    %v1728 = vunpack.c.l.b16 %v368
    %v1729 = vunpack.c.h.b16 %v368
    %v1730 = vunpack.c.l.b16 %v369
    %v1731 = vunpack.c.h.b16 %v369
    %v1732 = vunpack.c.l.b16 %v370
    %v1733 = vunpack.c.h.b16 %v370
    %v1734 = vunpack.c.l.b16 %v371
    %v1735 = vunpack.c.h.b16 %v371
    %v1736 = vunpack.c.l.b16 %v372
    %v1737 = vunpack.c.h.b16 %v372
    %v1738 = vunpack.c.l.b16 %v373
    %v1739 = vunpack.c.h.b16 %v373
    %v1740 = vunpack.c.l.b16 %v374
    %v1741 = vunpack.c.h.b16 %v374
    %v1742 = vunpack.c.l.b16 %v375
    %v1743 = vunpack.c.h.b16 %v375
    %v1744 = vunpack.c.l.b16 %v376
    %v1745 = vunpack.c.h.b16 %v376
    %v1746 = vunpack.c.l.b16 %v377
    %v1747 = vunpack.c.h.b16 %v377
    %v1748 = vunpack.c.l.b16 %v378
    %v1749 = vunpack.c.h.b16 %v378
    %v1750 = vunpack.c.l.b16 %v379
    %v1751 = vunpack.c.h.b16 %v379
    %v1752 = vunpack.c.l.b16 %v380
    %v1753 = vunpack.c.h.b16 %v380
    %v1754 = vunpack.c.l.b16 %v381
    %v1755 = vunpack.c.h.b16 %v381
    %v1756 = vunpack.c.l.b16 %v382
    %v1757 = vunpack.c.h.b16 %v382
    %v1758 = vunpack.c.l.b16 %v383
    %v1759 = vunpack.c.h.b16 %v383
    %v1760 = vunpack.c.l.b16 %v384
    %v1761 = vunpack.c.h.b16 %v384
    %v1762 = vunpack.c.l.b16 %v385
    %v1763 = vunpack.c.h.b16 %v385
    %v1764 = vunpack.c.l.b16 %v386
    %v1765 = vunpack.c.h.b16 %v386
    %v1766 = vunpack.c.l.b16 %v387
    %v1767 = vunpack.c.h.b16 %v387
    %v1768 = vunpack.c.l.b16 %v388
    %v1769 = vunpack.c.h.b16 %v388
    %v1770 = vunpack.c.l.b16 %v389
    %v1771 = vunpack.c.h.b16 %v389
    %v1772 = vunpack.c.l.b16 %v390
    %v1773 = vunpack.c.h.b16 %v390
    %v1774 = vunpack.c.l.b16 %v391
    %v1775 = vunpack.c.h.b16 %v391
    %v1776 = vunpack.c.l.b16 %v392
    %v1777 = vunpack.c.h.b16 %v392
    %v1778 = vunpack.c.l.b16 %v393
    %v1779 = vunpack.c.h.b16 %v393
    %v1780 = vunpack.c.l.b16 %v394
    %v1781 = vunpack.c.h.b16 %v394
    %v1782 = vunpack.c.l.b16 %v395
    %v1783 = vunpack.c.h.b16 %v395
    %v1784 = vunpack.c.l.b16 %v396
    %v1785 = vunpack.c.h.b16 %v396
    %v1786 = vunpack.c.l.b16 %v397
    %v1787 = vunpack.c.h.b16 %v397
    %v1788 = vunpack.c.l.b16 %v398
    %v1789 = vunpack.c.h.b16 %v398
    %v1790 = vunpack.c.l.b16 %v399
    %v1791 = vunpack.c.h.b16 %v399
    %v1792 = vunpack.c.l.b16 %v400
    %v1793 = vunpack.c.h.b16 %v400
    %v1794 = vunpack.c.l.b16 %v401
    %v1795 = vunpack.c.h.b16 %v401
    %v1796 = vunpack.c.l.b16 %v402
    %v1797 = vunpack.c.h.b16 %v402
    %v1798 = vunpack.c.l.b16 %v403
    %v1799 = vunpack.c.h.b16 %v403
    %v1800 = vunpack.c.l.b16 %v404
    %v1801 = vunpack.c.h.b16 %v404
    %v1802 = vunpack.c.l.b16 %v405
    %v1803 = vunpack.c.h.b16 %v405
    %v1804 = vunpack.c.l.b16 %v406
    %v1805 = vunpack.c.h.b16 %v406
    %v1806 = vunpack.c.l.b16 %v407
    %v1807 = vunpack.c.h.b16 %v407
    %v1808 = vunpack.c.l.b16 %v408
    %v1809 = vunpack.c.h.b16 %v408
    %v1810 = vunpack.c.l.b16 %v409
    %v1811 = vunpack.c.h.b16 %v409
    %v1812 = vunpack.c.l.b16 %v410
    %v1813 = vunpack.c.h.b16 %v410
    %v1814 = vunpack.c.l.b16 %v411
    %v1815 = vunpack.c.h.b16 %v411
    %v1816 = vunpack.c.l.b16 %v412
    %v1817 = vunpack.c.h.b16 %v412
    %v1818 = vunpack.c.l.b16 %v413
    %v1819 = vunpack.c.h.b16 %v413
    %v1820 = vunpack.c.l.b16 %v414
    %v1821 = vunpack.c.h.b16 %v414
    %v1822 = vunpack.c.l.b16 %v415
    %v1823 = vunpack.c.h.b16 %v415
    %v1824 = vunpack.c.l.b16 %v416
    %v1825 = vunpack.c.h.b16 %v416
    %v1826 = vunpack.c.l.b16 %v417
    %v1827 = vunpack.c.h.b16 %v417
    %v1828 = vunpack.c.l.b16 %v418
    %v1829 = vunpack.c.h.b16 %v418
    %v1830 = vunpack.c.l.b16 %v419
    %v1831 = vunpack.c.h.b16 %v419
    %v1832 = vunpack.c.l.b16 %v420
    %v1833 = vunpack.c.h.b16 %v420
    %v1834 = vunpack.c.l.b16 %v421
    %v1835 = vunpack.c.h.b16 %v421
    %v1836 = vunpack.c.l.b16 %v422
    %v1837 = vunpack.c.h.b16 %v422
    %v1838 = vunpack.c.l.b16 %v423
    %v1839 = vunpack.c.h.b16 %v423
    %v1840 = vunpack.c.l.b16 %v424
    %v1841 = vunpack.c.h.b16 %v424
    %v1842 = vunpack.c.l.b16 %v425
    %v1843 = vunpack.c.h.b16 %v425
    %v1844 = vunpack.c.l.b16 %v426
    %v1845 = vunpack.c.h.b16 %v426
    %v1846 = vunpack.c.l.b16 %v427
    %v1847 = vunpack.c.h.b16 %v427
    %v1848 = vunpack.c.l.b16 %v428
    %v1849 = vunpack.c.h.b16 %v428
    %v1850 = vunpack.c.l.b16 %v429
    %v1851 = vunpack.c.h.b16 %v429
    %v1852 = vunpack.c.l.b16 %v430
    %v1853 = vunpack.c.h.b16 %v430
    %v1854 = vunpack.c.l.b16 %v431
    %v1855 = vunpack.c.h.b16 %v431
    %v1856 = vunpack.c.l.b16 %v432
    %v1857 = vunpack.c.h.b16 %v432
    %v1858 = vunpack.c.l.b16 %v433
    %v1859 = vunpack.c.h.b16 %v433
    %v1860 = vunpack.c.l.b16 %v434
    %v1861 = vunpack.c.h.b16 %v434
    %v1862 = vunpack.c.l.b16 %v435
    %v1863 = vunpack.c.h.b16 %v435
    %v1864 = vunpack.c.l.b16 %v436
    %v1865 = vunpack.c.h.b16 %v436
    %v1866 = vunpack.c.l.b16 %v437
    %v1867 = vunpack.c.h.b16 %v437
    %v1868 = vunpack.c.l.b16 %v438
    %v1869 = vunpack.c.h.b16 %v438
    %v1870 = vunpack.c.l.b16 %v439
    %v1871 = vunpack.c.h.b16 %v439
    %v1872 = vunpack.c.l.b16 %v440
    %v1873 = vunpack.c.h.b16 %v440
    %v1874 = vunpack.c.l.b16 %v441
    %v1875 = vunpack.c.h.b16 %v441
    %v1876 = vunpack.c.l.b16 %v442
    %v1877 = vunpack.c.h.b16 %v442
    %v1878 = vunpack.c.l.b16 %v443
    %v1879 = vunpack.c.h.b16 %v443
    %v1880 = vunpack.c.l.b16 %v444
    %v1881 = vunpack.c.h.b16 %v444
    %v1882 = vunpack.c.l.b16 %v445
    %v1883 = vunpack.c.h.b16 %v445
    %v1884 = vunpack.c.l.b16 %v446
    %v1885 = vunpack.c.h.b16 %v446
    %v1886 = vunpack.c.l.b16 %v447
    %v1887 = vunpack.c.h.b16 %v447
    %v1888 = vunpack.c.l.b16 %v448
    %v1889 = vunpack.c.h.b16 %v448
    %v1890 = vunpack.c.l.b16 %v449
    %v1891 = vunpack.c.h.b16 %v449
    %v1892 = vunpack.c.l.b16 %v450
    %v1893 = vunpack.c.h.b16 %v450
    %v1894 = vunpack.c.l.b16 %v451
    %v1895 = vunpack.c.h.b16 %v451
    %v1896 = vunpack.c.l.b16 %v452
    %v1897 = vunpack.c.h.b16 %v452
    %v1898 = vunpack.c.l.b16 %v453
    %v1899 = vunpack.c.h.b16 %v453
    %v1900 = vunpack.c.l.b16 %v454
    %v1901 = vunpack.c.h.b16 %v454
    %v1902 = vunpack.c.l.b16 %v455
    %v1903 = vunpack.c.h.b16 %v455
    %v1904 = vunpack.c.l.b16 %v456
    %v1905 = vunpack.c.h.b16 %v456
    %v1906 = vunpack.c.l.b16 %v457
    %v1907 = vunpack.c.h.b16 %v457
    %v1908 = vunpack.c.l.b16 %v458
    %v1909 = vunpack.c.h.b16 %v458
    %v1910 = vunpack.c.l.b16 %v459
    %v1911 = vunpack.c.h.b16 %v459
    %v1912 = vunpack.c.l.b16 %v460
    %v1913 = vunpack.c.h.b16 %v460
    %v1914 = vunpack.c.l.b16 %v461
    %v1915 = vunpack.c.h.b16 %v461
    %v1916 = vunpack.c.l.b16 %v462
    %v1917 = vunpack.c.h.b16 %v462
    %v1918 = vunpack.c.l.b16 %v463
    %v1919 = vunpack.c.h.b16 %v463
    %v1920 = vunpack.c.l.b16 %v464
    %v1921 = vunpack.c.h.b16 %v464
    %v1922 = vunpack.c.l.b16 %v465
    %v1923 = vunpack.c.h.b16 %v465
    %v1924 = vunpack.c.l.b16 %v466
    %v1925 = vunpack.c.h.b16 %v466
    %v1926 = vunpack.c.l.b16 %v467
    %v1927 = vunpack.c.h.b16 %v467
    %v1928 = vunpack.c.l.b16 %v468
    %v1929 = vunpack.c.h.b16 %v468
    %v1930 = vunpack.c.l.b16 %v469
    %v1931 = vunpack.c.h.b16 %v469
    %v1932 = vunpack.c.l.b16 %v470
    %v1933 = vunpack.c.h.b16 %v470
    %v1934 = vunpack.c.l.b16 %v471
    %v1935 = vunpack.c.h.b16 %v471
    %v1936 = vunpack.c.l.b16 %v472
    %v1937 = vunpack.c.h.b16 %v472
    %v1938 = vunpack.c.l.b16 %v473
    %v1939 = vunpack.c.h.b16 %v473
    %v1940 = vunpack.c.l.b16 %v474
    %v1941 = vunpack.c.h.b16 %v474
    %v1942 = vunpack.c.l.b16 %v475
    %v1943 = vunpack.c.h.b16 %v475
    %v1944 = vunpack.c.l.b16 %v476
    %v1945 = vunpack.c.h.b16 %v476
    %v1946 = vunpack.c.l.b16 %v477
    %v1947 = vunpack.c.h.b16 %v477
    %v1948 = vunpack.c.l.b16 %v478
    %v1949 = vunpack.c.h.b16 %v478
    %v1950 = vunpack.c.l.b16 %v479
    %v1951 = vunpack.c.h.b16 %v479
    %v1952 = vunpack.c.l.b16 %v480
    %v1953 = vunpack.c.h.b16 %v480
    %v1954 = vunpack.c.l.b16 %v481
    %v1955 = vunpack.c.h.b16 %v481
    %v1956 = vunpack.c.l.b16 %v482
    %v1957 = vunpack.c.h.b16 %v482
    %v1958 = vunpack.c.l.b16 %v483
    %v1959 = vunpack.c.h.b16 %v483
    %v1960 = vunpack.c.l.b16 %v484
    %v1961 = vunpack.c.h.b16 %v484
    %v1962 = vunpack.c.l.b16 %v485
    %v1963 = vunpack.c.h.b16 %v485
    %v1964 = vunpack.c.l.b16 %v486
    %v1965 = vunpack.c.h.b16 %v486
    %v1966 = vunpack.c.l.b16 %v487
    %v1967 = vunpack.c.h.b16 %v487
    %v1968 = vunpack.c.l.b16 %v488
    %v1969 = vunpack.c.h.b16 %v488
    %v1970 = vunpack.c.l.b16 %v489
    %v1971 = vunpack.c.h.b16 %v489
    %v1972 = vunpack.c.l.b16 %v490
    %v1973 = vunpack.c.h.b16 %v490
    %v1974 = vunpack.c.l.b16 %v491
    %v1975 = vunpack.c.h.b16 %v491
    %v1976 = vunpack.c.l.b16 %v492
    %v1977 = vunpack.c.h.b16 %v492
    %v1978 = vunpack.c.l.b16 %v493
    %v1979 = vunpack.c.h.b16 %v493
    %v1980 = vunpack.c.l.b16 %v494
    %v1981 = vunpack.c.h.b16 %v494
    %v1982 = vunpack.c.l.b16 %v495
    %v1983 = vunpack.c.h.b16 %v495
    %v1984 = vunpack.c.l.b16 %v496
    %v1985 = vunpack.c.h.b16 %v496
    %v1986 = vunpack.c.l.b16 %v497
    %v1987 = vunpack.c.h.b16 %v497
    %v1988 = vunpack.c.l.b16 %v498
    %v1989 = vunpack.c.h.b16 %v498
    %v1990 = vunpack.c.l.b16 %v499
    %v1991 = vunpack.c.h.b16 %v499
    %v1992 = vunpack.c.l.b16 %v500
    %v1993 = vunpack.c.h.b16 %v500
    %v1994 = vunpack.c.l.b16 %v501
    %v1995 = vunpack.c.h.b16 %v501
    %v1996 = vunpack.c.l.b16 %v502
    %v1997 = vunpack.c.h.b16 %v502
    %v1998 = vunpack.c.l.b16 %v503
    %v1999 = vunpack.c.h.b16 %v503
    %v2000 = vunpack.c.l.b16 %v504
    %v2001 = vunpack.c.h.b16 %v504
    %v2002 = vunpack.c.l.b16 %v505
    %v2003 = vunpack.c.h.b16 %v505
    %v2004 = vunpack.c.l.b16 %v506
    %v2005 = vunpack.c.h.b16 %v506
    %v2006 = vunpack.c.l.b16 %v507
    %v2007 = vunpack.c.h.b16 %v507
    %v2008 = vunpack.c.l.b16 %v508
    %v2009 = vunpack.c.h.b16 %v508
    %v2010 = vunpack.c.l.b16 %v509
    %v2011 = vunpack.c.h.b16 %v509
    %v2012 = vunpack.c.l.b16 %v510
    %v2013 = vunpack.c.h.b16 %v510
    %v2014 = vunpack.c.l.b16 %v511
    %v2015 = vunpack.c.h.b16 %v511
    %v2016 = vunpack.c.l.b16 %v512
    %v2017 = vunpack.c.h.b16 %v512
    %v2018 = vunpack.c.l.b16 %v513
    %v2019 = vunpack.c.h.b16 %v513
    %v2020 = vunpack.c.l.b16 %v514
    %v2021 = vunpack.c.h.b16 %v514
    %v2022 = vunpack.c.l.b16 %v515
    %v2023 = vunpack.c.h.b16 %v515
    %v2024 = vunpack.c.l.b16 %v516
    %v2025 = vunpack.c.h.b16 %v516
    %v2026 = vunpack.c.l.b16 %v517
    %v2027 = vunpack.c.h.b16 %v517
    %v2028 = vunpack.c.l.b16 %v518
    %v2029 = vunpack.c.h.b16 %v518
    %v2030 = vunpack.c.l.b16 %v519
    %v2031 = vunpack.c.h.b16 %v519
    %v2032 = vunpack.c.l.b16 %v520
    %v2033 = vunpack.c.h.b16 %v520
    %v2034 = vunpack.c.l.b16 %v521
    %v2035 = vunpack.c.h.b16 %v521
    %v2036 = vunpack.c.l.b16 %v522
    %v2037 = vunpack.c.h.b16 %v522
    %v2038 = vunpack.c.l.b16 %v523
    %v2039 = vunpack.c.h.b16 %v523
    %v2040 = vunpack.c.l.b16 %v524
    %v2041 = vunpack.c.h.b16 %v524
    %v2042 = vunpack.c.l.b16 %v525
    %v2043 = vunpack.c.h.b16 %v525
    %v2044 = vunpack.c.l.b16 %v526
    %v2045 = vunpack.c.h.b16 %v526
    %v2046 = vunpack.c.l.b16 %v527
    %v2047 = vunpack.c.h.b16 %v527
    %v2048 = vunpack.c.l.b16 %v528
    %v2049 = vunpack.c.h.b16 %v528
    %v2050 = vunpack.c.l.b16 %v529
    %v2051 = vunpack.c.h.b16 %v529
    %v2052 = vunpack.c.l.b16 %v530
    %v2053 = vunpack.c.h.b16 %v530
    %v2054 = vunpack.c.l.b16 %v531
    %v2055 = vunpack.c.h.b16 %v531
    %v2056 = vunpack.c.l.b16 %v532
    %v2057 = vunpack.c.h.b16 %v532
    %v2058 = vunpack.c.l.b16 %v533
    %v2059 = vunpack.c.h.b16 %v533
    %v2060 = vunpack.c.l.b16 %v534
    %v2061 = vunpack.c.h.b16 %v534
    %v2062 = vunpack.c.l.b16 %v535
    %v2063 = vunpack.c.h.b16 %v535
    %v2064 = vunpack.c.l.b16 %v536
    %v2065 = vunpack.c.h.b16 %v536
    %v2066 = vunpack.c.l.b16 %v537
    %v2067 = vunpack.c.h.b16 %v537
    %v2068 = vunpack.c.l.b16 %v538
    %v2069 = vunpack.c.h.b16 %v538
    %v2070 = vunpack.c.l.b16 %v539
    %v2071 = vunpack.c.h.b16 %v539
    %v2072 = vunpack.c.l.b16 %v540
    %v2073 = vunpack.c.h.b16 %v540
    %v2074 = vunpack.c.l.b16 %v541
    %v2075 = vunpack.c.h.b16 %v541
    %v2076 = vunpack.c.l.b16 %v542
    %v2077 = vunpack.c.h.b16 %v542
    %v2078 = vunpack.c.l.b16 %v543
    %v2079 = vunpack.c.h.b16 %v543
    %v2080 = vunpack.c.l.b16 %v544
    %v2081 = vunpack.c.h.b16 %v544
    %v2082 = vunpack.c.l.b16 %v545
    %v2083 = vunpack.c.h.b16 %v545
    %v2084 = vunpack.c.l.b16 %v546
    %v2085 = vunpack.c.h.b16 %v546
    %v2086 = vunpack.c.l.b16 %v547
    %v2087 = vunpack.c.h.b16 %v547
    %v2088 = vunpack.c.l.b16 %v548
    %v2089 = vunpack.c.h.b16 %v548
    %v2090 = vunpack.c.l.b16 %v549
    %v2091 = vunpack.c.h.b16 %v549
    %v2092 = vunpack.c.l.b16 %v550
    %v2093 = vunpack.c.h.b16 %v550
    %v2094 = vunpack.c.l.b16 %v551
    %v2095 = vunpack.c.h.b16 %v551
    %v2096 = vunpack.c.l.b16 %v552
    %v2097 = vunpack.c.h.b16 %v552
    %v2098 = vunpack.c.l.b16 %v553
    %v2099 = vunpack.c.h.b16 %v553
    %v2100 = vunpack.c.l.b16 %v554
    %v2101 = vunpack.c.h.b16 %v554
    %v2102 = vunpack.c.l.b16 %v555
    %v2103 = vunpack.c.h.b16 %v555
    %v2104 = vunpack.c.l.b16 %v556
    %v2105 = vunpack.c.h.b16 %v556
    %v2106 = vunpack.c.l.b16 %v557
    %v2107 = vunpack.c.h.b16 %v557
    %v2108 = vunpack.c.l.b16 %v558
    %v2109 = vunpack.c.h.b16 %v558
    %v2110 = vunpack.c.l.b16 %v559
    %v2111 = vunpack.c.h.b16 %v559
    %v2112 = vunpack.c.l.b16 %v560
    %v2113 = vunpack.c.h.b16 %v560
    %v2114 = vunpack.c.l.b16 %v561
    %v2115 = vunpack.c.h.b16 %v561
    %v2116 = vunpack.c.l.b16 %v562
    %v2117 = vunpack.c.h.b16 %v562
    %v2118 = vunpack.c.l.b16 %v563
    %v2119 = vunpack.c.h.b16 %v563
    %v2120 = vunpack.c.l.b16 %v564
    %v2121 = vunpack.c.h.b16 %v564
    %v2122 = vunpack.c.l.b16 %v565
    %v2123 = vunpack.c.h.b16 %v565
    %v2124 = vunpack.c.l.b16 %v566
    %v2125 = vunpack.c.h.b16 %v566
    %v2126 = vunpack.c.l.b16 %v567
    %v2127 = vunpack.c.h.b16 %v567
    %v2128 = vunpack.c.l.b16 %v568
    %v2129 = vunpack.c.h.b16 %v568
    %v2130 = vunpack.c.l.b16 %v569
    %v2131 = vunpack.c.h.b16 %v569
    %v2132 = vunpack.c.l.b16 %v570
    %v2133 = vunpack.c.h.b16 %v570
    %v2134 = vunpack.c.l.b16 %v571
    %v2135 = vunpack.c.h.b16 %v571
    %v2136 = vpack.c.b16 %v1120, %v1112
    %v2137 = vpack.c.b16 %v1121, %v1113
    %v2138 = vpack.c.b16 %v1122, %v1114
    %v2139 = vpack.c.b16 %v1123, %v1115
    %v2140 = vpack.c.b16 %v1124, %v1116
    %v2141 = vpack.c.b16 %v1125, %v1117
    %v2142 = vpack.c.b16 %v1126, %v1118
    %v2143 = vpack.c.b16 %v1127, %v1119
    %v2144 = vpack.c.b16 %v1136, %v1128
    %v2145 = vpack.c.b16 %v1137, %v1129
    %v2146 = vpack.c.b16 %v1138, %v1130
    %v2147 = vpack.c.b16 %v1139, %v1131
    %v2148 = vpack.c.b16 %v1140, %v1132
    %v2149 = vpack.c.b16 %v1141, %v1133
    %v2150 = vpack.c.b16 %v1142, %v1134
    %v2151 = vpack.c.b16 %v1143, %v1135
    %v2152 = vpack.c.b16 %v1152, %v1144
    %v2153 = vpack.c.b16 %v1153, %v1145
    %v2154 = vpack.c.b16 %v1154, %v1146
    %v2155 = vpack.c.b16 %v1155, %v1147
    %v2156 = vpack.c.b16 %v1156, %v1148
    %v2157 = vpack.c.b16 %v1157, %v1149
    %v2158 = vpack.c.b16 %v1158, %v1150
    %v2159 = vpack.c.b16 %v1159, %v1151
    %v2160 = vpack.c.b16 %v1168, %v1160
    %v2161 = vpack.c.b16 %v1169, %v1161
    %v2162 = vpack.c.b16 %v1170, %v1162
    %v2163 = vpack.c.b16 %v1171, %v1163
    %v2164 = vpack.c.b16 %v1172, %v1164
    %v2165 = vpack.c.b16 %v1173, %v1165
    %v2166 = vpack.c.b16 %v1174, %v1166
    %v2167 = vpack.c.b16 %v1175, %v1167
    %v2168 = vpack.c.b16 %v1184, %v1176
    %v2169 = vpack.c.b16 %v1185, %v1177
    %v2170 = vpack.c.b16 %v1186, %v1178
    %v2171 = vpack.c.b16 %v1187, %v1179
    %v2172 = vpack.c.b16 %v1188, %v1180
    %v2173 = vpack.c.b16 %v1189, %v1181
    %v2174 = vpack.c.b16 %v1190, %v1182
    %v2175 = vpack.c.b16 %v1191, %v1183
    %v2176 = vpack.c.b16 %v1200, %v1192
    %v2177 = vpack.c.b16 %v1201, %v1193
    %v2178 = vpack.c.b16 %v1202, %v1194
    %v2179 = vpack.c.b16 %v1203, %v1195
    %v2180 = vpack.c.b16 %v1204, %v1196
    %v2181 = vpack.c.b16 %v1205, %v1197
    %v2182 = vpack.c.b16 %v1206, %v1198
    %v2183 = vpack.c.b16 %v1207, %v1199
    %v2184 = vpack.c.b16 %v1216, %v1208
    %v2185 = vpack.c.b16 %v1217, %v1209
    %v2186 = vpack.c.b16 %v1218, %v1210
    %v2187 = vpack.c.b16 %v1219, %v1211
    %v2188 = vpack.c.b16 %v1220, %v1212
    %v2189 = vpack.c.b16 %v1221, %v1213
    %v2190 = vpack.c.b16 %v1222, %v1214
    %v2191 = vpack.c.b16 %v1223, %v1215
    %v2192 = vpack.c.b16 %v1232, %v1224
    %v2193 = vpack.c.b16 %v1233, %v1225
    %v2194 = vpack.c.b16 %v1234, %v1226
    %v2195 = vpack.c.b16 %v1235, %v1227
    %v2196 = vpack.c.b16 %v1236, %v1228
    %v2197 = vpack.c.b16 %v1237, %v1229
    %v2198 = vpack.c.b16 %v1238, %v1230
    %v2199 = vpack.c.b16 %v1239, %v1231
    %v2200 = vpack.c.b16 %v1248, %v1240
    %v2201 = vpack.c.b16 %v1249, %v1241
    %v2202 = vpack.c.b16 %v1250, %v1242
    %v2203 = vpack.c.b16 %v1251, %v1243
    %v2204 = vpack.c.b16 %v1252, %v1244
    %v2205 = vpack.c.b16 %v1253, %v1245
    %v2206 = vpack.c.b16 %v1254, %v1246
    %v2207 = vpack.c.b16 %v1255, %v1247
    %v2208 = vpack.c.b16 %v1264, %v1256
    %v2209 = vpack.c.b16 %v1265, %v1257
    %v2210 = vpack.c.b16 %v1266, %v1258
    %v2211 = vpack.c.b16 %v1267, %v1259
    %v2212 = vpack.c.b16 %v1268, %v1260
    %v2213 = vpack.c.b16 %v1269, %v1261
    %v2214 = vpack.c.b16 %v1270, %v1262
    %v2215 = vpack.c.b16 %v1271, %v1263
    %v2216 = vpack.c.b16 %v1280, %v1272
    %v2217 = vpack.c.b16 %v1281, %v1273
    %v2218 = vpack.c.b16 %v1282, %v1274
    %v2219 = vpack.c.b16 %v1283, %v1275
    %v2220 = vpack.c.b16 %v1284, %v1276
    %v2221 = vpack.c.b16 %v1285, %v1277
    %v2222 = vpack.c.b16 %v1286, %v1278
    %v2223 = vpack.c.b16 %v1287, %v1279
    %v2224 = vpack.c.b16 %v1296, %v1288
    %v2225 = vpack.c.b16 %v1297, %v1289
    %v2226 = vpack.c.b16 %v1298, %v1290
    %v2227 = vpack.c.b16 %v1299, %v1291
    %v2228 = vpack.c.b16 %v1300, %v1292
    %v2229 = vpack.c.b16 %v1301, %v1293
    %v2230 = vpack.c.b16 %v1302, %v1294
    %v2231 = vpack.c.b16 %v1303, %v1295
    %v2232 = vpack.c.b16 %v1312, %v1304
    %v2233 = vpack.c.b16 %v1313, %v1305
    %v2234 = vpack.c.b16 %v1314, %v1306
    %v2235 = vpack.c.b16 %v1315, %v1307
    %v2236 = vpack.c.b16 %v1316, %v1308
    %v2237 = vpack.c.b16 %v1317, %v1309
    %v2238 = vpack.c.b16 %v1318, %v1310
    %v2239 = vpack.c.b16 %v1319, %v1311
    %v2240 = vpack.c.b16 %v1328, %v1320
    %v2241 = vpack.c.b16 %v1329, %v1321
    %v2242 = vpack.c.b16 %v1330, %v1322
    %v2243 = vpack.c.b16 %v1331, %v1323
    %v2244 = vpack.c.b16 %v1332, %v1324
    %v2245 = vpack.c.b16 %v1333, %v1325
    %v2246 = vpack.c.b16 %v1334, %v1326
    %v2247 = vpack.c.b16 %v1335, %v1327
    %v2248 = vpack.c.b16 %v1344, %v1336
    %v2249 = vpack.c.b16 %v1345, %v1337
    %v2250 = vpack.c.b16 %v1346, %v1338
    %v2251 = vpack.c.b16 %v1347, %v1339
    %v2252 = vpack.c.b16 %v1348, %v1340
    %v2253 = vpack.c.b16 %v1349, %v1341
    %v2254 = vpack.c.b16 %v1350, %v1342
    %v2255 = vpack.c.b16 %v1351, %v1343
    %v2256 = vpack.c.b16 %v1360, %v1352
    %v2257 = vpack.c.b16 %v1361, %v1353
    %v2258 = vpack.c.b16 %v1362, %v1354
    %v2259 = vpack.c.b16 %v1363, %v1355
    %v2260 = vpack.c.b16 %v1364, %v1356
    %v2261 = vpack.c.b16 %v1365, %v1357
    %v2262 = vpack.c.b16 %v1366, %v1358
    %v2263 = vpack.c.b16 %v1367, %v1359
    %v2264 = vpack.c.b16 %v1376, %v1368
    %v2265 = vpack.c.b16 %v1377, %v1369
    %v2266 = vpack.c.b16 %v1378, %v1370
    %v2267 = vpack.c.b16 %v1379, %v1371
    %v2268 = vpack.c.b16 %v1380, %v1372
    %v2269 = vpack.c.b16 %v1381, %v1373
    %v2270 = vpack.c.b16 %v1382, %v1374
    %v2271 = vpack.c.b16 %v1383, %v1375
    %v2272 = vpack.c.b16 %v1392, %v1384
    %v2273 = vpack.c.b16 %v1393, %v1385
    %v2274 = vpack.c.b16 %v1394, %v1386
    %v2275 = vpack.c.b16 %v1395, %v1387
    %v2276 = vpack.c.b16 %v1396, %v1388
    %v2277 = vpack.c.b16 %v1397, %v1389
    %v2278 = vpack.c.b16 %v1398, %v1390
    %v2279 = vpack.c.b16 %v1399, %v1391
    %v2280 = vpack.c.b16 %v1408, %v1400
    %v2281 = vpack.c.b16 %v1409, %v1401
    %v2282 = vpack.c.b16 %v1410, %v1402
    %v2283 = vpack.c.b16 %v1411, %v1403
    %v2284 = vpack.c.b16 %v1412, %v1404
    %v2285 = vpack.c.b16 %v1413, %v1405
    %v2286 = vpack.c.b16 %v1414, %v1406
    %v2287 = vpack.c.b16 %v1415, %v1407
    %v2288 = vpack.c.b16 %v1424, %v1416
    %v2289 = vpack.c.b16 %v1425, %v1417
    %v2290 = vpack.c.b16 %v1426, %v1418
    %v2291 = vpack.c.b16 %v1427, %v1419
    %v2292 = vpack.c.b16 %v1428, %v1420
    %v2293 = vpack.c.b16 %v1429, %v1421
    %v2294 = vpack.c.b16 %v1430, %v1422
    %v2295 = vpack.c.b16 %v1431, %v1423
    %v2296 = vpack.c.b16 %v1440, %v1432
    %v2297 = vpack.c.b16 %v1441, %v1433
    %v2298 = vpack.c.b16 %v1442, %v1434
    %v2299 = vpack.c.b16 %v1443, %v1435
    %v2300 = vpack.c.b16 %v1444, %v1436
    %v2301 = vpack.c.b16 %v1445, %v1437
    %v2302 = vpack.c.b16 %v1446, %v1438
    %v2303 = vpack.c.b16 %v1447, %v1439
    %v2304 = vpack.c.b16 %v1456, %v1448
    %v2305 = vpack.c.b16 %v1457, %v1449
    %v2306 = vpack.c.b16 %v1458, %v1450
    %v2307 = vpack.c.b16 %v1459, %v1451
    %v2308 = vpack.c.b16 %v1460, %v1452
    %v2309 = vpack.c.b16 %v1461, %v1453
    %v2310 = vpack.c.b16 %v1462, %v1454
    %v2311 = vpack.c.b16 %v1463, %v1455
    %v2312 = vpack.c.b16 %v1472, %v1464
    %v2313 = vpack.c.b16 %v1473, %v1465
    %v2314 = vpack.c.b16 %v1474, %v1466
    %v2315 = vpack.c.b16 %v1475, %v1467
    %v2316 = vpack.c.b16 %v1476, %v1468
    %v2317 = vpack.c.b16 %v1477, %v1469
    %v2318 = vpack.c.b16 %v1478, %v1470
    %v2319 = vpack.c.b16 %v1479, %v1471
    %v2320 = vpack.c.b16 %v1488, %v1480
    %v2321 = vpack.c.b16 %v1489, %v1481
    %v2322 = vpack.c.b16 %v1490, %v1482
    %v2323 = vpack.c.b16 %v1491, %v1483
    %v2324 = vpack.c.b16 %v1492, %v1484
    %v2325 = vpack.c.b16 %v1493, %v1485
    %v2326 = vpack.c.b16 %v1494, %v1486
    %v2327 = vpack.c.b16 %v1495, %v1487
    %v2328 = vpack.c.b16 %v1504, %v1496
    %v2329 = vpack.c.b16 %v1505, %v1497
    %v2330 = vpack.c.b16 %v1506, %v1498
    %v2331 = vpack.c.b16 %v1507, %v1499
    %v2332 = vpack.c.b16 %v1508, %v1500
    %v2333 = vpack.c.b16 %v1509, %v1501
    %v2334 = vpack.c.b16 %v1510, %v1502
    %v2335 = vpack.c.b16 %v1511, %v1503
    %v2336 = vpack.c.b16 %v1520, %v1512
    %v2337 = vpack.c.b16 %v1521, %v1513
    %v2338 = vpack.c.b16 %v1522, %v1514
    %v2339 = vpack.c.b16 %v1523, %v1515
    %v2340 = vpack.c.b16 %v1524, %v1516
    %v2341 = vpack.c.b16 %v1525, %v1517
    %v2342 = vpack.c.b16 %v1526, %v1518
    %v2343 = vpack.c.b16 %v1527, %v1519
    %v2344 = vpack.c.b16 %v1536, %v1528
    %v2345 = vpack.c.b16 %v1537, %v1529
    %v2346 = vpack.c.b16 %v1538, %v1530
    %v2347 = vpack.c.b16 %v1539, %v1531
    %v2348 = vpack.c.b16 %v1540, %v1532
    %v2349 = vpack.c.b16 %v1541, %v1533
    %v2350 = vpack.c.b16 %v1542, %v1534
    %v2351 = vpack.c.b16 %v1543, %v1535
    %v2352 = vpack.c.b16 %v1552, %v1544
    %v2353 = vpack.c.b16 %v1553, %v1545
    %v2354 = vpack.c.b16 %v1554, %v1546
    %v2355 = vpack.c.b16 %v1555, %v1547
    %v2356 = vpack.c.b16 %v1556, %v1548
    %v2357 = vpack.c.b16 %v1557, %v1549
    %v2358 = vpack.c.b16 %v1558, %v1550
    %v2359 = vpack.c.b16 %v1559, %v1551
    %v2360 = vpack.c.b16 %v1568, %v1560
    %v2361 = vpack.c.b16 %v1569, %v1561
    %v2362 = vpack.c.b16 %v1570, %v1562
    %v2363 = vpack.c.b16 %v1571, %v1563
    %v2364 = vpack.c.b16 %v1572, %v1564
    %v2365 = vpack.c.b16 %v1573, %v1565
    %v2366 = vpack.c.b16 %v1574, %v1566
    %v2367 = vpack.c.b16 %v1575, %v1567
    %v2368 = vpack.c.b16 %v1584, %v1576
    %v2369 = vpack.c.b16 %v1585, %v1577
    %v2370 = vpack.c.b16 %v1586, %v1578
    %v2371 = vpack.c.b16 %v1587, %v1579
    %v2372 = vpack.c.b16 %v1588, %v1580
    %v2373 = vpack.c.b16 %v1589, %v1581
    %v2374 = vpack.c.b16 %v1590, %v1582
    %v2375 = vpack.c.b16 %v1591, %v1583
    %v2376 = vpack.c.b16 %v1600, %v1592
    %v2377 = vpack.c.b16 %v1601, %v1593
    %v2378 = vpack.c.b16 %v1602, %v1594
    %v2379 = vpack.c.b16 %v1603, %v1595
    %v2380 = vpack.c.b16 %v1604, %v1596
    %v2381 = vpack.c.b16 %v1605, %v1597
    %v2382 = vpack.c.b16 %v1606, %v1598
    %v2383 = vpack.c.b16 %v1607, %v1599
    %v2384 = vpack.c.b16 %v1616, %v1608
    %v2385 = vpack.c.b16 %v1617, %v1609
    %v2386 = vpack.c.b16 %v1618, %v1610
    %v2387 = vpack.c.b16 %v1619, %v1611
    %v2388 = vpack.c.b16 %v1620, %v1612
    %v2389 = vpack.c.b16 %v1621, %v1613
    %v2390 = vpack.c.b16 %v1622, %v1614
    %v2391 = vpack.c.b16 %v1623, %v1615
    %v2392 = vpack.c.b16 %v1632, %v1624
    %v2393 = vpack.c.b16 %v1633, %v1625
    %v2394 = vpack.c.b16 %v1634, %v1626
    %v2395 = vpack.c.b16 %v1635, %v1627
    %v2396 = vpack.c.b16 %v1636, %v1628
    %v2397 = vpack.c.b16 %v1637, %v1629
    %v2398 = vpack.c.b16 %v1638, %v1630
    %v2399 = vpack.c.b16 %v1639, %v1631
    %v2400 = vpack.c.b16 %v1648, %v1640
    %v2401 = vpack.c.b16 %v1649, %v1641
    %v2402 = vpack.c.b16 %v1650, %v1642
    %v2403 = vpack.c.b16 %v1651, %v1643
    %v2404 = vpack.c.b16 %v1652, %v1644
    %v2405 = vpack.c.b16 %v1653, %v1645
    %v2406 = vpack.c.b16 %v1654, %v1646
    %v2407 = vpack.c.b16 %v1655, %v1647
    %v2408 = vpack.c.b16 %v1664, %v1656
    %v2409 = vpack.c.b16 %v1665, %v1657
    %v2410 = vpack.c.b16 %v1666, %v1658
    %v2411 = vpack.c.b16 %v1667, %v1659
    %v2412 = vpack.c.b16 %v1668, %v1660
    %v2413 = vpack.c.b16 %v1669, %v1661
    %v2414 = vpack.c.b16 %v1670, %v1662
    %v2415 = vpack.c.b16 %v1671, %v1663
    %v2416 = vpack.c.b16 %v1680, %v1672
    %v2417 = vpack.c.b16 %v1681, %v1673
    %v2418 = vpack.c.b16 %v1682, %v1674
    %v2419 = vpack.c.b16 %v1683, %v1675
    %v2420 = vpack.c.b16 %v1684, %v1676
    %v2421 = vpack.c.b16 %v1685, %v1677
    %v2422 = vpack.c.b16 %v1686, %v1678
    %v2423 = vpack.c.b16 %v1687, %v1679
    %v2424 = vpack.c.b16 %v1696, %v1688
    %v2425 = vpack.c.b16 %v1697, %v1689
    %v2426 = vpack.c.b16 %v1698, %v1690
    %v2427 = vpack.c.b16 %v1699, %v1691
    %v2428 = vpack.c.b16 %v1700, %v1692
    %v2429 = vpack.c.b16 %v1701, %v1693
    %v2430 = vpack.c.b16 %v1702, %v1694
    %v2431 = vpack.c.b16 %v1703, %v1695
    %v2432 = vpack.c.b16 %v1712, %v1704
    %v2433 = vpack.c.b16 %v1713, %v1705
    %v2434 = vpack.c.b16 %v1714, %v1706
    %v2435 = vpack.c.b16 %v1715, %v1707
    %v2436 = vpack.c.b16 %v1716, %v1708
    %v2437 = vpack.c.b16 %v1717, %v1709
    %v2438 = vpack.c.b16 %v1718, %v1710
    %v2439 = vpack.c.b16 %v1719, %v1711
    %v2440 = vpack.c.b16 %v1728, %v1720
    %v2441 = vpack.c.b16 %v1729, %v1721
    %v2442 = vpack.c.b16 %v1730, %v1722
    %v2443 = vpack.c.b16 %v1731, %v1723
    %v2444 = vpack.c.b16 %v1732, %v1724
    %v2445 = vpack.c.b16 %v1733, %v1725
    %v2446 = vpack.c.b16 %v1734, %v1726
    %v2447 = vpack.c.b16 %v1735, %v1727
    %v2448 = vpack.c.b16 %v1744, %v1736
    %v2449 = vpack.c.b16 %v1745, %v1737
    %v2450 = vpack.c.b16 %v1746, %v1738
    %v2451 = vpack.c.b16 %v1747, %v1739
    %v2452 = vpack.c.b16 %v1748, %v1740
    %v2453 = vpack.c.b16 %v1749, %v1741
    %v2454 = vpack.c.b16 %v1750, %v1742
    %v2455 = vpack.c.b16 %v1751, %v1743
    %v2456 = vpack.c.b16 %v1760, %v1752
    %v2457 = vpack.c.b16 %v1761, %v1753
    %v2458 = vpack.c.b16 %v1762, %v1754
    %v2459 = vpack.c.b16 %v1763, %v1755
    %v2460 = vpack.c.b16 %v1764, %v1756
    %v2461 = vpack.c.b16 %v1765, %v1757
    %v2462 = vpack.c.b16 %v1766, %v1758
    %v2463 = vpack.c.b16 %v1767, %v1759
    %v2464 = vpack.c.b16 %v1776, %v1768
    %v2465 = vpack.c.b16 %v1777, %v1769
    %v2466 = vpack.c.b16 %v1778, %v1770
    %v2467 = vpack.c.b16 %v1779, %v1771
    %v2468 = vpack.c.b16 %v1780, %v1772
    %v2469 = vpack.c.b16 %v1781, %v1773
    %v2470 = vpack.c.b16 %v1782, %v1774
    %v2471 = vpack.c.b16 %v1783, %v1775
    %v2472 = vpack.c.b16 %v1792, %v1784
    %v2473 = vpack.c.b16 %v1793, %v1785
    %v2474 = vpack.c.b16 %v1794, %v1786
    %v2475 = vpack.c.b16 %v1795, %v1787
    %v2476 = vpack.c.b16 %v1796, %v1788
    %v2477 = vpack.c.b16 %v1797, %v1789
    %v2478 = vpack.c.b16 %v1798, %v1790
    %v2479 = vpack.c.b16 %v1799, %v1791
    %v2480 = vpack.c.b16 %v1808, %v1800
    %v2481 = vpack.c.b16 %v1809, %v1801
    %v2482 = vpack.c.b16 %v1810, %v1802
    %v2483 = vpack.c.b16 %v1811, %v1803
    %v2484 = vpack.c.b16 %v1812, %v1804
    %v2485 = vpack.c.b16 %v1813, %v1805
    %v2486 = vpack.c.b16 %v1814, %v1806
    %v2487 = vpack.c.b16 %v1815, %v1807
    %v2488 = vpack.c.b16 %v1824, %v1816
    %v2489 = vpack.c.b16 %v1825, %v1817
    %v2490 = vpack.c.b16 %v1826, %v1818
    %v2491 = vpack.c.b16 %v1827, %v1819
    %v2492 = vpack.c.b16 %v1828, %v1820
    %v2493 = vpack.c.b16 %v1829, %v1821
    %v2494 = vpack.c.b16 %v1830, %v1822
    %v2495 = vpack.c.b16 %v1831, %v1823
    %v2496 = vpack.c.b16 %v1840, %v1832
    %v2497 = vpack.c.b16 %v1841, %v1833
    %v2498 = vpack.c.b16 %v1842, %v1834
    %v2499 = vpack.c.b16 %v1843, %v1835
    %v2500 = vpack.c.b16 %v1844, %v1836
    %v2501 = vpack.c.b16 %v1845, %v1837
    %v2502 = vpack.c.b16 %v1846, %v1838
    %v2503 = vpack.c.b16 %v1847, %v1839
    %v2504 = vpack.c.b16 %v1856, %v1848
    %v2505 = vpack.c.b16 %v1857, %v1849
    %v2506 = vpack.c.b16 %v1858, %v1850
    %v2507 = vpack.c.b16 %v1859, %v1851
    %v2508 = vpack.c.b16 %v1860, %v1852
    %v2509 = vpack.c.b16 %v1861, %v1853
    %v2510 = vpack.c.b16 %v1862, %v1854
    %v2511 = vpack.c.b16 %v1863, %v1855
    %v2512 = vpack.c.b16 %v1872, %v1864
    %v2513 = vpack.c.b16 %v1873, %v1865
    %v2514 = vpack.c.b16 %v1874, %v1866
    %v2515 = vpack.c.b16 %v1875, %v1867
    %v2516 = vpack.c.b16 %v1876, %v1868
    %v2517 = vpack.c.b16 %v1877, %v1869
    %v2518 = vpack.c.b16 %v1878, %v1870
    %v2519 = vpack.c.b16 %v1879, %v1871
    %v2520 = vpack.c.b16 %v1888, %v1880
    %v2521 = vpack.c.b16 %v1889, %v1881
    %v2522 = vpack.c.b16 %v1890, %v1882
    %v2523 = vpack.c.b16 %v1891, %v1883
    %v2524 = vpack.c.b16 %v1892, %v1884
    %v2525 = vpack.c.b16 %v1893, %v1885
    %v2526 = vpack.c.b16 %v1894, %v1886
    %v2527 = vpack.c.b16 %v1895, %v1887
    %v2528 = vpack.c.b16 %v1904, %v1896
    %v2529 = vpack.c.b16 %v1905, %v1897
    %v2530 = vpack.c.b16 %v1906, %v1898
    %v2531 = vpack.c.b16 %v1907, %v1899
    %v2532 = vpack.c.b16 %v1908, %v1900
    %v2533 = vpack.c.b16 %v1909, %v1901
    %v2534 = vpack.c.b16 %v1910, %v1902
    %v2535 = vpack.c.b16 %v1911, %v1903
    %v2536 = vpack.c.b16 %v1920, %v1912
    %v2537 = vpack.c.b16 %v1921, %v1913
    %v2538 = vpack.c.b16 %v1922, %v1914
    %v2539 = vpack.c.b16 %v1923, %v1915
    %v2540 = vpack.c.b16 %v1924, %v1916
    %v2541 = vpack.c.b16 %v1925, %v1917
    %v2542 = vpack.c.b16 %v1926, %v1918
    %v2543 = vpack.c.b16 %v1927, %v1919
    %v2544 = vpack.c.b16 %v1936, %v1928
    %v2545 = vpack.c.b16 %v1937, %v1929
    %v2546 = vpack.c.b16 %v1938, %v1930
    %v2547 = vpack.c.b16 %v1939, %v1931
    %v2548 = vpack.c.b16 %v1940, %v1932
    %v2549 = vpack.c.b16 %v1941, %v1933
    %v2550 = vpack.c.b16 %v1942, %v1934
    %v2551 = vpack.c.b16 %v1943, %v1935
    %v2552 = vpack.c.b16 %v1952, %v1944
    %v2553 = vpack.c.b16 %v1953, %v1945
    %v2554 = vpack.c.b16 %v1954, %v1946
    %v2555 = vpack.c.b16 %v1955, %v1947
    %v2556 = vpack.c.b16 %v1956, %v1948
    %v2557 = vpack.c.b16 %v1957, %v1949
    %v2558 = vpack.c.b16 %v1958, %v1950
    %v2559 = vpack.c.b16 %v1959, %v1951
    %v2560 = vpack.c.b16 %v1968, %v1960
    %v2561 = vpack.c.b16 %v1969, %v1961
    %v2562 = vpack.c.b16 %v1970, %v1962
    %v2563 = vpack.c.b16 %v1971, %v1963
    %v2564 = vpack.c.b16 %v1972, %v1964
    %v2565 = vpack.c.b16 %v1973, %v1965
    %v2566 = vpack.c.b16 %v1974, %v1966
    %v2567 = vpack.c.b16 %v1975, %v1967
    %v2568 = vpack.c.b16 %v1984, %v1976
    %v2569 = vpack.c.b16 %v1985, %v1977
    %v2570 = vpack.c.b16 %v1986, %v1978
    %v2571 = vpack.c.b16 %v1987, %v1979
    %v2572 = vpack.c.b16 %v1988, %v1980
    %v2573 = vpack.c.b16 %v1989, %v1981
    %v2574 = vpack.c.b16 %v1990, %v1982
    %v2575 = vpack.c.b16 %v1991, %v1983
    %v2576 = vpack.c.b16 %v2000, %v1992
    %v2577 = vpack.c.b16 %v2001, %v1993
    %v2578 = vpack.c.b16 %v2002, %v1994
    %v2579 = vpack.c.b16 %v2003, %v1995
    %v2580 = vpack.c.b16 %v2004, %v1996
    %v2581 = vpack.c.b16 %v2005, %v1997
    %v2582 = vpack.c.b16 %v2006, %v1998
    %v2583 = vpack.c.b16 %v2007, %v1999
    %v2584 = vpack.c.b16 %v2016, %v2008
    %v2585 = vpack.c.b16 %v2017, %v2009
    %v2586 = vpack.c.b16 %v2018, %v2010
    %v2587 = vpack.c.b16 %v2019, %v2011
    %v2588 = vpack.c.b16 %v2020, %v2012
    %v2589 = vpack.c.b16 %v2021, %v2013
    %v2590 = vpack.c.b16 %v2022, %v2014
    %v2591 = vpack.c.b16 %v2023, %v2015
    %v2592 = vpack.c.b16 %v2032, %v2024
    %v2593 = vpack.c.b16 %v2033, %v2025
    %v2594 = vpack.c.b16 %v2034, %v2026
    %v2595 = vpack.c.b16 %v2035, %v2027
    %v2596 = vpack.c.b16 %v2036, %v2028
    %v2597 = vpack.c.b16 %v2037, %v2029
    %v2598 = vpack.c.b16 %v2038, %v2030
    %v2599 = vpack.c.b16 %v2039, %v2031
    %v2600 = vpack.c.b16 %v2048, %v2040
    %v2601 = vpack.c.b16 %v2049, %v2041
    %v2602 = vpack.c.b16 %v2050, %v2042
    %v2603 = vpack.c.b16 %v2051, %v2043
    %v2604 = vpack.c.b16 %v2052, %v2044
    %v2605 = vpack.c.b16 %v2053, %v2045
    %v2606 = vpack.c.b16 %v2054, %v2046
    %v2607 = vpack.c.b16 %v2055, %v2047
    %v2608 = vpack.c.b16 %v2064, %v2056
    %v2609 = vpack.c.b16 %v2065, %v2057
    %v2610 = vpack.c.b16 %v2066, %v2058
    %v2611 = vpack.c.b16 %v2067, %v2059
    %v2612 = vpack.c.b16 %v2068, %v2060
    %v2613 = vpack.c.b16 %v2069, %v2061
    %v2614 = vpack.c.b16 %v2070, %v2062
    %v2615 = vpack.c.b16 %v2071, %v2063
    %v2616 = vpack.c.b16 %v2080, %v2072
    %v2617 = vpack.c.b16 %v2081, %v2073
    %v2618 = vpack.c.b16 %v2082, %v2074
    %v2619 = vpack.c.b16 %v2083, %v2075
    %v2620 = vpack.c.b16 %v2084, %v2076
    %v2621 = vpack.c.b16 %v2085, %v2077
    %v2622 = vpack.c.b16 %v2086, %v2078
    %v2623 = vpack.c.b16 %v2087, %v2079
    %v2624 = vpack.c.b16 %v2096, %v2088
    %v2625 = vpack.c.b16 %v2097, %v2089
    %v2626 = vpack.c.b16 %v2098, %v2090
    %v2627 = vpack.c.b16 %v2099, %v2091
    %v2628 = vpack.c.b16 %v2100, %v2092
    %v2629 = vpack.c.b16 %v2101, %v2093
    %v2630 = vpack.c.b16 %v2102, %v2094
    %v2631 = vpack.c.b16 %v2103, %v2095
    %v2632 = vpack.c.b16 %v2112, %v2104
    %v2633 = vpack.c.b16 %v2113, %v2105
    %v2634 = vpack.c.b16 %v2114, %v2106
    %v2635 = vpack.c.b16 %v2115, %v2107
    %v2636 = vpack.c.b16 %v2116, %v2108
    %v2637 = vpack.c.b16 %v2117, %v2109
    %v2638 = vpack.c.b16 %v2118, %v2110
    %v2639 = vpack.c.b16 %v2119, %v2111
    %v2640 = vpack.c.b16 %v2128, %v2120
    %v2641 = vpack.c.b16 %v2129, %v2121
    %v2642 = vpack.c.b16 %v2130, %v2122
    %v2643 = vpack.c.b16 %v2131, %v2123
    %v2644 = vpack.c.b16 %v2132, %v2124
    %v2645 = vpack.c.b16 %v2133, %v2125
    %v2646 = vpack.c.b16 %v2134, %v2126
    %v2647 = vpack.c.b16 %v2135, %v2127
    %3160 = vmatprep.subr.bf16.mxu0 %v2193
    %3161 = vmatpush1.bf16.msra.mxu0 %v2192
    %3162 = vmatprep.subr.bf16.mxu0 %v2185
    %3163 = vmatpush1.bf16.msra.mxu0 %v2184
    %3164 = vmatprep.subr.bf16.mxu0 %v2177
    %3165 = vmatpush1.bf16.msra.mxu0 %v2176
    %3166 = vmatprep.subr.bf16.mxu0 %v2169
    %3167 = vmatpush1.bf16.msra.mxu0 %v2168
    %3168 = vmatprep.subr.bf16.mxu0 %v2161
    %3169 = vmatpush1.bf16.msra.mxu0 %v2160
    %3170 = vmatprep.subr.bf16.mxu0 %v2153
    %3171 = vmatpush1.bf16.msra.mxu0 %v2152
    %3172 = vmatprep.subr.bf16.mxu0 %v2145
    %3173 = vmatpush1.bf16.msra.mxu0 %v2144
    %3174 = vmatprep.subr.bf16.mxu0 %v2137
    %3175 = vmatpush1.bf16.msra.mxu0 %v2136
    %3176 = vmatprep.subr.bf16.mxu0 %v2257
    %3177 = vmatpush2.bf16.msra.mxu0 %v2256
    %3178 = vmatprep.subr.bf16.mxu0 %v2249
    %3179 = vmatpush2.bf16.msra.mxu0 %v2248
    %3180 = vmatprep.subr.bf16.mxu0 %v2241
    %3181 = vmatpush2.bf16.msra.mxu0 %v2240
    %3182 = vmatprep.subr.bf16.mxu0 %v2233
    %3183 = vmatpush2.bf16.msra.mxu0 %v2232
    %3184 = vmatprep.subr.bf16.mxu0 %v2225
    %3185 = vmatpush2.bf16.msra.mxu0 %v2224
    %3186 = vmatprep.subr.bf16.mxu0 %v2217
    %3187 = vmatpush2.bf16.msra.mxu0 %v2216
    %3188 = vmatprep.subr.bf16.mxu0 %v2209
    %3189 = vmatpush2.bf16.msra.mxu0 %v2208
    %3190 = vmatprep.subr.bf16.mxu0 %v2201
    %3191 = vmatpush2.bf16.msra.mxu0 %v2200
    %3192 = vmatprep.mubr.bf16.mxu0 %v585
    %3193 = vmatmul.mubr.bf16.gmra.mxu0 %v584
    %v3194 = vpop.f32.mrf.mxu0
    %v3195 = vadd.f32 0.0, %v3194
    %v3196 = vpop.f32.mrf.mxu0
    %v3197 = vadd.f32 0.0, %v3196
    %v3198 = vpop.f32.mrf.mxu0
    %v3199 = vpop.f32.mrf.mxu0
    %3200 = vdwg.mxu0
    %3201 = vmatprep.subr.bf16.mxu0 %v2321
    %3202 = vmatpush1.bf16.msra.mxu0 %v2320
    %3203 = vmatprep.subr.bf16.mxu0 %v2313
    %3204 = vmatpush1.bf16.msra.mxu0 %v2312
    %3205 = vmatprep.subr.bf16.mxu0 %v2305
    %3206 = vmatpush1.bf16.msra.mxu0 %v2304
    %3207 = vmatprep.subr.bf16.mxu0 %v2297
    %3208 = vmatpush1.bf16.msra.mxu0 %v2296
    %3209 = vmatprep.subr.bf16.mxu0 %v2289
    %3210 = vmatpush1.bf16.msra.mxu0 %v2288
    %3211 = vmatprep.subr.bf16.mxu0 %v2281
    %3212 = vmatpush1.bf16.msra.mxu0 %v2280
    %3213 = vmatprep.subr.bf16.mxu0 %v2273
    %3214 = vmatpush1.bf16.msra.mxu0 %v2272
    %3215 = vmatprep.subr.bf16.mxu0 %v2265
    %3216 = vmatpush1.bf16.msra.mxu0 %v2264
    %3217 = vmatprep.subr.bf16.mxu0 %v2385
    %3218 = vmatpush2.bf16.msra.mxu0 %v2384
    %3219 = vmatprep.subr.bf16.mxu0 %v2377
    %3220 = vmatpush2.bf16.msra.mxu0 %v2376
    %3221 = vmatprep.subr.bf16.mxu0 %v2369
    %3222 = vmatpush2.bf16.msra.mxu0 %v2368
    %3223 = vmatprep.subr.bf16.mxu0 %v2361
    %3224 = vmatpush2.bf16.msra.mxu0 %v2360
    %3225 = vmatprep.subr.bf16.mxu0 %v2353
    %3226 = vmatpush2.bf16.msra.mxu0 %v2352
    %3227 = vmatprep.subr.bf16.mxu0 %v2345
    %3228 = vmatpush2.bf16.msra.mxu0 %v2344
    %3229 = vmatprep.subr.bf16.mxu0 %v2337
    %3230 = vmatpush2.bf16.msra.mxu0 %v2336
    %3231 = vmatprep.subr.bf16.mxu0 %v2329
    %3232 = vmatpush2.bf16.msra.mxu0 %v2328
    %3233 = vmatprep.mubr.bf16.mxu0 %v587
    %3234 = vmatmul.mubr.bf16.gmra.mxu0 %v586
    %v3235 = vpop.f32.mrf.mxu0
    %v3236 = vadd.f32 %v3195, %v3235
    %v3237 = vpop.f32.mrf.mxu0
    %v3238 = vadd.f32 %v3197, %v3237
    %v3239 = vpop.f32.mrf.mxu0
    %v3240 = vpop.f32.mrf.mxu0
    %3241 = vdwg.mxu0
    %3242 = vmatprep.subr.bf16.mxu0 %v2449
    %3243 = vmatpush1.bf16.msra.mxu0 %v2448
    %3244 = vmatprep.subr.bf16.mxu0 %v2441
    %3245 = vmatpush1.bf16.msra.mxu0 %v2440
    %3246 = vmatprep.subr.bf16.mxu0 %v2433
    %3247 = vmatpush1.bf16.msra.mxu0 %v2432
    %3248 = vmatprep.subr.bf16.mxu0 %v2425
    %3249 = vmatpush1.bf16.msra.mxu0 %v2424
    %3250 = vmatprep.subr.bf16.mxu0 %v2417
    %3251 = vmatpush1.bf16.msra.mxu0 %v2416
    %3252 = vmatprep.subr.bf16.mxu0 %v2409
    %3253 = vmatpush1.bf16.msra.mxu0 %v2408
    %3254 = vmatprep.subr.bf16.mxu0 %v2401
    %3255 = vmatpush1.bf16.msra.mxu0 %v2400
    %3256 = vmatprep.subr.bf16.mxu0 %v2393
    %3257 = vmatpush1.bf16.msra.mxu0 %v2392
    %3258 = vmatprep.subr.bf16.mxu0 %v2513
    %3259 = vmatpush2.bf16.msra.mxu0 %v2512
    %3260 = vmatprep.subr.bf16.mxu0 %v2505
    %3261 = vmatpush2.bf16.msra.mxu0 %v2504
    %3262 = vmatprep.subr.bf16.mxu0 %v2497
    %3263 = vmatpush2.bf16.msra.mxu0 %v2496
    %3264 = vmatprep.subr.bf16.mxu0 %v2489
    %3265 = vmatpush2.bf16.msra.mxu0 %v2488
    %3266 = vmatprep.subr.bf16.mxu0 %v2481
    %3267 = vmatpush2.bf16.msra.mxu0 %v2480
    %3268 = vmatprep.subr.bf16.mxu0 %v2473
    %3269 = vmatpush2.bf16.msra.mxu0 %v2472
    %3270 = vmatprep.subr.bf16.mxu0 %v2465
    %3271 = vmatpush2.bf16.msra.mxu0 %v2464
    %3272 = vmatprep.subr.bf16.mxu0 %v2457
    %3273 = vmatpush2.bf16.msra.mxu0 %v2456
    %3274 = vmatprep.mubr.bf16.mxu0 %v589
    %3275 = vmatmul.mubr.bf16.gmra.mxu0 %v588
    %v3276 = vpop.f32.mrf.mxu0
    %v3277 = vadd.f32 %v3236, %v3276
    %v3278 = vpop.f32.mrf.mxu0
    %v3279 = vadd.f32 %v3238, %v3278
    %v3280 = vpop.f32.mrf.mxu0
    %v3281 = vpop.f32.mrf.mxu0
    %3282 = vdwg.mxu0
    %3283 = vmatprep.subr.bf16.mxu0 %v2577
    %3284 = vmatpush1.bf16.msra.mxu0 %v2576
    %3285 = vmatprep.subr.bf16.mxu0 %v2569
    %3286 = vmatpush1.bf16.msra.mxu0 %v2568
    %3287 = vmatprep.subr.bf16.mxu0 %v2561
    %3288 = vmatpush1.bf16.msra.mxu0 %v2560
    %3289 = vmatprep.subr.bf16.mxu0 %v2553
    %3290 = vmatpush1.bf16.msra.mxu0 %v2552
    %3291 = vmatprep.subr.bf16.mxu0 %v2545
    %3292 = vmatpush1.bf16.msra.mxu0 %v2544
    %3293 = vmatprep.subr.bf16.mxu0 %v2537
    %3294 = vmatpush1.bf16.msra.mxu0 %v2536
    %3295 = vmatprep.subr.bf16.mxu0 %v2529
    %3296 = vmatpush1.bf16.msra.mxu0 %v2528
    %3297 = vmatprep.subr.bf16.mxu0 %v2521
    %3298 = vmatpush1.bf16.msra.mxu0 %v2520
    %3299 = vmatprep.subr.bf16.mxu0 %v2641
    %3300 = vmatpush2.bf16.msra.mxu0 %v2640
    %3301 = vmatprep.subr.bf16.mxu0 %v2633
    %3302 = vmatpush2.bf16.msra.mxu0 %v2632
    %3303 = vmatprep.subr.bf16.mxu0 %v2625
    %3304 = vmatpush2.bf16.msra.mxu0 %v2624
    %3305 = vmatprep.subr.bf16.mxu0 %v2617
    %3306 = vmatpush2.bf16.msra.mxu0 %v2616
    %3307 = vmatprep.subr.bf16.mxu0 %v2609
    %3308 = vmatpush2.bf16.msra.mxu0 %v2608
    %3309 = vmatprep.subr.bf16.mxu0 %v2601
    %3310 = vmatpush2.bf16.msra.mxu0 %v2600
    %3311 = vmatprep.subr.bf16.mxu0 %v2593
    %3312 = vmatpush2.bf16.msra.mxu0 %v2592
    %3313 = vmatprep.subr.bf16.mxu0 %v2585
    %3314 = vmatpush2.bf16.msra.mxu0 %v2584
    %3315 = vmatprep.mubr.bf16.mxu0 %v591
    %3316 = vmatmul.mubr.bf16.gmra.mxu0 %v590
    %v3317 = vpop.f32.mrf.mxu0
    %v3318 = vadd.f32 %v3277, %v3317
    %v3319 = vpop.f32.mrf.mxu0
    %v3320 = vadd.f32 %v3279, %v3319
    %v3321 = vpop.f32.mrf.mxu0
    %v3322 = vpop.f32.mrf.mxu0
    %3323 = vdwg.mxu0
    %3324 = vmatprep.subr.bf16.mxu0 %v2195
    %3325 = vmatpush1.bf16.msra.mxu0 %v2194
    %3326 = vmatprep.subr.bf16.mxu0 %v2187
    %3327 = vmatpush1.bf16.msra.mxu0 %v2186
    %3328 = vmatprep.subr.bf16.mxu0 %v2179
    %3329 = vmatpush1.bf16.msra.mxu0 %v2178
    %3330 = vmatprep.subr.bf16.mxu0 %v2171
    %3331 = vmatpush1.bf16.msra.mxu0 %v2170
    %3332 = vmatprep.subr.bf16.mxu0 %v2163
    %3333 = vmatpush1.bf16.msra.mxu0 %v2162
    %3334 = vmatprep.subr.bf16.mxu0 %v2155
    %3335 = vmatpush1.bf16.msra.mxu0 %v2154
    %3336 = vmatprep.subr.bf16.mxu0 %v2147
    %3337 = vmatpush1.bf16.msra.mxu0 %v2146
    %3338 = vmatprep.subr.bf16.mxu0 %v2139
    %3339 = vmatpush1.bf16.msra.mxu0 %v2138
    %3340 = vmatprep.subr.bf16.mxu0 %v2259
    %3341 = vmatpush2.bf16.msra.mxu0 %v2258
    %3342 = vmatprep.subr.bf16.mxu0 %v2251
    %3343 = vmatpush2.bf16.msra.mxu0 %v2250
    %3344 = vmatprep.subr.bf16.mxu0 %v2243
    %3345 = vmatpush2.bf16.msra.mxu0 %v2242
    %3346 = vmatprep.subr.bf16.mxu0 %v2235
    %3347 = vmatpush2.bf16.msra.mxu0 %v2234
    %3348 = vmatprep.subr.bf16.mxu0 %v2227
    %3349 = vmatpush2.bf16.msra.mxu0 %v2226
    %3350 = vmatprep.subr.bf16.mxu0 %v2219
    %3351 = vmatpush2.bf16.msra.mxu0 %v2218
    %3352 = vmatprep.subr.bf16.mxu0 %v2211
    %3353 = vmatpush2.bf16.msra.mxu0 %v2210
    %3354 = vmatprep.subr.bf16.mxu0 %v2203
    %3355 = vmatpush2.bf16.msra.mxu0 %v2202
    %3356 = vmatprep.mubr.bf16.mxu0 %v585
    %3357 = vmatmul.mubr.bf16.gmra.mxu0 %v584
    %v3358 = vpop.f32.mrf.mxu0
    %v3359 = vadd.f32 0.0, %v3358
    %v3360 = vpop.f32.mrf.mxu0
    %v3361 = vadd.f32 0.0, %v3360
    %v3362 = vpop.f32.mrf.mxu0
    %v3363 = vpop.f32.mrf.mxu0
    %3364 = vdwg.mxu0
    %3365 = vmatprep.subr.bf16.mxu0 %v2323
    %3366 = vmatpush1.bf16.msra.mxu0 %v2322
    %3367 = vmatprep.subr.bf16.mxu0 %v2315
    %3368 = vmatpush1.bf16.msra.mxu0 %v2314
    %3369 = vmatprep.subr.bf16.mxu0 %v2307
    %3370 = vmatpush1.bf16.msra.mxu0 %v2306
    %3371 = vmatprep.subr.bf16.mxu0 %v2299
    %3372 = vmatpush1.bf16.msra.mxu0 %v2298
    %3373 = vmatprep.subr.bf16.mxu0 %v2291
    %3374 = vmatpush1.bf16.msra.mxu0 %v2290
    %3375 = vmatprep.subr.bf16.mxu0 %v2283
    %3376 = vmatpush1.bf16.msra.mxu0 %v2282
    %3377 = vmatprep.subr.bf16.mxu0 %v2275
    %3378 = vmatpush1.bf16.msra.mxu0 %v2274
    %3379 = vmatprep.subr.bf16.mxu0 %v2267
    %3380 = vmatpush1.bf16.msra.mxu0 %v2266
    %3381 = vmatprep.subr.bf16.mxu0 %v2387
    %3382 = vmatpush2.bf16.msra.mxu0 %v2386
    %3383 = vmatprep.subr.bf16.mxu0 %v2379
    %3384 = vmatpush2.bf16.msra.mxu0 %v2378
    %3385 = vmatprep.subr.bf16.mxu0 %v2371
    %3386 = vmatpush2.bf16.msra.mxu0 %v2370
    %3387 = vmatprep.subr.bf16.mxu0 %v2363
    %3388 = vmatpush2.bf16.msra.mxu0 %v2362
    %3389 = vmatprep.subr.bf16.mxu0 %v2355
    %3390 = vmatpush2.bf16.msra.mxu0 %v2354
    %3391 = vmatprep.subr.bf16.mxu0 %v2347
    %3392 = vmatpush2.bf16.msra.mxu0 %v2346
    %3393 = vmatprep.subr.bf16.mxu0 %v2339
    %3394 = vmatpush2.bf16.msra.mxu0 %v2338
    %3395 = vmatprep.subr.bf16.mxu0 %v2331
    %3396 = vmatpush2.bf16.msra.mxu0 %v2330
    %3397 = vmatprep.mubr.bf16.mxu0 %v587
    %3398 = vmatmul.mubr.bf16.gmra.mxu0 %v586
    %v3399 = vpop.f32.mrf.mxu0
    %v3400 = vadd.f32 %v3359, %v3399
    %v3401 = vpop.f32.mrf.mxu0
    %v3402 = vadd.f32 %v3361, %v3401
    %v3403 = vpop.f32.mrf.mxu0
    %v3404 = vpop.f32.mrf.mxu0
    %3405 = vdwg.mxu0
    %3406 = vmatprep.subr.bf16.mxu0 %v2451
    %3407 = vmatpush1.bf16.msra.mxu0 %v2450
    %3408 = vmatprep.subr.bf16.mxu0 %v2443
    %3409 = vmatpush1.bf16.msra.mxu0 %v2442
    %3410 = vmatprep.subr.bf16.mxu0 %v2435
    %3411 = vmatpush1.bf16.msra.mxu0 %v2434
    %3412 = vmatprep.subr.bf16.mxu0 %v2427
    %3413 = vmatpush1.bf16.msra.mxu0 %v2426
    %3414 = vmatprep.subr.bf16.mxu0 %v2419
    %3415 = vmatpush1.bf16.msra.mxu0 %v2418
    %3416 = vmatprep.subr.bf16.mxu0 %v2411
    %3417 = vmatpush1.bf16.msra.mxu0 %v2410
    %3418 = vmatprep.subr.bf16.mxu0 %v2403
    %3419 = vmatpush1.bf16.msra.mxu0 %v2402
    %3420 = vmatprep.subr.bf16.mxu0 %v2395
    %3421 = vmatpush1.bf16.msra.mxu0 %v2394
    %3422 = vmatprep.subr.bf16.mxu0 %v2515
    %3423 = vmatpush2.bf16.msra.mxu0 %v2514
    %3424 = vmatprep.subr.bf16.mxu0 %v2507
    %3425 = vmatpush2.bf16.msra.mxu0 %v2506
    %3426 = vmatprep.subr.bf16.mxu0 %v2499
    %3427 = vmatpush2.bf16.msra.mxu0 %v2498
    %3428 = vmatprep.subr.bf16.mxu0 %v2491
    %3429 = vmatpush2.bf16.msra.mxu0 %v2490
    %3430 = vmatprep.subr.bf16.mxu0 %v2483
    %3431 = vmatpush2.bf16.msra.mxu0 %v2482
    %3432 = vmatprep.subr.bf16.mxu0 %v2475
    %3433 = vmatpush2.bf16.msra.mxu0 %v2474
    %3434 = vmatprep.subr.bf16.mxu0 %v2467
    %3435 = vmatpush2.bf16.msra.mxu0 %v2466
    %3436 = vmatprep.subr.bf16.mxu0 %v2459
    %3437 = vmatpush2.bf16.msra.mxu0 %v2458
    %3438 = vmatprep.mubr.bf16.mxu0 %v589
    %3439 = vmatmul.mubr.bf16.gmra.mxu0 %v588
    %v3440 = vpop.f32.mrf.mxu0
    %v3441 = vadd.f32 %v3400, %v3440
    %v3442 = vpop.f32.mrf.mxu0
    %v3443 = vadd.f32 %v3402, %v3442
    %v3444 = vpop.f32.mrf.mxu0
    %v3445 = vpop.f32.mrf.mxu0
    %3446 = vdwg.mxu0
    %3447 = vmatprep.subr.bf16.mxu0 %v2579
    %3448 = vmatpush1.bf16.msra.mxu0 %v2578
    %3449 = vmatprep.subr.bf16.mxu0 %v2571
    %3450 = vmatpush1.bf16.msra.mxu0 %v2570
    %3451 = vmatprep.subr.bf16.mxu0 %v2563
    %3452 = vmatpush1.bf16.msra.mxu0 %v2562
    %3453 = vmatprep.subr.bf16.mxu0 %v2555
    %3454 = vmatpush1.bf16.msra.mxu0 %v2554
    %3455 = vmatprep.subr.bf16.mxu0 %v2547
    %3456 = vmatpush1.bf16.msra.mxu0 %v2546
    %3457 = vmatprep.subr.bf16.mxu0 %v2539
    %3458 = vmatpush1.bf16.msra.mxu0 %v2538
    %3459 = vmatprep.subr.bf16.mxu0 %v2531
    %3460 = vmatpush1.bf16.msra.mxu0 %v2530
    %3461 = vmatprep.subr.bf16.mxu0 %v2523
    %3462 = vmatpush1.bf16.msra.mxu0 %v2522
    %3463 = vmatprep.subr.bf16.mxu0 %v2643
    %3464 = vmatpush2.bf16.msra.mxu0 %v2642
    %3465 = vmatprep.subr.bf16.mxu0 %v2635
    %3466 = vmatpush2.bf16.msra.mxu0 %v2634
    %3467 = vmatprep.subr.bf16.mxu0 %v2627
    %3468 = vmatpush2.bf16.msra.mxu0 %v2626
    %3469 = vmatprep.subr.bf16.mxu0 %v2619
    %3470 = vmatpush2.bf16.msra.mxu0 %v2618
    %3471 = vmatprep.subr.bf16.mxu0 %v2611
    %3472 = vmatpush2.bf16.msra.mxu0 %v2610
    %3473 = vmatprep.subr.bf16.mxu0 %v2603
    %3474 = vmatpush2.bf16.msra.mxu0 %v2602
    %3475 = vmatprep.subr.bf16.mxu0 %v2595
    %3476 = vmatpush2.bf16.msra.mxu0 %v2594
    %3477 = vmatprep.subr.bf16.mxu0 %v2587
    %3478 = vmatpush2.bf16.msra.mxu0 %v2586
    %3479 = vmatprep.mubr.bf16.mxu0 %v591
    %3480 = vmatmul.mubr.bf16.gmra.mxu0 %v590
    %v3481 = vpop.f32.mrf.mxu0
    %v3482 = vadd.f32 %v3441, %v3481
    %v3483 = vpop.f32.mrf.mxu0
    %v3484 = vadd.f32 %v3443, %v3483
    %v3485 = vpop.f32.mrf.mxu0
    %v3486 = vpop.f32.mrf.mxu0
    %3487 = vdwg.mxu0
    %3488 = vmatprep.subr.bf16.mxu0 %v2197
    %3489 = vmatpush1.bf16.msra.mxu0 %v2196
    %3490 = vmatprep.subr.bf16.mxu0 %v2189
    %3491 = vmatpush1.bf16.msra.mxu0 %v2188
    %3492 = vmatprep.subr.bf16.mxu0 %v2181
    %3493 = vmatpush1.bf16.msra.mxu0 %v2180
    %3494 = vmatprep.subr.bf16.mxu0 %v2173
    %3495 = vmatpush1.bf16.msra.mxu0 %v2172
    %3496 = vmatprep.subr.bf16.mxu0 %v2165
    %3497 = vmatpush1.bf16.msra.mxu0 %v2164
    %3498 = vmatprep.subr.bf16.mxu0 %v2157
    %3499 = vmatpush1.bf16.msra.mxu0 %v2156
    %3500 = vmatprep.subr.bf16.mxu0 %v2149
    %3501 = vmatpush1.bf16.msra.mxu0 %v2148
    %3502 = vmatprep.subr.bf16.mxu0 %v2141
    %3503 = vmatpush1.bf16.msra.mxu0 %v2140
    %3504 = vmatprep.subr.bf16.mxu0 %v2261
    %3505 = vmatpush2.bf16.msra.mxu0 %v2260
    %3506 = vmatprep.subr.bf16.mxu0 %v2253
    %3507 = vmatpush2.bf16.msra.mxu0 %v2252
    %3508 = vmatprep.subr.bf16.mxu0 %v2245
    %3509 = vmatpush2.bf16.msra.mxu0 %v2244
    %3510 = vmatprep.subr.bf16.mxu0 %v2237
    %3511 = vmatpush2.bf16.msra.mxu0 %v2236
    %3512 = vmatprep.subr.bf16.mxu0 %v2229
    %3513 = vmatpush2.bf16.msra.mxu0 %v2228
    %3514 = vmatprep.subr.bf16.mxu0 %v2221
    %3515 = vmatpush2.bf16.msra.mxu0 %v2220
    %3516 = vmatprep.subr.bf16.mxu0 %v2213
    %3517 = vmatpush2.bf16.msra.mxu0 %v2212
    %3518 = vmatprep.subr.bf16.mxu0 %v2205
    %3519 = vmatpush2.bf16.msra.mxu0 %v2204
    %3520 = vmatprep.mubr.bf16.mxu0 %v585
    %3521 = vmatmul.mubr.bf16.gmra.mxu0 %v584
    %v3522 = vpop.f32.mrf.mxu0
    %v3523 = vadd.f32 0.0, %v3522
    %v3524 = vpop.f32.mrf.mxu0
    %v3525 = vadd.f32 0.0, %v3524
    %v3526 = vpop.f32.mrf.mxu0
    %v3527 = vpop.f32.mrf.mxu0
    %3528 = vdwg.mxu0
    %3529 = vmatprep.subr.bf16.mxu0 %v2325
    %3530 = vmatpush1.bf16.msra.mxu0 %v2324
    %3531 = vmatprep.subr.bf16.mxu0 %v2317
    %3532 = vmatpush1.bf16.msra.mxu0 %v2316
    %3533 = vmatprep.subr.bf16.mxu0 %v2309
    %3534 = vmatpush1.bf16.msra.mxu0 %v2308
    %3535 = vmatprep.subr.bf16.mxu0 %v2301
    %3536 = vmatpush1.bf16.msra.mxu0 %v2300
    %3537 = vmatprep.subr.bf16.mxu0 %v2293
    %3538 = vmatpush1.bf16.msra.mxu0 %v2292
    %3539 = vmatprep.subr.bf16.mxu0 %v2285
    %3540 = vmatpush1.bf16.msra.mxu0 %v2284
    %3541 = vmatprep.subr.bf16.mxu0 %v2277
    %3542 = vmatpush1.bf16.msra.mxu0 %v2276
    %3543 = vmatprep.subr.bf16.mxu0 %v2269
    %3544 = vmatpush1.bf16.msra.mxu0 %v2268
    %3545 = vmatprep.subr.bf16.mxu0 %v2389
    %3546 = vmatpush2.bf16.msra.mxu0 %v2388
    %3547 = vmatprep.subr.bf16.mxu0 %v2381
    %3548 = vmatpush2.bf16.msra.mxu0 %v2380
    %3549 = vmatprep.subr.bf16.mxu0 %v2373
    %3550 = vmatpush2.bf16.msra.mxu0 %v2372
    %3551 = vmatprep.subr.bf16.mxu0 %v2365
    %3552 = vmatpush2.bf16.msra.mxu0 %v2364
    %3553 = vmatprep.subr.bf16.mxu0 %v2357
    %3554 = vmatpush2.bf16.msra.mxu0 %v2356
    %3555 = vmatprep.subr.bf16.mxu0 %v2349
    %3556 = vmatpush2.bf16.msra.mxu0 %v2348
    %3557 = vmatprep.subr.bf16.mxu0 %v2341
    %3558 = vmatpush2.bf16.msra.mxu0 %v2340
    %3559 = vmatprep.subr.bf16.mxu0 %v2333
    %3560 = vmatpush2.bf16.msra.mxu0 %v2332
    %3561 = vmatprep.mubr.bf16.mxu0 %v587
    %3562 = vmatmul.mubr.bf16.gmra.mxu0 %v586
    %v3563 = vpop.f32.mrf.mxu0
    %v3564 = vadd.f32 %v3523, %v3563
    %v3565 = vpop.f32.mrf.mxu0
    %v3566 = vadd.f32 %v3525, %v3565
    %v3567 = vpop.f32.mrf.mxu0
    %v3568 = vpop.f32.mrf.mxu0
    %3569 = vdwg.mxu0
    %3570 = vmatprep.subr.bf16.mxu0 %v2453
    %3571 = vmatpush1.bf16.msra.mxu0 %v2452
    %3572 = vmatprep.subr.bf16.mxu0 %v2445
    %3573 = vmatpush1.bf16.msra.mxu0 %v2444
    %3574 = vmatprep.subr.bf16.mxu0 %v2437
    %3575 = vmatpush1.bf16.msra.mxu0 %v2436
    %3576 = vmatprep.subr.bf16.mxu0 %v2429
    %3577 = vmatpush1.bf16.msra.mxu0 %v2428
    %3578 = vmatprep.subr.bf16.mxu0 %v2421
    %3579 = vmatpush1.bf16.msra.mxu0 %v2420
    %3580 = vmatprep.subr.bf16.mxu0 %v2413
    %3581 = vmatpush1.bf16.msra.mxu0 %v2412
    %3582 = vmatprep.subr.bf16.mxu0 %v2405
    %3583 = vmatpush1.bf16.msra.mxu0 %v2404
    %3584 = vmatprep.subr.bf16.mxu0 %v2397
    %3585 = vmatpush1.bf16.msra.mxu0 %v2396
    %3586 = vmatprep.subr.bf16.mxu0 %v2517
    %3587 = vmatpush2.bf16.msra.mxu0 %v2516
    %3588 = vmatprep.subr.bf16.mxu0 %v2509
    %3589 = vmatpush2.bf16.msra.mxu0 %v2508
    %3590 = vmatprep.subr.bf16.mxu0 %v2501
    %3591 = vmatpush2.bf16.msra.mxu0 %v2500
    %3592 = vmatprep.subr.bf16.mxu0 %v2493
    %3593 = vmatpush2.bf16.msra.mxu0 %v2492
    %3594 = vmatprep.subr.bf16.mxu0 %v2485
    %3595 = vmatpush2.bf16.msra.mxu0 %v2484
    %3596 = vmatprep.subr.bf16.mxu0 %v2477
    %3597 = vmatpush2.bf16.msra.mxu0 %v2476
    %3598 = vmatprep.subr.bf16.mxu0 %v2469
    %3599 = vmatpush2.bf16.msra.mxu0 %v2468
    %3600 = vmatprep.subr.bf16.mxu0 %v2461
    %3601 = vmatpush2.bf16.msra.mxu0 %v2460
    %3602 = vmatprep.mubr.bf16.mxu0 %v589
    %3603 = vmatmul.mubr.bf16.gmra.mxu0 %v588
    %v3604 = vpop.f32.mrf.mxu0
    %v3605 = vadd.f32 %v3564, %v3604
    %v3606 = vpop.f32.mrf.mxu0
    %v3607 = vadd.f32 %v3566, %v3606
    %v3608 = vpop.f32.mrf.mxu0
    %v3609 = vpop.f32.mrf.mxu0
    %3610 = vdwg.mxu0
    %3611 = vmatprep.subr.bf16.mxu0 %v2581
    %3612 = vmatpush1.bf16.msra.mxu0 %v2580
    %3613 = vmatprep.subr.bf16.mxu0 %v2573
    %3614 = vmatpush1.bf16.msra.mxu0 %v2572
    %3615 = vmatprep.subr.bf16.mxu0 %v2565
    %3616 = vmatpush1.bf16.msra.mxu0 %v2564
    %3617 = vmatprep.subr.bf16.mxu0 %v2557
    %3618 = vmatpush1.bf16.msra.mxu0 %v2556
    %3619 = vmatprep.subr.bf16.mxu0 %v2549
    %3620 = vmatpush1.bf16.msra.mxu0 %v2548
    %3621 = vmatprep.subr.bf16.mxu0 %v2541
    %3622 = vmatpush1.bf16.msra.mxu0 %v2540
    %3623 = vmatprep.subr.bf16.mxu0 %v2533
    %3624 = vmatpush1.bf16.msra.mxu0 %v2532
    %3625 = vmatprep.subr.bf16.mxu0 %v2525
    %3626 = vmatpush1.bf16.msra.mxu0 %v2524
    %3627 = vmatprep.subr.bf16.mxu0 %v2645
    %3628 = vmatpush2.bf16.msra.mxu0 %v2644
    %3629 = vmatprep.subr.bf16.mxu0 %v2637
    %3630 = vmatpush2.bf16.msra.mxu0 %v2636
    %3631 = vmatprep.subr.bf16.mxu0 %v2629
    %3632 = vmatpush2.bf16.msra.mxu0 %v2628
    %3633 = vmatprep.subr.bf16.mxu0 %v2621
    %3634 = vmatpush2.bf16.msra.mxu0 %v2620
    %3635 = vmatprep.subr.bf16.mxu0 %v2613
    %3636 = vmatpush2.bf16.msra.mxu0 %v2612
    %3637 = vmatprep.subr.bf16.mxu0 %v2605
    %3638 = vmatpush2.bf16.msra.mxu0 %v2604
    %3639 = vmatprep.subr.bf16.mxu0 %v2597
    %3640 = vmatpush2.bf16.msra.mxu0 %v2596
    %3641 = vmatprep.subr.bf16.mxu0 %v2589
    %3642 = vmatpush2.bf16.msra.mxu0 %v2588
    %3643 = vmatprep.mubr.bf16.mxu0 %v591
    %3644 = vmatmul.mubr.bf16.gmra.mxu0 %v590
    %v3645 = vpop.f32.mrf.mxu0
    %v3646 = vadd.f32 %v3605, %v3645
    %v3647 = vpop.f32.mrf.mxu0
    %v3648 = vadd.f32 %v3607, %v3647
    %v3649 = vpop.f32.mrf.mxu0
    %v3650 = vpop.f32.mrf.mxu0
    %3651 = vdwg.mxu0
    %3652 = vmatprep.subr.bf16.mxu0 %v2199
    %3653 = vmatpush1.bf16.msra.mxu0 %v2198
    %3654 = vmatprep.subr.bf16.mxu0 %v2191
    %3655 = vmatpush1.bf16.msra.mxu0 %v2190
    %3656 = vmatprep.subr.bf16.mxu0 %v2183
    %3657 = vmatpush1.bf16.msra.mxu0 %v2182
    %3658 = vmatprep.subr.bf16.mxu0 %v2175
    %3659 = vmatpush1.bf16.msra.mxu0 %v2174
    %3660 = vmatprep.subr.bf16.mxu0 %v2167
    %3661 = vmatpush1.bf16.msra.mxu0 %v2166
    %3662 = vmatprep.subr.bf16.mxu0 %v2159
    %3663 = vmatpush1.bf16.msra.mxu0 %v2158
    %3664 = vmatprep.subr.bf16.mxu0 %v2151
    %3665 = vmatpush1.bf16.msra.mxu0 %v2150
    %3666 = vmatprep.subr.bf16.mxu0 %v2143
    %3667 = vmatpush1.bf16.msra.mxu0 %v2142
    %3668 = vmatprep.subr.bf16.mxu0 %v2263
    %3669 = vmatpush2.bf16.msra.mxu0 %v2262
    %3670 = vmatprep.subr.bf16.mxu0 %v2255
    %3671 = vmatpush2.bf16.msra.mxu0 %v2254
    %3672 = vmatprep.subr.bf16.mxu0 %v2247
    %3673 = vmatpush2.bf16.msra.mxu0 %v2246
    %3674 = vmatprep.subr.bf16.mxu0 %v2239
    %3675 = vmatpush2.bf16.msra.mxu0 %v2238
    %3676 = vmatprep.subr.bf16.mxu0 %v2231
    %3677 = vmatpush2.bf16.msra.mxu0 %v2230
    %3678 = vmatprep.subr.bf16.mxu0 %v2223
    %3679 = vmatpush2.bf16.msra.mxu0 %v2222
    %3680 = vmatprep.subr.bf16.mxu0 %v2215
    %3681 = vmatpush2.bf16.msra.mxu0 %v2214
    %3682 = vmatprep.subr.bf16.mxu0 %v2207
    %3683 = vmatpush2.bf16.msra.mxu0 %v2206
    %3684 = vmatprep.mubr.bf16.mxu0 %v585
    %3685 = vmatmul.mubr.bf16.gmra.mxu0 %v584
    %v3686 = vpop.f32.mrf.mxu0
    %v3687 = vadd.f32 0.0, %v3686
    %v3688 = vpop.f32.mrf.mxu0
    %v3689 = vadd.f32 0.0, %v3688
    %v3690 = vpop.f32.mrf.mxu0
    %v3691 = vpop.f32.mrf.mxu0
    %3692 = vdwg.mxu0
    %3693 = vmatprep.subr.bf16.mxu0 %v2327
    %3694 = vmatpush1.bf16.msra.mxu0 %v2326
    %3695 = vmatprep.subr.bf16.mxu0 %v2319
    %3696 = vmatpush1.bf16.msra.mxu0 %v2318
    %3697 = vmatprep.subr.bf16.mxu0 %v2311
    %3698 = vmatpush1.bf16.msra.mxu0 %v2310
    %3699 = vmatprep.subr.bf16.mxu0 %v2303
    %3700 = vmatpush1.bf16.msra.mxu0 %v2302
    %3701 = vmatprep.subr.bf16.mxu0 %v2295
    %3702 = vmatpush1.bf16.msra.mxu0 %v2294
    %3703 = vmatprep.subr.bf16.mxu0 %v2287
    %3704 = vmatpush1.bf16.msra.mxu0 %v2286
    %3705 = vmatprep.subr.bf16.mxu0 %v2279
    %3706 = vmatpush1.bf16.msra.mxu0 %v2278
    %3707 = vmatprep.subr.bf16.mxu0 %v2271
    %3708 = vmatpush1.bf16.msra.mxu0 %v2270
    %3709 = vmatprep.subr.bf16.mxu0 %v2391
    %3710 = vmatpush2.bf16.msra.mxu0 %v2390
    %3711 = vmatprep.subr.bf16.mxu0 %v2383
    %3712 = vmatpush2.bf16.msra.mxu0 %v2382
    %3713 = vmatprep.subr.bf16.mxu0 %v2375
    %3714 = vmatpush2.bf16.msra.mxu0 %v2374
    %3715 = vmatprep.subr.bf16.mxu0 %v2367
    %3716 = vmatpush2.bf16.msra.mxu0 %v2366
    %3717 = vmatprep.subr.bf16.mxu0 %v2359
    %3718 = vmatpush2.bf16.msra.mxu0 %v2358
    %3719 = vmatprep.subr.bf16.mxu0 %v2351
    %3720 = vmatpush2.bf16.msra.mxu0 %v2350
    %3721 = vmatprep.subr.bf16.mxu0 %v2343
    %3722 = vmatpush2.bf16.msra.mxu0 %v2342
    %3723 = vmatprep.subr.bf16.mxu0 %v2335
    %3724 = vmatpush2.bf16.msra.mxu0 %v2334
    %3725 = vmatprep.mubr.bf16.mxu0 %v587
    %3726 = vmatmul.mubr.bf16.gmra.mxu0 %v586
    %v3727 = vpop.f32.mrf.mxu0
    %v3728 = vadd.f32 %v3687, %v3727
    %v3729 = vpop.f32.mrf.mxu0
    %v3730 = vadd.f32 %v3689, %v3729
    %v3731 = vpop.f32.mrf.mxu0
    %v3732 = vpop.f32.mrf.mxu0
    %3733 = vdwg.mxu0
    %3734 = vmatprep.subr.bf16.mxu0 %v2455
    %3735 = vmatpush1.bf16.msra.mxu0 %v2454
    %3736 = vmatprep.subr.bf16.mxu0 %v2447
    %3737 = vmatpush1.bf16.msra.mxu0 %v2446
    %3738 = vmatprep.subr.bf16.mxu0 %v2439
    %3739 = vmatpush1.bf16.msra.mxu0 %v2438
    %3740 = vmatprep.subr.bf16.mxu0 %v2431
    %3741 = vmatpush1.bf16.msra.mxu0 %v2430
    %3742 = vmatprep.subr.bf16.mxu0 %v2423
    %3743 = vmatpush1.bf16.msra.mxu0 %v2422
    %3744 = vmatprep.subr.bf16.mxu0 %v2415
    %3745 = vmatpush1.bf16.msra.mxu0 %v2414
    %3746 = vmatprep.subr.bf16.mxu0 %v2407
    %3747 = vmatpush1.bf16.msra.mxu0 %v2406
    %3748 = vmatprep.subr.bf16.mxu0 %v2399
    %3749 = vmatpush1.bf16.msra.mxu0 %v2398
    %3750 = vmatprep.subr.bf16.mxu0 %v2519
    %3751 = vmatpush2.bf16.msra.mxu0 %v2518
    %3752 = vmatprep.subr.bf16.mxu0 %v2511
    %3753 = vmatpush2.bf16.msra.mxu0 %v2510
    %3754 = vmatprep.subr.bf16.mxu0 %v2503
    %3755 = vmatpush2.bf16.msra.mxu0 %v2502
    %3756 = vmatprep.subr.bf16.mxu0 %v2495
    %3757 = vmatpush2.bf16.msra.mxu0 %v2494
    %3758 = vmatprep.subr.bf16.mxu0 %v2487
    %3759 = vmatpush2.bf16.msra.mxu0 %v2486
    %3760 = vmatprep.subr.bf16.mxu0 %v2479
    %3761 = vmatpush2.bf16.msra.mxu0 %v2478
    %3762 = vmatprep.subr.bf16.mxu0 %v2471
    %3763 = vmatpush2.bf16.msra.mxu0 %v2470
    %3764 = vmatprep.subr.bf16.mxu0 %v2463
    %3765 = vmatpush2.bf16.msra.mxu0 %v2462
    %3766 = vmatprep.mubr.bf16.mxu0 %v589
    %3767 = vmatmul.mubr.bf16.gmra.mxu0 %v588
    %v3768 = vpop.f32.mrf.mxu0
    %v3769 = vadd.f32 %v3728, %v3768
    %v3770 = vpop.f32.mrf.mxu0
    %v3771 = vadd.f32 %v3730, %v3770
    %v3772 = vpop.f32.mrf.mxu0
    %v3773 = vpop.f32.mrf.mxu0
    %3774 = vdwg.mxu0
    %3775 = vmatprep.subr.bf16.mxu0 %v2583
    %3776 = vmatpush1.bf16.msra.mxu0 %v2582
    %3777 = vmatprep.subr.bf16.mxu0 %v2575
    %3778 = vmatpush1.bf16.msra.mxu0 %v2574
    %3779 = vmatprep.subr.bf16.mxu0 %v2567
    %3780 = vmatpush1.bf16.msra.mxu0 %v2566
    %3781 = vmatprep.subr.bf16.mxu0 %v2559
    %3782 = vmatpush1.bf16.msra.mxu0 %v2558
    %3783 = vmatprep.subr.bf16.mxu0 %v2551
    %3784 = vmatpush1.bf16.msra.mxu0 %v2550
    %3785 = vmatprep.subr.bf16.mxu0 %v2543
    %3786 = vmatpush1.bf16.msra.mxu0 %v2542
    %3787 = vmatprep.subr.bf16.mxu0 %v2535
    %3788 = vmatpush1.bf16.msra.mxu0 %v2534
    %3789 = vmatprep.subr.bf16.mxu0 %v2527
    %3790 = vmatpush1.bf16.msra.mxu0 %v2526
    %3791 = vmatprep.subr.bf16.mxu0 %v2647
    %3792 = vmatpush2.bf16.msra.mxu0 %v2646
    %3793 = vmatprep.subr.bf16.mxu0 %v2639
    %3794 = vmatpush2.bf16.msra.mxu0 %v2638
    %3795 = vmatprep.subr.bf16.mxu0 %v2631
    %3796 = vmatpush2.bf16.msra.mxu0 %v2630
    %3797 = vmatprep.subr.bf16.mxu0 %v2623
    %3798 = vmatpush2.bf16.msra.mxu0 %v2622
    %3799 = vmatprep.subr.bf16.mxu0 %v2615
    %3800 = vmatpush2.bf16.msra.mxu0 %v2614
    %3801 = vmatprep.subr.bf16.mxu0 %v2607
    %3802 = vmatpush2.bf16.msra.mxu0 %v2606
    %3803 = vmatprep.subr.bf16.mxu0 %v2599
    %3804 = vmatpush2.bf16.msra.mxu0 %v2598
    %3805 = vmatprep.subr.bf16.mxu0 %v2591
    %3806 = vmatpush2.bf16.msra.mxu0 %v2590
    %3807 = vmatprep.mubr.bf16.mxu0 %v591
    %3808 = vmatmul.mubr.bf16.gmra.mxu0 %v590
    %v3809 = vpop.f32.mrf.mxu0
    %v3810 = vadd.f32 %v3769, %v3809
    %v3811 = vpop.f32.mrf.mxu0
    %v3812 = vadd.f32 %v3771, %v3811
    %v3813 = vpop.f32.mrf.mxu0
    %v3814 = vpop.f32.mrf.mxu0
    %3815 = vdwg.mxu0
    %v3816 = vld [vmem:[#allocation4] sm:$0xff]
    %v3817 = vld [vmem:[#allocation4 + $0x8] sm:$0xff]
    %v3818 = vld [vmem:[#allocation4 + $0x10] sm:$0xff]
    %v3819 = vld [vmem:[#allocation4 + $0x18] sm:$0xff]
    %v3820 = vld [vmem:[#allocation4 + $0x20] sm:$0xff]
    %v3821 = vld [vmem:[#allocation4 + $0x28] sm:$0xff]
    %v3822 = vld [vmem:[#allocation4 + $0x30] sm:$0xff]
    %v3823 = vld [vmem:[#allocation4 + $0x38] sm:$0xff]
    %v3824 = vld [vmem:[#allocation4 + $0x40] sm:$0xff]
    %v3825 = vld [vmem:[#allocation4 + $0x48] sm:$0xff]
    %v3826 = vld [vmem:[#allocation4 + $0x50] sm:$0xff]
    %v3827 = vld [vmem:[#allocation4 + $0x58] sm:$0xff]
    %v3828 = vld [vmem:[#allocation4 + $0x60] sm:$0xff]
    %v3829 = vld [vmem:[#allocation4 + $0x68] sm:$0xff]
    %v3830 = vld [vmem:[#allocation4 + $0x70] sm:$0xff]
    %v3831 = vld [vmem:[#allocation4 + $0x78] sm:$0xff]
    %v3832 = vld [vmem:[#allocation6] sm:$0x1]
    %v3834 = vlaneseq
    %v3835 = vshrl.u32 %v3834, 7
    %v3836 = vsub.s32 0, %v3835
    %v3837 = vrot.slane %v3832, %v3836
    %3839 = vmatprep.subr.mxu0 0.0
    %3840 = vmatpush1.msra.mxu0 %v3831
    %3841 = vmatprep.subr.mxu0 0.0
    %3842 = vmatpush1.msra.mxu0 %v3830
    %3843 = vmatprep.subr.mxu0 0.0
    %3844 = vmatpush1.msra.mxu0 %v3829
    %3845 = vmatprep.subr.mxu0 0.0
    %3846 = vmatpush1.msra.mxu0 %v3828
    %3847 = vmatprep.subr.mxu0 0.0
    %3848 = vmatpush1.msra.mxu0 %v3827
    %3849 = vmatprep.subr.mxu0 0.0
    %3850 = vmatpush1.msra.mxu0 %v3826
    %3851 = vmatprep.subr.mxu0 0.0
    %3852 = vmatpush1.msra.mxu0 %v3825
    %3853 = vmatprep.subr.mxu0 0.0
    %3854 = vmatpush1.msra.mxu0 %v3824
    %3855 = vmatprep.subr.mxu0 0.0
    %3856 = vmatpush1.msra.mxu0 %v3823
    %3857 = vmatprep.subr.mxu0 0.0
    %3858 = vmatpush1.msra.mxu0 %v3822
    %3859 = vmatprep.subr.mxu0 0.0
    %3860 = vmatpush1.msra.mxu0 %v3821
    %3861 = vmatprep.subr.mxu0 0.0
    %3862 = vmatpush1.msra.mxu0 %v3820
    %3863 = vmatprep.subr.mxu0 0.0
    %3864 = vmatpush1.msra.mxu0 %v3819
    %3865 = vmatprep.subr.mxu0 0.0
    %3866 = vmatpush1.msra.mxu0 %v3818
    %3867 = vmatprep.subr.mxu0 0.0
    %3868 = vmatpush1.msra.mxu0 %v3817
    %3869 = vmatprep.subr.mxu0 0.0
    %3870 = vmatpush1.msra.mxu0 %v3816
    %3871 = vmatprep.subr.mxu0 0.0
    %3872 = vmatpush2.msra.mxu0 0.0
    %3873 = vmatprep.subr.mxu0 0.0
    %3874 = vmatpush2.msra.mxu0 0.0
    %3875 = vmatprep.subr.mxu0 0.0
    %3876 = vmatpush2.msra.mxu0 0.0
    %3877 = vmatprep.subr.mxu0 0.0
    %3878 = vmatpush2.msra.mxu0 0.0
    %3879 = vmatprep.subr.mxu0 0.0
    %3880 = vmatpush2.msra.mxu0 0.0
    %3881 = vmatprep.subr.mxu0 0.0
    %3882 = vmatpush2.msra.mxu0 0.0
    %3883 = vmatprep.subr.mxu0 0.0
    %3884 = vmatpush2.msra.mxu0 0.0
    %3885 = vmatprep.subr.mxu0 0.0
    %3886 = vmatpush2.msra.mxu0 0.0
    %3887 = vmatprep.subr.mxu0 0.0
    %3888 = vmatpush2.msra.mxu0 0.0
    %3889 = vmatprep.subr.mxu0 0.0
    %3890 = vmatpush2.msra.mxu0 0.0
    %3891 = vmatprep.subr.mxu0 0.0
    %3892 = vmatpush2.msra.mxu0 0.0
    %3893 = vmatprep.subr.mxu0 0.0
    %3894 = vmatpush2.msra.mxu0 0.0
    %3895 = vmatprep.subr.mxu0 0.0
    %3896 = vmatpush2.msra.mxu0 0.0
    %3897 = vmatprep.subr.mxu0 0.0
    %3898 = vmatpush2.msra.mxu0 0.0
    %3899 = vmatprep.subr.mxu0 0.0
    %3900 = vmatpush2.msra.mxu0 0.0
    %3901 = vmatprep.subr.mxu0 0.0
    %3902 = vmatpush2.msra.mxu0 0.0
    %3903 = vmatprep.mubr.f32.mxu0 0.0
    %3904 = vmatmul.mubr.f32.gmra.mxu0 %v3318
    %v3905 = vpop.f32.mrf.mxu0
    %v3906 = vadd.f32 %v3837, %v3905
    %v3907 = vpop.f32.mrf.mxu0
    %3908 = vdwg.mxu0
    %3909 = vst [vmem:[%s4] sm:$0xff] %v3906
    %3910 = vmatprep.subr.mxu0 0.0
    %3911 = vmatpush1.msra.mxu0 %v3831
    %3912 = vmatprep.subr.mxu0 0.0
    %3913 = vmatpush1.msra.mxu0 %v3830
    %3914 = vmatprep.subr.mxu0 0.0
    %3915 = vmatpush1.msra.mxu0 %v3829
    %3916 = vmatprep.subr.mxu0 0.0
    %3917 = vmatpush1.msra.mxu0 %v3828
    %3918 = vmatprep.subr.mxu0 0.0
    %3919 = vmatpush1.msra.mxu0 %v3827
    %3920 = vmatprep.subr.mxu0 0.0
    %3921 = vmatpush1.msra.mxu0 %v3826
    %3922 = vmatprep.subr.mxu0 0.0
    %3923 = vmatpush1.msra.mxu0 %v3825
    %3924 = vmatprep.subr.mxu0 0.0
    %3925 = vmatpush1.msra.mxu0 %v3824
    %3926 = vmatprep.subr.mxu0 0.0
    %3927 = vmatpush1.msra.mxu0 %v3823
    %3928 = vmatprep.subr.mxu0 0.0
    %3929 = vmatpush1.msra.mxu0 %v3822
    %3930 = vmatprep.subr.mxu0 0.0
    %3931 = vmatpush1.msra.mxu0 %v3821
    %3932 = vmatprep.subr.mxu0 0.0
    %3933 = vmatpush1.msra.mxu0 %v3820
    %3934 = vmatprep.subr.mxu0 0.0
    %3935 = vmatpush1.msra.mxu0 %v3819
    %3936 = vmatprep.subr.mxu0 0.0
    %3937 = vmatpush1.msra.mxu0 %v3818
    %3938 = vmatprep.subr.mxu0 0.0
    %3939 = vmatpush1.msra.mxu0 %v3817
    %3940 = vmatprep.subr.mxu0 0.0
    %3941 = vmatpush1.msra.mxu0 %v3816
    %3942 = vmatprep.subr.mxu0 0.0
    %3943 = vmatpush2.msra.mxu0 0.0
    %3944 = vmatprep.subr.mxu0 0.0
    %3945 = vmatpush2.msra.mxu0 0.0
    %3946 = vmatprep.subr.mxu0 0.0
    %3947 = vmatpush2.msra.mxu0 0.0
    %3948 = vmatprep.subr.mxu0 0.0
    %3949 = vmatpush2.msra.mxu0 0.0
    %3950 = vmatprep.subr.mxu0 0.0
    %3951 = vmatpush2.msra.mxu0 0.0
    %3952 = vmatprep.subr.mxu0 0.0
    %3953 = vmatpush2.msra.mxu0 0.0
    %3954 = vmatprep.subr.mxu0 0.0
    %3955 = vmatpush2.msra.mxu0 0.0
    %3956 = vmatprep.subr.mxu0 0.0
    %3957 = vmatpush2.msra.mxu0 0.0
    %3958 = vmatprep.subr.mxu0 0.0
    %3959 = vmatpush2.msra.mxu0 0.0
    %3960 = vmatprep.subr.mxu0 0.0
    %3961 = vmatpush2.msra.mxu0 0.0
    %3962 = vmatprep.subr.mxu0 0.0
    %3963 = vmatpush2.msra.mxu0 0.0
    %3964 = vmatprep.subr.mxu0 0.0
    %3965 = vmatpush2.msra.mxu0 0.0
    %3966 = vmatprep.subr.mxu0 0.0
    %3967 = vmatpush2.msra.mxu0 0.0
    %3968 = vmatprep.subr.mxu0 0.0
    %3969 = vmatpush2.msra.mxu0 0.0
    %3970 = vmatprep.subr.mxu0 0.0
    %3971 = vmatpush2.msra.mxu0 0.0
    %3972 = vmatprep.subr.mxu0 0.0
    %3973 = vmatpush2.msra.mxu0 0.0
    %3974 = vmatprep.mubr.f32.mxu0 0.0
    %3975 = vmatmul.mubr.f32.gmra.mxu0 %v3320
    %v3976 = vpop.f32.mrf.mxu0
    %v3977 = vadd.f32 %v3837, %v3976
    %v3978 = vpop.f32.mrf.mxu0
    %3979 = vdwg.mxu0
    %3980 = vst [vmem:[%s4 + $0x8] sm:$0xff] %v3977
    %3981 = vmatprep.subr.mxu0 0.0
    %3982 = vmatpush1.msra.mxu0 %v3831
    %3983 = vmatprep.subr.mxu0 0.0
    %3984 = vmatpush1.msra.mxu0 %v3830
    %3985 = vmatprep.subr.mxu0 0.0
    %3986 = vmatpush1.msra.mxu0 %v3829
    %3987 = vmatprep.subr.mxu0 0.0
    %3988 = vmatpush1.msra.mxu0 %v3828
    %3989 = vmatprep.subr.mxu0 0.0
    %3990 = vmatpush1.msra.mxu0 %v3827
    %3991 = vmatprep.subr.mxu0 0.0
    %3992 = vmatpush1.msra.mxu0 %v3826
    %3993 = vmatprep.subr.mxu0 0.0
    %3994 = vmatpush1.msra.mxu0 %v3825
    %3995 = vmatprep.subr.mxu0 0.0
    %3996 = vmatpush1.msra.mxu0 %v3824
    %3997 = vmatprep.subr.mxu0 0.0
    %3998 = vmatpush1.msra.mxu0 %v3823
    %3999 = vmatprep.subr.mxu0 0.0
    %4000 = vmatpush1.msra.mxu0 %v3822
    %4001 = vmatprep.subr.mxu0 0.0
    %4002 = vmatpush1.msra.mxu0 %v3821
    %4003 = vmatprep.subr.mxu0 0.0
    %4004 = vmatpush1.msra.mxu0 %v3820
    %4005 = vmatprep.subr.mxu0 0.0
    %4006 = vmatpush1.msra.mxu0 %v3819
    %4007 = vmatprep.subr.mxu0 0.0
    %4008 = vmatpush1.msra.mxu0 %v3818
    %4009 = vmatprep.subr.mxu0 0.0
    %4010 = vmatpush1.msra.mxu0 %v3817
    %4011 = vmatprep.subr.mxu0 0.0
    %4012 = vmatpush1.msra.mxu0 %v3816
    %4013 = vmatprep.subr.mxu0 0.0
    %4014 = vmatpush2.msra.mxu0 0.0
    %4015 = vmatprep.subr.mxu0 0.0
    %4016 = vmatpush2.msra.mxu0 0.0
    %4017 = vmatprep.subr.mxu0 0.0
    %4018 = vmatpush2.msra.mxu0 0.0
    %4019 = vmatprep.subr.mxu0 0.0
    %4020 = vmatpush2.msra.mxu0 0.0
    %4021 = vmatprep.subr.mxu0 0.0
    %4022 = vmatpush2.msra.mxu0 0.0
    %4023 = vmatprep.subr.mxu0 0.0
    %4024 = vmatpush2.msra.mxu0 0.0
    %4025 = vmatprep.subr.mxu0 0.0
    %4026 = vmatpush2.msra.mxu0 0.0
    %4027 = vmatprep.subr.mxu0 0.0
    %4028 = vmatpush2.msra.mxu0 0.0
    %4029 = vmatprep.subr.mxu0 0.0
    %4030 = vmatpush2.msra.mxu0 0.0
    %4031 = vmatprep.subr.mxu0 0.0
    %4032 = vmatpush2.msra.mxu0 0.0
    %4033 = vmatprep.subr.mxu0 0.0
    %4034 = vmatpush2.msra.mxu0 0.0
    %4035 = vmatprep.subr.mxu0 0.0
    %4036 = vmatpush2.msra.mxu0 0.0
    %4037 = vmatprep.subr.mxu0 0.0
    %4038 = vmatpush2.msra.mxu0 0.0
    %4039 = vmatprep.subr.mxu0 0.0
    %4040 = vmatpush2.msra.mxu0 0.0
    %4041 = vmatprep.subr.mxu0 0.0
    %4042 = vmatpush2.msra.mxu0 0.0
    %4043 = vmatprep.subr.mxu0 0.0
    %4044 = vmatpush2.msra.mxu0 0.0
    %4045 = vmatprep.mubr.f32.mxu0 0.0
    %4046 = vmatmul.mubr.f32.gmra.mxu0 %v3482
    %v4047 = vpop.f32.mrf.mxu0
    %v4048 = vadd.f32 %v3837, %v4047
    %v4049 = vpop.f32.mrf.mxu0
    %4050 = vdwg.mxu0
    %4051 = vst [vmem:[%s4 + $0x10] sm:$0xff] %v4048
    %4052 = vmatprep.subr.mxu0 0.0
    %4053 = vmatpush1.msra.mxu0 %v3831
    %4054 = vmatprep.subr.mxu0 0.0
    %4055 = vmatpush1.msra.mxu0 %v3830
    %4056 = vmatprep.subr.mxu0 0.0
    %4057 = vmatpush1.msra.mxu0 %v3829
    %4058 = vmatprep.subr.mxu0 0.0
    %4059 = vmatpush1.msra.mxu0 %v3828
    %4060 = vmatprep.subr.mxu0 0.0
    %4061 = vmatpush1.msra.mxu0 %v3827
    %4062 = vmatprep.subr.mxu0 0.0
    %4063 = vmatpush1.msra.mxu0 %v3826
    %4064 = vmatprep.subr.mxu0 0.0
    %4065 = vmatpush1.msra.mxu0 %v3825
    %4066 = vmatprep.subr.mxu0 0.0
    %4067 = vmatpush1.msra.mxu0 %v3824
    %4068 = vmatprep.subr.mxu0 0.0
    %4069 = vmatpush1.msra.mxu0 %v3823
    %4070 = vmatprep.subr.mxu0 0.0
    %4071 = vmatpush1.msra.mxu0 %v3822
    %4072 = vmatprep.subr.mxu0 0.0
    %4073 = vmatpush1.msra.mxu0 %v3821
    %4074 = vmatprep.subr.mxu0 0.0
    %4075 = vmatpush1.msra.mxu0 %v3820
    %4076 = vmatprep.subr.mxu0 0.0
    %4077 = vmatpush1.msra.mxu0 %v3819
    %4078 = vmatprep.subr.mxu0 0.0
    %4079 = vmatpush1.msra.mxu0 %v3818
    %4080 = vmatprep.subr.mxu0 0.0
    %4081 = vmatpush1.msra.mxu0 %v3817
    %4082 = vmatprep.subr.mxu0 0.0
    %4083 = vmatpush1.msra.mxu0 %v3816
    %4084 = vmatprep.subr.mxu0 0.0
    %4085 = vmatpush2.msra.mxu0 0.0
    %4086 = vmatprep.subr.mxu0 0.0
    %4087 = vmatpush2.msra.mxu0 0.0
    %4088 = vmatprep.subr.mxu0 0.0
    %4089 = vmatpush2.msra.mxu0 0.0
    %4090 = vmatprep.subr.mxu0 0.0
    %4091 = vmatpush2.msra.mxu0 0.0
    %4092 = vmatprep.subr.mxu0 0.0
    %4093 = vmatpush2.msra.mxu0 0.0
    %4094 = vmatprep.subr.mxu0 0.0
    %4095 = vmatpush2.msra.mxu0 0.0
    %4096 = vmatprep.subr.mxu0 0.0
    %4097 = vmatpush2.msra.mxu0 0.0
    %4098 = vmatprep.subr.mxu0 0.0
    %4099 = vmatpush2.msra.mxu0 0.0
    %4100 = vmatprep.subr.mxu0 0.0
    %4101 = vmatpush2.msra.mxu0 0.0
    %4102 = vmatprep.subr.mxu0 0.0
    %4103 = vmatpush2.msra.mxu0 0.0
    %4104 = vmatprep.subr.mxu0 0.0
    %4105 = vmatpush2.msra.mxu0 0.0
    %4106 = vmatprep.subr.mxu0 0.0
    %4107 = vmatpush2.msra.mxu0 0.0
    %4108 = vmatprep.subr.mxu0 0.0
    %4109 = vmatpush2.msra.mxu0 0.0
    %4110 = vmatprep.subr.mxu0 0.0
    %4111 = vmatpush2.msra.mxu0 0.0
    %4112 = vmatprep.subr.mxu0 0.0
    %4113 = vmatpush2.msra.mxu0 0.0
    %4114 = vmatprep.subr.mxu0 0.0
    %4115 = vmatpush2.msra.mxu0 0.0
    %4116 = vmatprep.mubr.f32.mxu0 0.0
    %4117 = vmatmul.mubr.f32.gmra.mxu0 %v3484
    %v4118 = vpop.f32.mrf.mxu0
    %v4119 = vadd.f32 %v3837, %v4118
    %v4120 = vpop.f32.mrf.mxu0
    %4121 = vdwg.mxu0
    %4122 = vst [vmem:[%s4 + $0x18] sm:$0xff] %v4119
    %4123 = vmatprep.subr.mxu0 0.0
    %4124 = vmatpush1.msra.mxu0 %v3831
    %4125 = vmatprep.subr.mxu0 0.0
    %4126 = vmatpush1.msra.mxu0 %v3830
    %4127 = vmatprep.subr.mxu0 0.0
    %4128 = vmatpush1.msra.mxu0 %v3829
    %4129 = vmatprep.subr.mxu0 0.0
    %4130 = vmatpush1.msra.mxu0 %v3828
    %4131 = vmatprep.subr.mxu0 0.0
    %4132 = vmatpush1.msra.mxu0 %v3827
    %4133 = vmatprep.subr.mxu0 0.0
    %4134 = vmatpush1.msra.mxu0 %v3826
    %4135 = vmatprep.subr.mxu0 0.0
    %4136 = vmatpush1.msra.mxu0 %v3825
    %4137 = vmatprep.subr.mxu0 0.0
    %4138 = vmatpush1.msra.mxu0 %v3824
    %4139 = vmatprep.subr.mxu0 0.0
    %4140 = vmatpush1.msra.mxu0 %v3823
    %4141 = vmatprep.subr.mxu0 0.0
    %4142 = vmatpush1.msra.mxu0 %v3822
    %4143 = vmatprep.subr.mxu0 0.0
    %4144 = vmatpush1.msra.mxu0 %v3821
    %4145 = vmatprep.subr.mxu0 0.0
    %4146 = vmatpush1.msra.mxu0 %v3820
    %4147 = vmatprep.subr.mxu0 0.0
    %4148 = vmatpush1.msra.mxu0 %v3819
    %4149 = vmatprep.subr.mxu0 0.0
    %4150 = vmatpush1.msra.mxu0 %v3818
    %4151 = vmatprep.subr.mxu0 0.0
    %4152 = vmatpush1.msra.mxu0 %v3817
    %4153 = vmatprep.subr.mxu0 0.0
    %4154 = vmatpush1.msra.mxu0 %v3816
    %4155 = vmatprep.subr.mxu0 0.0
    %4156 = vmatpush2.msra.mxu0 0.0
    %4157 = vmatprep.subr.mxu0 0.0
    %4158 = vmatpush2.msra.mxu0 0.0
    %4159 = vmatprep.subr.mxu0 0.0
    %4160 = vmatpush2.msra.mxu0 0.0
    %4161 = vmatprep.subr.mxu0 0.0
    %4162 = vmatpush2.msra.mxu0 0.0
    %4163 = vmatprep.subr.mxu0 0.0
    %4164 = vmatpush2.msra.mxu0 0.0
    %4165 = vmatprep.subr.mxu0 0.0
    %4166 = vmatpush2.msra.mxu0 0.0
    %4167 = vmatprep.subr.mxu0 0.0
    %4168 = vmatpush2.msra.mxu0 0.0
    %4169 = vmatprep.subr.mxu0 0.0
    %4170 = vmatpush2.msra.mxu0 0.0
    %4171 = vmatprep.subr.mxu0 0.0
    %4172 = vmatpush2.msra.mxu0 0.0
    %4173 = vmatprep.subr.mxu0 0.0
    %4174 = vmatpush2.msra.mxu0 0.0
    %4175 = vmatprep.subr.mxu0 0.0
    %4176 = vmatpush2.msra.mxu0 0.0
    %4177 = vmatprep.subr.mxu0 0.0
    %4178 = vmatpush2.msra.mxu0 0.0
    %4179 = vmatprep.subr.mxu0 0.0
    %4180 = vmatpush2.msra.mxu0 0.0
    %4181 = vmatprep.subr.mxu0 0.0
    %4182 = vmatpush2.msra.mxu0 0.0
    %4183 = vmatprep.subr.mxu0 0.0
    %4184 = vmatpush2.msra.mxu0 0.0
    %4185 = vmatprep.subr.mxu0 0.0
    %4186 = vmatpush2.msra.mxu0 0.0
    %4187 = vmatprep.mubr.f32.mxu0 0.0
    %4188 = vmatmul.mubr.f32.gmra.mxu0 %v3646
    %v4189 = vpop.f32.mrf.mxu0
    %v4190 = vadd.f32 %v3837, %v4189
    %v4191 = vpop.f32.mrf.mxu0
    %4192 = vdwg.mxu0
    %4193 = vst [vmem:[%s4 + $0x20] sm:$0xff] %v4190
    %4194 = vmatprep.subr.mxu0 0.0
    %4195 = vmatpush1.msra.mxu0 %v3831
    %4196 = vmatprep.subr.mxu0 0.0
    %4197 = vmatpush1.msra.mxu0 %v3830
    %4198 = vmatprep.subr.mxu0 0.0
    %4199 = vmatpush1.msra.mxu0 %v3829
    %4200 = vmatprep.subr.mxu0 0.0
    %4201 = vmatpush1.msra.mxu0 %v3828
    %4202 = vmatprep.subr.mxu0 0.0
    %4203 = vmatpush1.msra.mxu0 %v3827
    %4204 = vmatprep.subr.mxu0 0.0
    %4205 = vmatpush1.msra.mxu0 %v3826
    %4206 = vmatprep.subr.mxu0 0.0
    %4207 = vmatpush1.msra.mxu0 %v3825
    %4208 = vmatprep.subr.mxu0 0.0
    %4209 = vmatpush1.msra.mxu0 %v3824
    %4210 = vmatprep.subr.mxu0 0.0
    %4211 = vmatpush1.msra.mxu0 %v3823
    %4212 = vmatprep.subr.mxu0 0.0
    %4213 = vmatpush1.msra.mxu0 %v3822
    %4214 = vmatprep.subr.mxu0 0.0
    %4215 = vmatpush1.msra.mxu0 %v3821
    %4216 = vmatprep.subr.mxu0 0.0
    %4217 = vmatpush1.msra.mxu0 %v3820
    %4218 = vmatprep.subr.mxu0 0.0
    %4219 = vmatpush1.msra.mxu0 %v3819
    %4220 = vmatprep.subr.mxu0 0.0
    %4221 = vmatpush1.msra.mxu0 %v3818
    %4222 = vmatprep.subr.mxu0 0.0
    %4223 = vmatpush1.msra.mxu0 %v3817
    %4224 = vmatprep.subr.mxu0 0.0
    %4225 = vmatpush1.msra.mxu0 %v3816
    %4226 = vmatprep.subr.mxu0 0.0
    %4227 = vmatpush2.msra.mxu0 0.0
    %4228 = vmatprep.subr.mxu0 0.0
    %4229 = vmatpush2.msra.mxu0 0.0
    %4230 = vmatprep.subr.mxu0 0.0
    %4231 = vmatpush2.msra.mxu0 0.0
    %4232 = vmatprep.subr.mxu0 0.0
    %4233 = vmatpush2.msra.mxu0 0.0
    %4234 = vmatprep.subr.mxu0 0.0
    %4235 = vmatpush2.msra.mxu0 0.0
    %4236 = vmatprep.subr.mxu0 0.0
    %4237 = vmatpush2.msra.mxu0 0.0
    %4238 = vmatprep.subr.mxu0 0.0
    %4239 = vmatpush2.msra.mxu0 0.0
    %4240 = vmatprep.subr.mxu0 0.0
    %4241 = vmatpush2.msra.mxu0 0.0
    %4242 = vmatprep.subr.mxu0 0.0
    %4243 = vmatpush2.msra.mxu0 0.0
    %4244 = vmatprep.subr.mxu0 0.0
    %4245 = vmatpush2.msra.mxu0 0.0
    %4246 = vmatprep.subr.mxu0 0.0
    %4247 = vmatpush2.msra.mxu0 0.0
    %4248 = vmatprep.subr.mxu0 0.0
    %4249 = vmatpush2.msra.mxu0 0.0
    %4250 = vmatprep.subr.mxu0 0.0
    %4251 = vmatpush2.msra.mxu0 0.0
    %4252 = vmatprep.subr.mxu0 0.0
    %4253 = vmatpush2.msra.mxu0 0.0
    %4254 = vmatprep.subr.mxu0 0.0
    %4255 = vmatpush2.msra.mxu0 0.0
    %4256 = vmatprep.subr.mxu0 0.0
    %4257 = vmatpush2.msra.mxu0 0.0
    %4258 = vmatprep.mubr.f32.mxu0 0.0
    %4259 = vmatmul.mubr.f32.gmra.mxu0 %v3648
    %v4260 = vpop.f32.mrf.mxu0
    %v4261 = vadd.f32 %v3837, %v4260
    %v4262 = vpop.f32.mrf.mxu0
    %4263 = vdwg.mxu0
    %4264 = vst [vmem:[%s4 + $0x28] sm:$0xff] %v4261
    %4265 = vmatprep.subr.mxu0 0.0
    %4266 = vmatpush1.msra.mxu0 %v3831
    %4267 = vmatprep.subr.mxu0 0.0
    %4268 = vmatpush1.msra.mxu0 %v3830
    %4269 = vmatprep.subr.mxu0 0.0
    %4270 = vmatpush1.msra.mxu0 %v3829
    %4271 = vmatprep.subr.mxu0 0.0
    %4272 = vmatpush1.msra.mxu0 %v3828
    %4273 = vmatprep.subr.mxu0 0.0
    %4274 = vmatpush1.msra.mxu0 %v3827
    %4275 = vmatprep.subr.mxu0 0.0
    %4276 = vmatpush1.msra.mxu0 %v3826
    %4277 = vmatprep.subr.mxu0 0.0
    %4278 = vmatpush1.msra.mxu0 %v3825
    %4279 = vmatprep.subr.mxu0 0.0
    %4280 = vmatpush1.msra.mxu0 %v3824
    %4281 = vmatprep.subr.mxu0 0.0
    %4282 = vmatpush1.msra.mxu0 %v3823
    %4283 = vmatprep.subr.mxu0 0.0
    %4284 = vmatpush1.msra.mxu0 %v3822
    %4285 = vmatprep.subr.mxu0 0.0
    %4286 = vmatpush1.msra.mxu0 %v3821
    %4287 = vmatprep.subr.mxu0 0.0
    %4288 = vmatpush1.msra.mxu0 %v3820
    %4289 = vmatprep.subr.mxu0 0.0
    %4290 = vmatpush1.msra.mxu0 %v3819
    %4291 = vmatprep.subr.mxu0 0.0
    %4292 = vmatpush1.msra.mxu0 %v3818
    %4293 = vmatprep.subr.mxu0 0.0
    %4294 = vmatpush1.msra.mxu0 %v3817
    %4295 = vmatprep.subr.mxu0 0.0
    %4296 = vmatpush1.msra.mxu0 %v3816
    %4297 = vmatprep.subr.mxu0 0.0
    %4298 = vmatpush2.msra.mxu0 0.0
    %4299 = vmatprep.subr.mxu0 0.0
    %4300 = vmatpush2.msra.mxu0 0.0
    %4301 = vmatprep.subr.mxu0 0.0
    %4302 = vmatpush2.msra.mxu0 0.0
    %4303 = vmatprep.subr.mxu0 0.0
    %4304 = vmatpush2.msra.mxu0 0.0
    %4305 = vmatprep.subr.mxu0 0.0
    %4306 = vmatpush2.msra.mxu0 0.0
    %4307 = vmatprep.subr.mxu0 0.0
    %4308 = vmatpush2.msra.mxu0 0.0
    %4309 = vmatprep.subr.mxu0 0.0
    %4310 = vmatpush2.msra.mxu0 0.0
    %4311 = vmatprep.subr.mxu0 0.0
    %4312 = vmatpush2.msra.mxu0 0.0
    %4313 = vmatprep.subr.mxu0 0.0
    %4314 = vmatpush2.msra.mxu0 0.0
    %4315 = vmatprep.subr.mxu0 0.0
    %4316 = vmatpush2.msra.mxu0 0.0
    %4317 = vmatprep.subr.mxu0 0.0
    %4318 = vmatpush2.msra.mxu0 0.0
    %4319 = vmatprep.subr.mxu0 0.0
    %4320 = vmatpush2.msra.mxu0 0.0
    %4321 = vmatprep.subr.mxu0 0.0
    %4322 = vmatpush2.msra.mxu0 0.0
    %4323 = vmatprep.subr.mxu0 0.0
    %4324 = vmatpush2.msra.mxu0 0.0
    %4325 = vmatprep.subr.mxu0 0.0
    %4326 = vmatpush2.msra.mxu0 0.0
    %4327 = vmatprep.subr.mxu0 0.0
    %4328 = vmatpush2.msra.mxu0 0.0
    %4329 = vmatprep.mubr.f32.mxu0 0.0
    %4330 = vmatmul.mubr.f32.gmra.mxu0 %v3810
    %v4331 = vpop.f32.mrf.mxu0
    %v4332 = vadd.f32 %v3837, %v4331
    %v4333 = vpop.f32.mrf.mxu0
    %4334 = vdwg.mxu0
    %4335 = vst [vmem:[%s4 + $0x30] sm:$0xff] %v4332
    %4336 = vmatprep.subr.mxu0 0.0
    %4337 = vmatpush1.msra.mxu0 %v3831
    %4338 = vmatprep.subr.mxu0 0.0
    %4339 = vmatpush1.msra.mxu0 %v3830
    %4340 = vmatprep.subr.mxu0 0.0
    %4341 = vmatpush1.msra.mxu0 %v3829
    %4342 = vmatprep.subr.mxu0 0.0
    %4343 = vmatpush1.msra.mxu0 %v3828
    %4344 = vmatprep.subr.mxu0 0.0
    %4345 = vmatpush1.msra.mxu0 %v3827
    %4346 = vmatprep.subr.mxu0 0.0
    %4347 = vmatpush1.msra.mxu0 %v3826
    %4348 = vmatprep.subr.mxu0 0.0
    %4349 = vmatpush1.msra.mxu0 %v3825
    %4350 = vmatprep.subr.mxu0 0.0
    %4351 = vmatpush1.msra.mxu0 %v3824
    %4352 = vmatprep.subr.mxu0 0.0
    %4353 = vmatpush1.msra.mxu0 %v3823
    %4354 = vmatprep.subr.mxu0 0.0
    %4355 = vmatpush1.msra.mxu0 %v3822
    %4356 = vmatprep.subr.mxu0 0.0
    %4357 = vmatpush1.msra.mxu0 %v3821
    %4358 = vmatprep.subr.mxu0 0.0
    %4359 = vmatpush1.msra.mxu0 %v3820
    %4360 = vmatprep.subr.mxu0 0.0
    %4361 = vmatpush1.msra.mxu0 %v3819
    %4362 = vmatprep.subr.mxu0 0.0
    %4363 = vmatpush1.msra.mxu0 %v3818
    %4364 = vmatprep.subr.mxu0 0.0
    %4365 = vmatpush1.msra.mxu0 %v3817
    %4366 = vmatprep.subr.mxu0 0.0
    %4367 = vmatpush1.msra.mxu0 %v3816
    %4368 = vmatprep.subr.mxu0 0.0
    %4369 = vmatpush2.msra.mxu0 0.0
    %4370 = vmatprep.subr.mxu0 0.0
    %4371 = vmatpush2.msra.mxu0 0.0
    %4372 = vmatprep.subr.mxu0 0.0
    %4373 = vmatpush2.msra.mxu0 0.0
    %4374 = vmatprep.subr.mxu0 0.0
    %4375 = vmatpush2.msra.mxu0 0.0
    %4376 = vmatprep.subr.mxu0 0.0
    %4377 = vmatpush2.msra.mxu0 0.0
    %4378 = vmatprep.subr.mxu0 0.0
    %4379 = vmatpush2.msra.mxu0 0.0
    %4380 = vmatprep.subr.mxu0 0.0
    %4381 = vmatpush2.msra.mxu0 0.0
    %4382 = vmatprep.subr.mxu0 0.0
    %4383 = vmatpush2.msra.mxu0 0.0
    %4384 = vmatprep.subr.mxu0 0.0
    %4385 = vmatpush2.msra.mxu0 0.0
    %4386 = vmatprep.subr.mxu0 0.0
    %4387 = vmatpush2.msra.mxu0 0.0
    %4388 = vmatprep.subr.mxu0 0.0
    %4389 = vmatpush2.msra.mxu0 0.0
    %4390 = vmatprep.subr.mxu0 0.0
    %4391 = vmatpush2.msra.mxu0 0.0
    %4392 = vmatprep.subr.mxu0 0.0
    %4393 = vmatpush2.msra.mxu0 0.0
    %4394 = vmatprep.subr.mxu0 0.0
    %4395 = vmatpush2.msra.mxu0 0.0
    %4396 = vmatprep.subr.mxu0 0.0
    %4397 = vmatpush2.msra.mxu0 0.0
    %4398 = vmatprep.subr.mxu0 0.0
    %4399 = vmatpush2.msra.mxu0 0.0
    %4400 = vmatprep.mubr.f32.mxu0 0.0
    %4401 = vmatmul.mubr.f32.gmra.mxu0 %v3812
    %v4402 = vpop.f32.mrf.mxu0
    %v4403 = vadd.f32 %v3837, %v4402
    %v4404 = vpop.f32.mrf.mxu0
    %4405 = vdwg.mxu0
    %4406 = vst [vmem:[%s4 + $0x38] sm:$0xff] %v4403
    // Predicated region
    $region30: #{linear_model_forward.1} parent=1 // pred_check
      _
    $region31: #{linear_model_forward.1} parent=1 // pred_check_branch
      %4408 = sbr.rel (0) target = $region33
    $region32: #{linear_model_forward.1} parent=1 // pred_region
      _
    $region33: #{linear_model_forward.1} parent=1 // pred_fallthru
      _
    // Predicated region
    $region34: #{linear_model_forward.1} parent=1 // pred_check
      _
    $region35: #{linear_model_forward.1} parent=1 // pred_check_branch
      %4410 = sbr.rel (0) target = $region37
    $region36: #{linear_model_forward.1} parent=1 // pred_region
      _
    $region37: #{linear_model_forward.1} parent=1 // pred_fallthru
      _
    %4411 = vsyncpa [#allocation3], 1
    %4412 = vsyncpa [#allocation5], 1

</llo_original>
